<compile_context>
chip_gen: v7x
topology: tpu7x:2x2x1
jax: 0.10.0
libtpu: 0.0.40
codegen_flags: <defaults>
</compile_context>

<pallas_src>
import functools

import jax
import jax.numpy as jnp
import numpy as np
from jax.experimental import pallas as pl
from jax.experimental.pallas import tpu as pltpu

EPS = 1e-5
LANE = 128   # TPU lane width: channel padding target


def _round_up(x, m):
    return (x + m - 1) // m * m


# ----------------------------- fused Pallas kernel ---------------------------

def _downsample_kernel(x_ref, w1_ref, s1_ref, b1_ref, w2_ref, s2_ref, b2_ref,
                       skip_ref, pool_ref, mid_ref):
    """One (batch, H-tile) grid step of the fused
    conv1+BN+ReLU -> conv2+BN+ReLU -> {skip store, 2x2 max-pool} pipeline.

    x_ref    : (1, H+4, W+4, Cin_p)  2-px spatially padded NHWC image (VMEM resident)
    w*_ref   : (9, Cin_p, Cmid_p)    weights, tap-major order (dy*3 + dx)
    s*/b*_ref: (1, Cmid_p)           folded BatchNorm scale / shift (f32)
    skip_ref : (1, TH, W, Cout)      real (unpadded) output channels
    pool_ref : (1, TH//2, W//2, Cout)
    mid_ref  : (TH+2, W+2, Cmid_p)   conv1 activation scratch incl. conv2 halo
    """
    th, wd, cout = skip_ref.shape[1], skip_ref.shape[2], skip_ref.shape[3]
    cin = x_ref.shape[3]
    cmid = w1_ref.shape[2]
    t = pl.program_id(1)
    row0 = pl.multiple_of(t * th, th)
    mrows = th + 2                       # conv1 rows incl. conv2's 1-row halo

    # ---- conv1 + BN + ReLU over (TH+2, W) rows into VMEM scratch (no HBM) ----
    def tap1(dy, dx):
        patch = x_ref[0, pl.ds(row0 + dy, mrows), pl.ds(1 + dx, wd), :]
        return jnp.dot(patch.reshape(mrows * wd, cin), w1_ref[dy * 3 + dx],
                       preferred_element_type=jnp.float32)

    acc1 = tap1(0, 0)                    # first tap initialises the accumulator
    for dy in range(3):
        for dx in range(3):
            if dy == 0 and dx == 0:
                continue
            acc1 += tap1(dy, dx)
    y1 = jnp.maximum(acc1 * s1_ref[...] + b1_ref[...], 0.0)   # BN + ReLU epilogue
    y1 = y1.reshape(mrows, wd, cmid).astype(mid_ref.dtype)

    zcol = jnp.zeros((mrows, 1, cmid), mid_ref.dtype)
    mid_ref[:, pl.ds(0, 1), :] = zcol            # conv2's zero W-padding columns
    mid_ref[:, pl.ds(wd + 1, 1), :] = zcol
    mid_ref[:, pl.ds(1, wd), :] = y1

    zrow = jnp.zeros((1, wd + 2, cmid), mid_ref.dtype)

    @pl.when(t == 0)                             # conv2's zero H-padding rows
    def _():
        mid_ref[pl.ds(0, 1), :, :] = zrow

    @pl.when(t == pl.num_programs(1) - 1)
    def _():
        mid_ref[pl.ds(th + 1, 1), :, :] = zrow

    # ---- conv2 + BN + ReLU over (TH, W) rows straight from the scratch ----
    def tap2(dy, dx):
        patch = mid_ref[pl.ds(dy, th), pl.ds(dx, wd), :]
        return jnp.dot(patch.reshape(th * wd, cmid), w2_ref[dy * 3 + dx],
                       preferred_element_type=jnp.float32)

    acc2 = tap2(0, 0)
    for dy in range(3):
        for dx in range(3):
            if dy == 0 and dx == 0:
                continue
            acc2 += tap2(dy, dx)
    y2 = jnp.maximum(acc2 * s2_ref[...] + b2_ref[...], 0.0)   # (TH*W, Cmid) f32
    y2v = y2.reshape(th, wd, cmid)

    # Write only the real channels (padded lanes never reach HBM).
    skip_ref[...] = y2v[:, :, :cout].reshape(1, th, wd, cout).astype(skip_ref.dtype)

    # ---- fused 2x2 max-pool from the live value (no re-read of skip_ref) ----
    a = y2v.reshape(th // 2, 2, wd, cmid)
    rmax = jnp.maximum(a[:, 0, :, :], a[:, 1, :, :])          # max over row pairs
    b = rmax.reshape(th // 2, wd // 2, 2, cmid)
    pooled = jnp.maximum(b[:, :, 0, :], b[:, :, 1, :])        # max over col pairs
    pool_ref[...] = pooled[:, :, :cout].reshape(1, th // 2, wd // 2, cout
                                                ).astype(pool_ref.dtype)


# --------------------------------- Wrapper -----------------------------------

def _pick_tile_h(h, w, cmid_p):
    """Largest even divisor of h keeping scratch/matmul operands VMEM-friendly."""
    best = 2
    for th in range(2, h + 1, 2):
        if h % th:
            continue
        rows_ok = (th + 2) * w <= 4096
        vmem_ok = (th + 2) * (w + 2) * cmid_p * 4 <= 4 * 1024 * 1024
        if rows_ok and vmem_ok:
            best = th
    return best


def _fold_bn_pad(p, cin_p, cout_p):
    """Fold conv bias + eval-mode BN into (w_taps, scale, shift); zero-pad the
    channel dims to lane-friendly sizes (padded channels stay exactly 0 through
    the ReLU, so they propagate harmlessly into conv2)."""
    w_oihw, conv_b = p["w"], p["b"]
    gamma, beta, mean, var = p["gamma"], p["beta"], p["mean"], p["var"]
    cout, cin, kh, kw = w_oihw.shape
    w = jnp.transpose(w_oihw, (2, 3, 1, 0)).reshape(kh * kw, cin, cout)
    scale = gamma / jnp.sqrt(var + EPS)
    shift = scale * (conv_b - mean) + beta
    w = jnp.pad(w, ((0, 0), (0, cin_p - cin), (0, cout_p - cout)))
    scale = jnp.pad(scale, (0, cout_p - cout)).reshape(1, cout_p)
    shift = jnp.pad(shift, (0, cout_p - cout)).reshape(1, cout_p)
    return w, scale, shift


def downsample_forward(x_nchw, params, *, tile_h=None,
                       compute_dtype=jnp.float32):
    """Returns (pooled, skip), both NCHW, matching the PyTorch module."""
    n, cin, h, w = x_nchw.shape
    cout = params["conv1"]["w"].shape[0]
    assert h % 2 == 0 and w % 2 == 0, "even H/W required (MaxPool2d(2,2))"
    cin_p = _round_up(cin, LANE)
    cmid_p = _round_up(cout, LANE)
    if tile_h is None:
        tile_h = _pick_tile_h(h, w, cmid_p)
    assert h % tile_h == 0 and tile_h % 2 == 0

    out_dtype = x_nchw.dtype
    x = jnp.transpose(x_nchw, (0, 2, 3, 1))                   # NCHW -> NHWC
    # One cheap XLA pad: 2-px spatial halo (conv1's own pad + conv2's halo)
    # plus channel padding to a lane-friendly width.
    xp = jnp.pad(x, ((0, 0), (2, 2), (2, 2), (0, cin_p - cin))).astype(compute_dtype)

    p1, p2 = params["conv1"], params["conv2"]
    w1, s1, b1 = _fold_bn_pad(p1, cin_p, cmid_p)
    w2, s2, b2 = _fold_bn_pad(p2, cmid_p, cmid_p)
    w1 = w1.astype(compute_dtype)
    w2 = w2.astype(compute_dtype)

    grid = (n, h // tile_h)
    itemsize_out = np.dtype(out_dtype).itemsize
    flops = 2 * 9 * n * h * w * (cin * cout + cout * cout)
    bytes_accessed = int(
        xp.size * xp.dtype.itemsize
        + (w1.size * w1.dtype.itemsize) + (w2.size * w2.dtype.itemsize)
        + n * h * w * cout * itemsize_out                       # skip
        + n * (h // 2) * (w // 2) * cout * itemsize_out)        # pooled

    skip, pooled = pl.pallas_call(
        _downsample_kernel,
        out_shape=(jax.ShapeDtypeStruct((n, h, w, cout), out_dtype),
                   jax.ShapeDtypeStruct((n, h // 2, w // 2, cout), out_dtype)),
        grid=grid,
        in_specs=[
            # Full padded image per batch element; index_map ignores the H-tile
            # index so the block stays VMEM-resident across H tiles of one image.
            pl.BlockSpec((1, h + 4, w + 4, cin_p), lambda i, t: (i, 0, 0, 0)),
            pl.BlockSpec((9, cin_p, cmid_p), lambda i, t: (0, 0, 0)),
            pl.BlockSpec((1, cmid_p), lambda i, t: (0, 0)),
            pl.BlockSpec((1, cmid_p), lambda i, t: (0, 0)),
            pl.BlockSpec((9, cmid_p, cmid_p), lambda i, t: (0, 0, 0)),
            pl.BlockSpec((1, cmid_p), lambda i, t: (0, 0)),
            pl.BlockSpec((1, cmid_p), lambda i, t: (0, 0)),
        ],
        out_specs=(pl.BlockSpec((1, tile_h, w, cout),
                                lambda i, t: (i, t, 0, 0)),
                   pl.BlockSpec((1, tile_h // 2, w // 2, cout),
                                lambda i, t: (i, t, 0, 0))),
        scratch_shapes=[pltpu.VMEM((tile_h + 2, w + 2, cmid_p), compute_dtype)],
        compiler_params=pltpu.CompilerParams(
            dimension_semantics=("parallel", "parallel"),
            vmem_limit_bytes=64 * 1024 * 1024),
        cost_estimate=pl.CostEstimate(flops=flops, transcendentals=0,
                                      bytes_accessed=bytes_accessed),
    )(xp, w1, s1, b1, w2, s2, b2)

    return (jnp.transpose(pooled, (0, 3, 1, 2)),               # NHWC -> NCHW
            jnp.transpose(skip, (0, 3, 1, 2)))


# ----------------------------- Reference (JAX) --------------------------------

def _reference(x_nchw, params):
    def cbr(x, p):
        y = jax.lax.conv_general_dilated(
            x, p["w"], (1, 1), "SAME",
            dimension_numbers=("NCHW", "OIHW", "NCHW"))
        y = y + p["b"][None, :, None, None]
        y = (p["gamma"][None, :, None, None]
             * (y - p["mean"][None, :, None, None])
             / jnp.sqrt(p["var"][None, :, None, None] + EPS)
             + p["beta"][None, :, None, None])
        return jnp.maximum(y, 0.0)

    y = cbr(cbr(x_nchw, params["conv1"]), params["conv2"])
    pooled = jax.lax.reduce_window(y, -jnp.inf, jax.lax.max,
                                   (1, 1, 2, 2), (1, 1, 2, 2), "VALID")
    return pooled, y


# ----------------------------------- Main --------------------------------------

def _init_params(key, cin, cout):
    def cbr_params(k, ci, co):
        kw_, kb, kg, kbe, km, kv = jax.random.split(k, 6)
        return dict(
            w=0.1 * jax.random.normal(kw_, (co, ci, 3, 3), jnp.float32),
            b=0.1 * jax.random.normal(kb, (co,), jnp.float32),
            gamma=1.0 + 0.1 * jax.random.normal(kg, (co,), jnp.float32),
            beta=0.1 * jax.random.normal(kbe, (co,), jnp.float32),
            mean=0.1 * jax.random.normal(km, (co,), jnp.float32),
            var=jax.random.uniform(kv, (co,), jnp.float32, 0.5, 1.5),
        )
    k1, k2 = jax.random.split(key)
    return {"conv1": cbr_params(k1, cin, cout),
            "conv2": cbr_params(k2, cout, cout)}


if __name__ == "__main__":
    key = jax.random.PRNGKey(0)
    kx, kp = jax.random.split(key)

    N, CIN, COUT, H, W = 2, 4, 8, 16, 16
    x = jax.random.normal(kx, (N, CIN, H, W), jnp.float32)
    params = _init_params(kp, CIN, COUT)

    # tile_h=8 -> grid (N, H/8) = (2, 2): exercises the tiled, fused path
    # including the pl.when boundary-halo zeroing on the first/last tiles.
    fwd = jax.jit(functools.partial(downsample_forward, tile_h=8))
    pooled, skip = fwd(x, params)
    pooled = jax.block_until_ready(pooled)
    skip = jax.block_until_ready(skip)

    assert pooled.shape == (N, COUT, H // 2, W // 2)
    assert skip.shape == (N, COUT, H, W)

    ref_pooled, ref_skip = _reference(x, params)
    np.testing.assert_allclose(np.asarray(skip), np.asarray(ref_skip),
                               rtol=1e-4, atol=1e-4)
    np.testing.assert_allclose(np.asarray(pooled), np.asarray(ref_pooled),
                               rtol=1e-4, atol=1e-4)

    print("KERNEL_OK")
</pallas_src>

<mosaic_0001>
module attributes {stable_mosaic.version = 11 : i64} {
  func.func @_downsample_kernel(%arg0: i32, %arg1: i32, %arg2: memref<1x20x20x128xf32, #tpu.memory_space<vmem>>, %arg3: memref<9x128x128xf32, #tpu.memory_space<vmem>>, %arg4: memref<1x128xf32, #tpu.memory_space<vmem>>, %arg5: memref<1x128xf32, #tpu.memory_space<vmem>>, %arg6: memref<9x128x128xf32, #tpu.memory_space<vmem>>, %arg7: memref<1x128xf32, #tpu.memory_space<vmem>>, %arg8: memref<1x128xf32, #tpu.memory_space<vmem>>, %arg9: memref<1x8x16x8xf32, #tpu.memory_space<vmem>>, %arg10: memref<1x4x8x8xf32, #tpu.memory_space<vmem>>, %arg11: memref<10x18x128xf32, #tpu.memory_space<vmem>>) attributes {dimension_semantics = [#tpu.dimension_semantics<parallel>, #tpu.dimension_semantics<parallel>], iteration_bounds = array<i64: 2, 2>, scalar_prefetch = 0 : i64, scratch_operands = 1 : i64, tpu.core_type = #tpu.core_type<tc>, window_params = [{transform_indices = @transform_0, window_bounds = array<i64: 1, 20, 20, 128>}, {pipeline_mode = #tpu.pipeline_mode<synchronous>, transform_indices = @transform_1, window_bounds = array<i64: 9, 128, 128>}, {pipeline_mode = #tpu.pipeline_mode<synchronous>, transform_indices = @transform_2, window_bounds = array<i64: 1, 128>}, {pipeline_mode = #tpu.pipeline_mode<synchronous>, transform_indices = @transform_3, window_bounds = array<i64: 1, 128>}, {pipeline_mode = #tpu.pipeline_mode<synchronous>, transform_indices = @transform_4, window_bounds = array<i64: 9, 128, 128>}, {pipeline_mode = #tpu.pipeline_mode<synchronous>, transform_indices = @transform_5, window_bounds = array<i64: 1, 128>}, {pipeline_mode = #tpu.pipeline_mode<synchronous>, transform_indices = @transform_6, window_bounds = array<i64: 1, 128>}, {transform_indices = @transform_7, window_bounds = array<i64: 1, 8, 16, 8>}, {transform_indices = @transform_8, window_bounds = array<i64: 1, 4, 8, 8>}]} {
    %c8_i32 = arith.constant 8 : i32
    %0 = arith.muli %arg1, %c8_i32 : i32
    %1 = tpu.assume_multiple %0, 8 : i32
    %c0_i32 = arith.constant 0 : i32
    %2 = arith.addi %1, %c0_i32 : i32
    %c0 = arith.constant 0 : index
    %3 = arith.index_cast %2 : i32 to index
    %c1 = arith.constant 1 : index
    %c0_0 = arith.constant 0 : index
    %4 = vector.load %arg2[%c0, %3, %c1, %c0_0] : memref<1x20x20x128xf32, #tpu.memory_space<vmem>>, vector<1x10x16x128xf32>
    %5 = vector.shape_cast %4 : vector<1x10x16x128xf32> to vector<10x16x128xf32>
    %6 = vector.shape_cast %5 : vector<10x16x128xf32> to vector<160x128xf32>
    %c0_1 = arith.constant 0 : index
    %c0_2 = arith.constant 0 : index
    %c0_3 = arith.constant 0 : index
    %7 = vector.load %arg3[%c0_1, %c0_2, %c0_3] : memref<9x128x128xf32, #tpu.memory_space<vmem>>, vector<1x128x128xf32>
    %8 = vector.shape_cast %7 : vector<1x128x128xf32> to vector<128x128xf32>
    %cst = arith.constant dense<0.000000e+00> : vector<160x128xf32>
    %9 = tpu.matmul %6, %8, %cst {dimension_numbers = #tpu.dot_dimension_numbers<[1], [0], [0], [1], [0, 0, 1, 1], [], []>} : vector<160x128xf32>, vector<128x128xf32>, vector<160x128xf32> -> vector<160x128xf32>
    %c0_i32_4 = arith.constant 0 : i32
    %10 = arith.addi %1, %c0_i32_4 : i32
    %c0_5 = arith.constant 0 : index
    %11 = arith.index_cast %10 : i32 to index
    %c2 = arith.constant 2 : index
    %c0_6 = arith.constant 0 : index
    %12 = vector.load %arg2[%c0_5, %11, %c2, %c0_6] : memref<1x20x20x128xf32, #tpu.memory_space<vmem>>, vector<1x10x16x128xf32>
    %13 = vector.shape_cast %12 : vector<1x10x16x128xf32> to vector<10x16x128xf32>
    %14 = vector.shape_cast %13 : vector<10x16x128xf32> to vector<160x128xf32>
    %c1_7 = arith.constant 1 : index
    %c0_8 = arith.constant 0 : index
    %c0_9 = arith.constant 0 : index
    %15 = vector.load %arg3[%c1_7, %c0_8, %c0_9] : memref<9x128x128xf32, #tpu.memory_space<vmem>>, vector<1x128x128xf32>
    %16 = vector.shape_cast %15 : vector<1x128x128xf32> to vector<128x128xf32>
    %cst_10 = arith.constant dense<0.000000e+00> : vector<160x128xf32>
    %17 = tpu.matmul %14, %16, %cst_10 {dimension_numbers = #tpu.dot_dimension_numbers<[1], [0], [0], [1], [0, 0, 1, 1], [], []>} : vector<160x128xf32>, vector<128x128xf32>, vector<160x128xf32> -> vector<160x128xf32>
    %18 = arith.addf %9, %17 : vector<160x128xf32>
    %c0_i32_11 = arith.constant 0 : i32
    %19 = arith.addi %1, %c0_i32_11 : i32
    %c0_12 = arith.constant 0 : index
    %20 = arith.index_cast %19 : i32 to index
    %c3 = arith.constant 3 : index
    %c0_13 = arith.constant 0 : index
    %21 = vector.load %arg2[%c0_12, %20, %c3, %c0_13] : memref<1x20x20x128xf32, #tpu.memory_space<vmem>>, vector<1x10x16x128xf32>
    %22 = vector.shape_cast %21 : vector<1x10x16x128xf32> to vector<10x16x128xf32>
    %23 = vector.shape_cast %22 : vector<10x16x128xf32> to vector<160x128xf32>
    %c2_14 = arith.constant 2 : index
    %c0_15 = arith.constant 0 : index
    %c0_16 = arith.constant 0 : index
    %24 = vector.load %arg3[%c2_14, %c0_15, %c0_16] : memref<9x128x128xf32, #tpu.memory_space<vmem>>, vector<1x128x128xf32>
    %25 = vector.shape_cast %24 : vector<1x128x128xf32> to vector<128x128xf32>
    %cst_17 = arith.constant dense<0.000000e+00> : vector<160x128xf32>
    %26 = tpu.matmul %23, %25, %cst_17 {dimension_numbers = #tpu.dot_dimension_numbers<[1], [0], [0], [1], [0, 0, 1, 1], [], []>} : vector<160x128xf32>, vector<128x128xf32>, vector<160x128xf32> -> vector<160x128xf32>
    %27 = arith.addf %18, %26 : vector<160x128xf32>
    %c1_i32 = arith.constant 1 : i32
    %28 = arith.addi %1, %c1_i32 : i32
    %c0_18 = arith.constant 0 : index
    %29 = arith.index_cast %28 : i32 to index
    %c1_19 = arith.constant 1 : index
    %c0_20 = arith.constant 0 : index
    %30 = vector.load %arg2[%c0_18, %29, %c1_19, %c0_20] : memref<1x20x20x128xf32, #tpu.memory_space<vmem>>, vector<1x10x16x128xf32>
    %31 = vector.shape_cast %30 : vector<1x10x16x128xf32> to vector<10x16x128xf32>
    %32 = vector.shape_cast %31 : vector<10x16x128xf32> to vector<160x128xf32>
    %c3_21 = arith.constant 3 : index
    %c0_22 = arith.constant 0 : index
    %c0_23 = arith.constant 0 : index
    %33 = vector.load %arg3[%c3_21, %c0_22, %c0_23] : memref<9x128x128xf32, #tpu.memory_space<vmem>>, vector<1x128x128xf32>
    %34 = vector.shape_cast %33 : vector<1x128x128xf32> to vector<128x128xf32>
    %cst_24 = arith.constant dense<0.000000e+00> : vector<160x128xf32>
    %35 = tpu.matmul %32, %34, %cst_24 {dimension_numbers = #tpu.dot_dimension_numbers<[1], [0], [0], [1], [0, 0, 1, 1], [], []>} : vector<160x128xf32>, vector<128x128xf32>, vector<160x128xf32> -> vector<160x128xf32>
    %36 = arith.addf %27, %35 : vector<160x128xf32>
    %c1_i32_25 = arith.constant 1 : i32
    %37 = arith.addi %1, %c1_i32_25 : i32
    %c0_26 = arith.constant 0 : index
    %38 = arith.index_cast %37 : i32 to index
    %c2_27 = arith.constant 2 : index
    %c0_28 = arith.constant 0 : index
    %39 = vector.load %arg2[%c0_26, %38, %c2_27, %c0_28] : memref<1x20x20x128xf32, #tpu.memory_space<vmem>>, vector<1x10x16x128xf32>
    %40 = vector.shape_cast %39 : vector<1x10x16x128xf32> to vector<10x16x128xf32>
    %41 = vector.shape_cast %40 : vector<10x16x128xf32> to vector<160x128xf32>
    %c4 = arith.constant 4 : index
    %c0_29 = arith.constant 0 : index
    %c0_30 = arith.constant 0 : index
    %42 = vector.load %arg3[%c4, %c0_29, %c0_30] : memref<9x128x128xf32, #tpu.memory_space<vmem>>, vector<1x128x128xf32>
    %43 = vector.shape_cast %42 : vector<1x128x128xf32> to vector<128x128xf32>
    %cst_31 = arith.constant dense<0.000000e+00> : vector<160x128xf32>
    %44 = tpu.matmul %41, %43, %cst_31 {dimension_numbers = #tpu.dot_dimension_numbers<[1], [0], [0], [1], [0, 0, 1, 1], [], []>} : vector<160x128xf32>, vector<128x128xf32>, vector<160x128xf32> -> vector<160x128xf32>
    %45 = arith.addf %36, %44 : vector<160x128xf32>
    %c1_i32_32 = arith.constant 1 : i32
    %46 = arith.addi %1, %c1_i32_32 : i32
    %c0_33 = arith.constant 0 : index
    %47 = arith.index_cast %46 : i32 to index
    %c3_34 = arith.constant 3 : index
    %c0_35 = arith.constant 0 : index
    %48 = vector.load %arg2[%c0_33, %47, %c3_34, %c0_35] : memref<1x20x20x128xf32, #tpu.memory_space<vmem>>, vector<1x10x16x128xf32>
    %49 = vector.shape_cast %48 : vector<1x10x16x128xf32> to vector<10x16x128xf32>
    %50 = vector.shape_cast %49 : vector<10x16x128xf32> to vector<160x128xf32>
    %c5 = arith.constant 5 : index
    %c0_36 = arith.constant 0 : index
    %c0_37 = arith.constant 0 : index
    %51 = vector.load %arg3[%c5, %c0_36, %c0_37] : memref<9x128x128xf32, #tpu.memory_space<vmem>>, vector<1x128x128xf32>
    %52 = vector.shape_cast %51 : vector<1x128x128xf32> to vector<128x128xf32>
    %cst_38 = arith.constant dense<0.000000e+00> : vector<160x128xf32>
    %53 = tpu.matmul %50, %52, %cst_38 {dimension_numbers = #tpu.dot_dimension_numbers<[1], [0], [0], [1], [0, 0, 1, 1], [], []>} : vector<160x128xf32>, vector<128x128xf32>, vector<160x128xf32> -> vector<160x128xf32>
    %54 = arith.addf %45, %53 : vector<160x128xf32>
    %c2_i32 = arith.constant 2 : i32
    %55 = arith.addi %1, %c2_i32 : i32
    %c0_39 = arith.constant 0 : index
    %56 = arith.index_cast %55 : i32 to index
    %c1_40 = arith.constant 1 : index
    %c0_41 = arith.constant 0 : index
    %57 = vector.load %arg2[%c0_39, %56, %c1_40, %c0_41] : memref<1x20x20x128xf32, #tpu.memory_space<vmem>>, vector<1x10x16x128xf32>
    %58 = vector.shape_cast %57 : vector<1x10x16x128xf32> to vector<10x16x128xf32>
    %59 = vector.shape_cast %58 : vector<10x16x128xf32> to vector<160x128xf32>
    %c6 = arith.constant 6 : index
    %c0_42 = arith.constant 0 : index
    %c0_43 = arith.constant 0 : index
    %60 = vector.load %arg3[%c6, %c0_42, %c0_43] : memref<9x128x128xf32, #tpu.memory_space<vmem>>, vector<1x128x128xf32>
    %61 = vector.shape_cast %60 : vector<1x128x128xf32> to vector<128x128xf32>
    %cst_44 = arith.constant dense<0.000000e+00> : vector<160x128xf32>
    %62 = tpu.matmul %59, %61, %cst_44 {dimension_numbers = #tpu.dot_dimension_numbers<[1], [0], [0], [1], [0, 0, 1, 1], [], []>} : vector<160x128xf32>, vector<128x128xf32>, vector<160x128xf32> -> vector<160x128xf32>
    %63 = arith.addf %54, %62 : vector<160x128xf32>
    %c2_i32_45 = arith.constant 2 : i32
    %64 = arith.addi %1, %c2_i32_45 : i32
    %c0_46 = arith.constant 0 : index
    %65 = arith.index_cast %64 : i32 to index
    %c2_47 = arith.constant 2 : index
    %c0_48 = arith.constant 0 : index
    %66 = vector.load %arg2[%c0_46, %65, %c2_47, %c0_48] : memref<1x20x20x128xf32, #tpu.memory_space<vmem>>, vector<1x10x16x128xf32>
    %67 = vector.shape_cast %66 : vector<1x10x16x128xf32> to vector<10x16x128xf32>
    %68 = vector.shape_cast %67 : vector<10x16x128xf32> to vector<160x128xf32>
    %c7 = arith.constant 7 : index
    %c0_49 = arith.constant 0 : index
    %c0_50 = arith.constant 0 : index
    %69 = vector.load %arg3[%c7, %c0_49, %c0_50] : memref<9x128x128xf32, #tpu.memory_space<vmem>>, vector<1x128x128xf32>
    %70 = vector.shape_cast %69 : vector<1x128x128xf32> to vector<128x128xf32>
    %cst_51 = arith.constant dense<0.000000e+00> : vector<160x128xf32>
    %71 = tpu.matmul %68, %70, %cst_51 {dimension_numbers = #tpu.dot_dimension_numbers<[1], [0], [0], [1], [0, 0, 1, 1], [], []>} : vector<160x128xf32>, vector<128x128xf32>, vector<160x128xf32> -> vector<160x128xf32>
    %72 = arith.addf %63, %71 : vector<160x128xf32>
    %c2_i32_52 = arith.constant 2 : i32
    %73 = arith.addi %1, %c2_i32_52 : i32
    %c0_53 = arith.constant 0 : index
    %74 = arith.index_cast %73 : i32 to index
    %c3_54 = arith.constant 3 : index
    %c0_55 = arith.constant 0 : index
    %75 = vector.load %arg2[%c0_53, %74, %c3_54, %c0_55] : memref<1x20x20x128xf32, #tpu.memory_space<vmem>>, vector<1x10x16x128xf32>
    %76 = vector.shape_cast %75 : vector<1x10x16x128xf32> to vector<10x16x128xf32>
    %77 = vector.shape_cast %76 : vector<10x16x128xf32> to vector<160x128xf32>
    %c8 = arith.constant 8 : index
    %c0_56 = arith.constant 0 : index
    %c0_57 = arith.constant 0 : index
    %78 = vector.load %arg3[%c8, %c0_56, %c0_57] : memref<9x128x128xf32, #tpu.memory_space<vmem>>, vector<1x128x128xf32>
    %79 = vector.shape_cast %78 : vector<1x128x128xf32> to vector<128x128xf32>
    %cst_58 = arith.constant dense<0.000000e+00> : vector<160x128xf32>
    %80 = tpu.matmul %77, %79, %cst_58 {dimension_numbers = #tpu.dot_dimension_numbers<[1], [0], [0], [1], [0, 0, 1, 1], [], []>} : vector<160x128xf32>, vector<128x128xf32>, vector<160x128xf32> -> vector<160x128xf32>
    %81 = arith.addf %72, %80 : vector<160x128xf32>
    %c0_59 = arith.constant 0 : index
    %c0_60 = arith.constant 0 : index
    %82 = vector.load %arg4[%c0_59, %c0_60] : memref<1x128xf32, #tpu.memory_space<vmem>>, vector<1x128xf32>
    %83 = vector.broadcast %82 : vector<1x128xf32> to vector<160x128xf32>
    %84 = arith.mulf %81, %83 : vector<160x128xf32>
    %c0_61 = arith.constant 0 : index
    %c0_62 = arith.constant 0 : index
    %85 = vector.load %arg5[%c0_61, %c0_62] : memref<1x128xf32, #tpu.memory_space<vmem>>, vector<1x128xf32>
    %86 = vector.broadcast %85 : vector<1x128xf32> to vector<160x128xf32>
    %87 = arith.addf %84, %86 : vector<160x128xf32>
    %cst_63 = arith.constant 0.000000e+00 : f32
    %88 = vector.broadcast %cst_63 : f32 to vector<160x128xf32>
    %89 = arith.maximumf %87, %88 : vector<160x128xf32>
    %90 = vector.shape_cast %89 : vector<160x128xf32> to vector<10x16x128xf32>
    %cst_64 = arith.constant 0.000000e+00 : f32
    %91 = vector.broadcast %cst_64 : f32 to vector<10x1x128xf32>
    %c0_65 = arith.constant 0 : index
    %c0_66 = arith.constant 0 : index
    %c0_67 = arith.constant 0 : index
    %92 = vector.load %arg11[%c0_65, %c0_66, %c0_67] : memref<10x18x128xf32, #tpu.memory_space<vmem>>, vector<10x1x128xf32>
    tpu.vector_store %arg11[%c0_65, %c0_66, %c0_67], %91 {strides = array<i32>} : memref<10x18x128xf32, #tpu.memory_space<vmem>>, vector<10x1x128xf32>,
    %c0_68 = arith.constant 0 : index
    %c17 = arith.constant 17 : index
    %c0_69 = arith.constant 0 : index
    %93 = vector.load %arg11[%c0_68, %c17, %c0_69] : memref<10x18x128xf32, #tpu.memory_space<vmem>>, vector<10x1x128xf32>
    tpu.vector_store %arg11[%c0_68, %c17, %c0_69], %91 {strides = array<i32>} : memref<10x18x128xf32, #tpu.memory_space<vmem>>, vector<10x1x128xf32>,
    %c0_70 = arith.constant 0 : index
    %c1_71 = arith.constant 1 : index
    %c0_72 = arith.constant 0 : index
    %94 = vector.load %arg11[%c0_70, %c1_71, %c0_72] : memref<10x18x128xf32, #tpu.memory_space<vmem>>, vector<10x16x128xf32>
    tpu.vector_store %arg11[%c0_70, %c1_71, %c0_72], %90 {strides = array<i32>} : memref<10x18x128xf32, #tpu.memory_space<vmem>>, vector<10x16x128xf32>,
    %cst_73 = arith.constant 0.000000e+00 : f32
    %95 = vector.broadcast %cst_73 : f32 to vector<1x18x128xf32>
    %c0_i32_74 = arith.constant 0 : i32
    %96 = arith.cmpi eq, %arg1, %c0_i32_74 : i32
    %97 = arith.extui %96 : i1 to i32
    %c0_i32_75 = arith.constant 0 : i32
    %98 = arith.cmpi ne, %97, %c0_i32_75 : i32
    scf.if %98 {
      %c0_154 = arith.constant 0 : index
      %c0_155 = arith.constant 0 : index
      %c0_156 = arith.constant 0 : index
      %182 = vector.load %arg11[%c0_154, %c0_155, %c0_156] : memref<10x18x128xf32, #tpu.memory_space<vmem>>, vector<1x18x128xf32>
      tpu.vector_store %arg11[%c0_154, %c0_155, %c0_156], %95 {strides = array<i32>} : memref<10x18x128xf32, #tpu.memory_space<vmem>>, vector<1x18x128xf32>,
    } else {
    }
    %c1_i32_76 = arith.constant 1 : i32
    %99 = arith.cmpi eq, %arg1, %c1_i32_76 : i32
    %100 = arith.extui %99 : i1 to i32
    %c0_i32_77 = arith.constant 0 : i32
    %101 = arith.cmpi ne, %100, %c0_i32_77 : i32
    scf.if %101 {
      %c9 = arith.constant 9 : index
      %c0_154 = arith.constant 0 : index
      %c0_155 = arith.constant 0 : index
      %182 = vector.load %arg11[%c9, %c0_154, %c0_155] : memref<10x18x128xf32, #tpu.memory_space<vmem>>, vector<1x18x128xf32>
      tpu.vector_store %arg11[%c9, %c0_154, %c0_155], %95 {strides = array<i32>} : memref<10x18x128xf32, #tpu.memory_space<vmem>>, vector<1x18x128xf32>,
    } else {
    }
    %c0_78 = arith.constant 0 : index
    %c0_79 = arith.constant 0 : index
    %c0_80 = arith.constant 0 : index
    %102 = vector.load %arg11[%c0_78, %c0_79, %c0_80] : memref<10x18x128xf32, #tpu.memory_space<vmem>>, vector<8x16x128xf32>
    %103 = vector.shape_cast %102 : vector<8x16x128xf32> to vector<128x128xf32>
    %c0_81 = arith.constant 0 : index
    %c0_82 = arith.constant 0 : index
    %c0_83 = arith.constant 0 : index
    %104 = vector.load %arg6[%c0_81, %c0_82, %c0_83] : memref<9x128x128xf32, #tpu.memory_space<vmem>>, vector<1x128x128xf32>
    %105 = vector.shape_cast %104 : vector<1x128x128xf32> to vector<128x128xf32>
    %cst_84 = arith.constant dense<0.000000e+00> : vector<128x128xf32>
    %106 = tpu.matmul %103, %105, %cst_84 {dimension_numbers = #tpu.dot_dimension_numbers<[1], [0], [0], [1], [0, 0, 1, 1], [], []>} : vector<128x128xf32>, vector<128x128xf32>, vector<128x128xf32> -> vector<128x128xf32>
    %c0_85 = arith.constant 0 : index
    %c1_86 = arith.constant 1 : index
    %c0_87 = arith.constant 0 : index
    %107 = vector.load %arg11[%c0_85, %c1_86, %c0_87] : memref<10x18x128xf32, #tpu.memory_space<vmem>>, vector<8x16x128xf32>
    %108 = vector.shape_cast %107 : vector<8x16x128xf32> to vector<128x128xf32>
    %c1_88 = arith.constant 1 : index
    %c0_89 = arith.constant 0 : index
    %c0_90 = arith.constant 0 : index
    %109 = vector.load %arg6[%c1_88, %c0_89, %c0_90] : memref<9x128x128xf32, #tpu.memory_space<vmem>>, vector<1x128x128xf32>
    %110 = vector.shape_cast %109 : vector<1x128x128xf32> to vector<128x128xf32>
    %cst_91 = arith.constant dense<0.000000e+00> : vector<128x128xf32>
    %111 = tpu.matmul %108, %110, %cst_91 {dimension_numbers = #tpu.dot_dimension_numbers<[1], [0], [0], [1], [0, 0, 1, 1], [], []>} : vector<128x128xf32>, vector<128x128xf32>, vector<128x128xf32> -> vector<128x128xf32>
    %112 = arith.addf %106, %111 : vector<128x128xf32>
    %c0_92 = arith.constant 0 : index
    %c2_93 = arith.constant 2 : index
    %c0_94 = arith.constant 0 : index
    %113 = vector.load %arg11[%c0_92, %c2_93, %c0_94] : memref<10x18x128xf32, #tpu.memory_space<vmem>>, vector<8x16x128xf32>
    %114 = vector.shape_cast %113 : vector<8x16x128xf32> to vector<128x128xf32>
    %c2_95 = arith.constant 2 : index
    %c0_96 = arith.constant 0 : index
    %c0_97 = arith.constant 0 : index
    %115 = vector.load %arg6[%c2_95, %c0_96, %c0_97] : memref<9x128x128xf32, #tpu.memory_space<vmem>>, vector<1x128x128xf32>
    %116 = vector.shape_cast %115 : vector<1x128x128xf32> to vector<128x128xf32>
    %cst_98 = arith.constant dense<0.000000e+00> : vector<128x128xf32>
    %117 = tpu.matmul %114, %116, %cst_98 {dimension_numbers = #tpu.dot_dimension_numbers<[1], [0], [0], [1], [0, 0, 1, 1], [], []>} : vector<128x128xf32>, vector<128x128xf32>, vector<128x128xf32> -> vector<128x128xf32>
    %118 = arith.addf %112, %117 : vector<128x128xf32>
    %c1_99 = arith.constant 1 : index
    %c0_100 = arith.constant 0 : index
    %c0_101 = arith.constant 0 : index
    %119 = vector.load %arg11[%c1_99, %c0_100, %c0_101] : memref<10x18x128xf32, #tpu.memory_space<vmem>>, vector<8x16x128xf32>
    %120 = vector.shape_cast %119 : vector<8x16x128xf32> to vector<128x128xf32>
    %c3_102 = arith.constant 3 : index
    %c0_103 = arith.constant 0 : index
    %c0_104 = arith.constant 0 : index
    %121 = vector.load %arg6[%c3_102, %c0_103, %c0_104] : memref<9x128x128xf32, #tpu.memory_space<vmem>>, vector<1x128x128xf32>
    %122 = vector.shape_cast %121 : vector<1x128x128xf32> to vector<128x128xf32>
    %cst_105 = arith.constant dense<0.000000e+00> : vector<128x128xf32>
    %123 = tpu.matmul %120, %122, %cst_105 {dimension_numbers = #tpu.dot_dimension_numbers<[1], [0], [0], [1], [0, 0, 1, 1], [], []>} : vector<128x128xf32>, vector<128x128xf32>, vector<128x128xf32> -> vector<128x128xf32>
    %124 = arith.addf %118, %123 : vector<128x128xf32>
    %c1_106 = arith.constant 1 : index
    %c1_107 = arith.constant 1 : index
    %c0_108 = arith.constant 0 : index
    %125 = vector.load %arg11[%c1_106, %c1_107, %c0_108] : memref<10x18x128xf32, #tpu.memory_space<vmem>>, vector<8x16x128xf32>
    %126 = vector.shape_cast %125 : vector<8x16x128xf32> to vector<128x128xf32>
    %c4_109 = arith.constant 4 : index
    %c0_110 = arith.constant 0 : index
    %c0_111 = arith.constant 0 : index
    %127 = vector.load %arg6[%c4_109, %c0_110, %c0_111] : memref<9x128x128xf32, #tpu.memory_space<vmem>>, vector<1x128x128xf32>
    %128 = vector.shape_cast %127 : vector<1x128x128xf32> to vector<128x128xf32>
    %cst_112 = arith.constant dense<0.000000e+00> : vector<128x128xf32>
    %129 = tpu.matmul %126, %128, %cst_112 {dimension_numbers = #tpu.dot_dimension_numbers<[1], [0], [0], [1], [0, 0, 1, 1], [], []>} : vector<128x128xf32>, vector<128x128xf32>, vector<128x128xf32> -> vector<128x128xf32>
    %130 = arith.addf %124, %129 : vector<128x128xf32>
    %c1_113 = arith.constant 1 : index
    %c2_114 = arith.constant 2 : index
    %c0_115 = arith.constant 0 : index
    %131 = vector.load %arg11[%c1_113, %c2_114, %c0_115] : memref<10x18x128xf32, #tpu.memory_space<vmem>>, vector<8x16x128xf32>
    %132 = vector.shape_cast %131 : vector<8x16x128xf32> to vector<128x128xf32>
    %c5_116 = arith.constant 5 : index
    %c0_117 = arith.constant 0 : index
    %c0_118 = arith.constant 0 : index
    %133 = vector.load %arg6[%c5_116, %c0_117, %c0_118] : memref<9x128x128xf32, #tpu.memory_space<vmem>>, vector<1x128x128xf32>
    %134 = vector.shape_cast %133 : vector<1x128x128xf32> to vector<128x128xf32>
    %cst_119 = arith.constant dense<0.000000e+00> : vector<128x128xf32>
    %135 = tpu.matmul %132, %134, %cst_119 {dimension_numbers = #tpu.dot_dimension_numbers<[1], [0], [0], [1], [0, 0, 1, 1], [], []>} : vector<128x128xf32>, vector<128x128xf32>, vector<128x128xf32> -> vector<128x128xf32>
    %136 = arith.addf %130, %135 : vector<128x128xf32>
    %c2_120 = arith.constant 2 : index
    %c0_121 = arith.constant 0 : index
    %c0_122 = arith.constant 0 : index
    %137 = vector.load %arg11[%c2_120, %c0_121, %c0_122] : memref<10x18x128xf32, #tpu.memory_space<vmem>>, vector<8x16x128xf32>
    %138 = vector.shape_cast %137 : vector<8x16x128xf32> to vector<128x128xf32>
    %c6_123 = arith.constant 6 : index
    %c0_124 = arith.constant 0 : index
    %c0_125 = arith.constant 0 : index
    %139 = vector.load %arg6[%c6_123, %c0_124, %c0_125] : memref<9x128x128xf32, #tpu.memory_space<vmem>>, vector<1x128x128xf32>
    %140 = vector.shape_cast %139 : vector<1x128x128xf32> to vector<128x128xf32>
    %cst_126 = arith.constant dense<0.000000e+00> : vector<128x128xf32>
    %141 = tpu.matmul %138, %140, %cst_126 {dimension_numbers = #tpu.dot_dimension_numbers<[1], [0], [0], [1], [0, 0, 1, 1], [], []>} : vector<128x128xf32>, vector<128x128xf32>, vector<128x128xf32> -> vector<128x128xf32>
    %142 = arith.addf %136, %141 : vector<128x128xf32>
    %c2_127 = arith.constant 2 : index
    %c1_128 = arith.constant 1 : index
    %c0_129 = arith.constant 0 : index
    %143 = vector.load %arg11[%c2_127, %c1_128, %c0_129] : memref<10x18x128xf32, #tpu.memory_space<vmem>>, vector<8x16x128xf32>
    %144 = vector.shape_cast %143 : vector<8x16x128xf32> to vector<128x128xf32>
    %c7_130 = arith.constant 7 : index
    %c0_131 = arith.constant 0 : index
    %c0_132 = arith.constant 0 : index
    %145 = vector.load %arg6[%c7_130, %c0_131, %c0_132] : memref<9x128x128xf32, #tpu.memory_space<vmem>>, vector<1x128x128xf32>
    %146 = vector.shape_cast %145 : vector<1x128x128xf32> to vector<128x128xf32>
    %cst_133 = arith.constant dense<0.000000e+00> : vector<128x128xf32>
    %147 = tpu.matmul %144, %146, %cst_133 {dimension_numbers = #tpu.dot_dimension_numbers<[1], [0], [0], [1], [0, 0, 1, 1], [], []>} : vector<128x128xf32>, vector<128x128xf32>, vector<128x128xf32> -> vector<128x128xf32>
    %148 = arith.addf %142, %147 : vector<128x128xf32>
    %c2_134 = arith.constant 2 : index
    %c2_135 = arith.constant 2 : index
    %c0_136 = arith.constant 0 : index
    %149 = vector.load %arg11[%c2_134, %c2_135, %c0_136] : memref<10x18x128xf32, #tpu.memory_space<vmem>>, vector<8x16x128xf32>
    %150 = vector.shape_cast %149 : vector<8x16x128xf32> to vector<128x128xf32>
    %c8_137 = arith.constant 8 : index
    %c0_138 = arith.constant 0 : index
    %c0_139 = arith.constant 0 : index
    %151 = vector.load %arg6[%c8_137, %c0_138, %c0_139] : memref<9x128x128xf32, #tpu.memory_space<vmem>>, vector<1x128x128xf32>
    %152 = vector.shape_cast %151 : vector<1x128x128xf32> to vector<128x128xf32>
    %cst_140 = arith.constant dense<0.000000e+00> : vector<128x128xf32>
    %153 = tpu.matmul %150, %152, %cst_140 {dimension_numbers = #tpu.dot_dimension_numbers<[1], [0], [0], [1], [0, 0, 1, 1], [], []>} : vector<128x128xf32>, vector<128x128xf32>, vector<128x128xf32> -> vector<128x128xf32>
    %154 = arith.addf %148, %153 : vector<128x128xf32>
    %c0_141 = arith.constant 0 : index
    %c0_142 = arith.constant 0 : index
    %155 = vector.load %arg7[%c0_141, %c0_142] : memref<1x128xf32, #tpu.memory_space<vmem>>, vector<1x128xf32>
    %156 = vector.broadcast %155 : vector<1x128xf32> to vector<128x128xf32>
    %157 = arith.mulf %154, %156 : vector<128x128xf32>
    %c0_143 = arith.constant 0 : index
    %c0_144 = arith.constant 0 : index
    %158 = vector.load %arg8[%c0_143, %c0_144] : memref<1x128xf32, #tpu.memory_space<vmem>>, vector<1x128xf32>
    %159 = vector.broadcast %158 : vector<1x128xf32> to vector<128x128xf32>
    %160 = arith.addf %157, %159 : vector<128x128xf32>
    %cst_145 = arith.constant 0.000000e+00 : f32
    %161 = vector.broadcast %cst_145 : f32 to vector<128x128xf32>
    %162 = arith.maximumf %160, %161 : vector<128x128xf32>
    %163 = vector.shape_cast %162 : vector<128x128xf32> to vector<8x16x128xf32>
    %164 = vector.extract_strided_slice %163 {offsets = [0, 0, 0], sizes = [8, 16, 8], strides = [1, 1, 1]} : vector<8x16x128xf32> to vector<8x16x8xf32>
    %165 = vector.shape_cast %164 : vector<8x16x8xf32> to vector<1x8x16x8xf32>
    %c0_146 = arith.constant 0 : index
    %c0_147 = arith.constant 0 : index
    %c0_148 = arith.constant 0 : index
    %c0_149 = arith.constant 0 : index
    %166 = vector.load %arg9[%c0_146, %c0_147, %c0_148, %c0_149] : memref<1x8x16x8xf32, #tpu.memory_space<vmem>>, vector<1x8x16x8xf32>
    tpu.vector_store %arg9[%c0_146, %c0_147, %c0_148, %c0_149], %165 {strides = array<i32>} : memref<1x8x16x8xf32, #tpu.memory_space<vmem>>, vector<1x8x16x8xf32>,
    %167 = vector.shape_cast %163 : vector<8x16x128xf32> to vector<4x2x16x128xf32>
    %168 = vector.extract_strided_slice %167 {offsets = [0, 0, 0, 0], sizes = [4, 1, 16, 128], strides = [1, 1, 1, 1]} : vector<4x2x16x128xf32> to vector<4x1x16x128xf32>
    %169 = vector.shape_cast %168 : vector<4x1x16x128xf32> to vector<4x16x128xf32>
    %170 = vector.extract_strided_slice %167 {offsets = [0, 1, 0, 0], sizes = [4, 1, 16, 128], strides = [1, 1, 1, 1]} : vector<4x2x16x128xf32> to vector<4x1x16x128xf32>
    %171 = vector.shape_cast %170 : vector<4x1x16x128xf32> to vector<4x16x128xf32>
    %172 = arith.maximumf %169, %171 : vector<4x16x128xf32>
    %173 = vector.shape_cast %172 : vector<4x16x128xf32> to vector<4x8x2x128xf32>
    %174 = vector.extract_strided_slice %173 {offsets = [0, 0, 0, 0], sizes = [4, 8, 1, 128], strides = [1, 1, 1, 1]} : vector<4x8x2x128xf32> to vector<4x8x1x128xf32>
    %175 = vector.shape_cast %174 : vector<4x8x1x128xf32> to vector<4x8x128xf32>
    %176 = vector.extract_strided_slice %173 {offsets = [0, 0, 1, 0], sizes = [4, 8, 1, 128], strides = [1, 1, 1, 1]} : vector<4x8x2x128xf32> to vector<4x8x1x128xf32>
    %177 = vector.shape_cast %176 : vector<4x8x1x128xf32> to vector<4x8x128xf32>
    %178 = arith.maximumf %175, %177 : vector<4x8x128xf32>
    %179 = vector.extract_strided_slice %178 {offsets = [0, 0, 0], sizes = [4, 8, 8], strides = [1, 1, 1]} : vector<4x8x128xf32> to vector<4x8x8xf32>
    %180 = vector.shape_cast %179 : vector<4x8x8xf32> to vector<1x4x8x8xf32>
    %c0_150 = arith.constant 0 : index
    %c0_151 = arith.constant 0 : index
    %c0_152 = arith.constant 0 : index
    %c0_153 = arith.constant 0 : index
    %181 = vector.load %arg10[%c0_150, %c0_151, %c0_152, %c0_153] : memref<1x4x8x8xf32, #tpu.memory_space<vmem>>, vector<1x4x8x8xf32>
    tpu.vector_store %arg10[%c0_150, %c0_151, %c0_152, %c0_153], %180 {strides = array<i32>} : memref<1x4x8x8xf32, #tpu.memory_space<vmem>>, vector<1x4x8x8xf32>,
    return
  }
  func.func @transform_0(%arg0: i32, %arg1: i32) -> (i32, i32, i32, i32) {
    %c0_i32 = arith.constant 0 : i32
    %c0_i32_0 = arith.constant 0 : i32
    %c0_i32_1 = arith.constant 0 : i32
    %c0_i32_2 = arith.constant 0 : i32
    return %arg0, %c0_i32, %c0_i32_0, %c0_i32_1 : i32, i32, i32, i32
  }
  func.func @transform_1(%arg0: i32, %arg1: i32) -> (i32, i32, i32) {
    %c0_i32 = arith.constant 0 : i32
    %c0_i32_0 = arith.constant 0 : i32
    %c0_i32_1 = arith.constant 0 : i32
    %c0_i32_2 = arith.constant 0 : i32
    return %c0_i32, %c0_i32_0, %c0_i32_1 : i32, i32, i32
  }
  func.func @transform_2(%arg0: i32, %arg1: i32) -> (i32, i32) {
    %c0_i32 = arith.constant 0 : i32
    %c0_i32_0 = arith.constant 0 : i32
    %c0_i32_1 = arith.constant 0 : i32
    return %c0_i32, %c0_i32_0 : i32, i32
  }
  func.func @transform_3(%arg0: i32, %arg1: i32) -> (i32, i32) {
    %c0_i32 = arith.constant 0 : i32
    %c0_i32_0 = arith.constant 0 : i32
    %c0_i32_1 = arith.constant 0 : i32
    return %c0_i32, %c0_i32_0 : i32, i32
  }
  func.func @transform_4(%arg0: i32, %arg1: i32) -> (i32, i32, i32) {
    %c0_i32 = arith.constant 0 : i32
    %c0_i32_0 = arith.constant 0 : i32
    %c0_i32_1 = arith.constant 0 : i32
    %c0_i32_2 = arith.constant 0 : i32
    return %c0_i32, %c0_i32_0, %c0_i32_1 : i32, i32, i32
  }
  func.func @transform_5(%arg0: i32, %arg1: i32) -> (i32, i32) {
    %c0_i32 = arith.constant 0 : i32
    %c0_i32_0 = arith.constant 0 : i32
    %c0_i32_1 = arith.constant 0 : i32
    return %c0_i32, %c0_i32_0 : i32, i32
  }
  func.func @transform_6(%arg0: i32, %arg1: i32) -> (i32, i32) {
    %c0_i32 = arith.constant 0 : i32
    %c0_i32_0 = arith.constant 0 : i32
    %c0_i32_1 = arith.constant 0 : i32
    return %c0_i32, %c0_i32_0 : i32, i32
  }
  func.func @transform_7(%arg0: i32, %arg1: i32) -> (i32, i32, i32, i32) {
    %c0_i32 = arith.constant 0 : i32
    %c0_i32_0 = arith.constant 0 : i32
    %c0_i32_1 = arith.constant 0 : i32
    return %arg0, %arg1, %c0_i32, %c0_i32_0 : i32, i32, i32, i32
  }
  func.func @transform_8(%arg0: i32, %arg1: i32) -> (i32, i32, i32, i32) {
    %c0_i32 = arith.constant 0 : i32
    %c0_i32_0 = arith.constant 0 : i32
    %c0_i32_1 = arith.constant 0 : i32
    return %arg0, %arg1, %c0_i32, %c0_i32_0 : i32, i32, i32, i32
  }
}

</mosaic_0001>

<llo_original>
// kernel: downsample_forward.1
$region0: #{downsample_forward.1}
  #allocation0 [shape = 'u32[]', space=smem, size = 0x4, offset = 0x4, fixed_abs, tag = 'smem constant byte address 0x4 - core index']
  #allocation1 [shape = 'u32[144,128]{1,0:T(1,128)}', space=vmem, size = 0x12000, scoped, tag = 'internal scratch']
  #allocation2 [shape = 'f32[10,18,128]{2,1,0:T(8,128)}', space=vmem, size = 0x1e000, scoped, tag = 'scratch operand']
  %s0 = inlined_call_operand.hbm [shape: f32[2,20,20,128], index: 0, kind: input, shape index: {}]
  %s1 = inlined_call_operand.hbm [shape: f32[9,128,128], index: 1, kind: input, shape index: {}]
  %s2 = inlined_call_operand.hbm [shape: f32[1,128], index: 2, kind: input, shape index: {}]
  %s3 = inlined_call_operand.hbm [shape: f32[1,128], index: 3, kind: input, shape index: {}]
  %s4 = inlined_call_operand.hbm [shape: f32[9,128,128], index: 4, kind: input, shape index: {}]
  %s5 = inlined_call_operand.hbm [shape: f32[1,128], index: 5, kind: input, shape index: {}]
  %s6 = inlined_call_operand.hbm [shape: f32[1,128], index: 6, kind: input, shape index: {}]
  %s7 = inlined_call_operand.hbm [shape: f32[2,16,16,8], index: 7, kind: output, shape index: {0}]
  %s8 = inlined_call_operand.hbm [shape: f32[2,8,8,8], index: 8, kind: output, shape index: {1}]
  %9 = xla_tuple %s7, %s8
  %s10 = sld [smem:[#allocation0]]
  $region105: #{downsample_forward.1} parent=0
    _
  %s12 = ssub.s32 1, %s10
  %s13 = scalar_select 0, %s12, %s10
  $region1: #{downsample_forward.1} parent=0
    #allocation3 [shape = 'u8[491520]{0}', space=vmem, size = 0x78000, scoped, tag = 'input window, operand 0']
    #allocation4 [shape = 's32[2]{0}', space=sflag, size = 0x8, scoped, tag = 'scoped memory for downsample_forward.1']
    #allocation5 [shape = 's32[2]{0}', space=sflag, size = 0x8, scoped, tag = 'scoped memory for downsample_forward.1']
    #allocation6 [shape = 'u8[589824]{0}', space=vmem, size = 0x90000, scoped, tag = 'input window, operand 1, single buffered']
    #allocation7 [shape = 's32[1]{0}', space=sflag, size = 0x4, scoped, tag = 'scoped memory for downsample_forward.1']
    #allocation8 [shape = 'u8[512]{0}', space=vmem, size = 0x400, scoped, tag = 'input window, operand 2, single buffered']
    #allocation9 [shape = 'u8[512]{0}', space=vmem, size = 0x400, scoped, tag = 'input window, operand 3, single buffered']
    #allocation10 [shape = 's32[1]{0}', space=sflag, size = 0x4, scoped, tag = 'scoped memory for downsample_forward.1']
    #allocation11 [shape = 'u8[589824]{0}', space=vmem, size = 0x90000, scoped, tag = 'input window, operand 4, single buffered']
    #allocation12 [shape = 'u8[512]{0}', space=vmem, size = 0x400, scoped, tag = 'input window, operand 5, single buffered']
    #allocation13 [shape = 's32[1]{0}', space=sflag, size = 0x4, scoped, tag = 'scoped memory for downsample_forward.1']
    #allocation14 [shape = 'u8[512]{0}', space=vmem, size = 0x400, scoped, tag = 'input window, operand 6, single buffered']
    #allocation15 [shape = 'u8[131072]{0}', space=vmem, size = 0x20000, scoped, tag = 'output window, operand 0']
    #allocation16 [shape = 'u8[32768]{0}', space=vmem, size = 0x8000, scoped, tag = 'output window, operand 1']
    #allocation17 [shape = 's32[2]{0}', space=sflag, size = 0x8, scoped, tag = 'scoped memory for downsample_forward.1']
    %14 = vsyncpa [#allocation4], 0
    %s15 = scalar_lea.sflag [#allocation4], 1
    %16 = vsyncpa %s15, 0
    %17 = vsyncpa [#allocation7], 0
    %18 = vsyncpa [#allocation10], 0
    %19 = vsyncpa [#allocation13], 0
    %20 = vsyncpa [#allocation5], 0
    %s21 = scalar_lea.sflag [#allocation5], 1
    %22 = vsyncpa %s21, 0
    %23 = vsyncpa [#allocation17], 0
    %s24 = scalar_lea.sflag [#allocation17], 1
    %25 = vsyncpa %s24, 0
    loop: start=0, step=1, limit=6
    $region2: #{downsample_forward.1} parent=1 // loop_pre_header
      _
    $region3: #{downsample_forward.1} parent=1 // loop_header
      %s27 = sphi 0, %s31
      %p28 = scmp.ge.s32.totalorder %s27, 6
      %s34 = sphi 0, %s46
      %s35 = sphi 0, %s42
      %s36 = sphi 0, %s34
      %s37 = sphi 0, %s35
      %s38 = sphi 0, %s36
      %s39 = sphi 0, %s37
      %s49 = sphi 0, %s51
      %s52 = sphi 0, %s49
      %s53 = sphi 0, %s52
      %s69 = sphi 0, %s53
      %s73 = sphi 0, %s73
      %s75 = sphi 0, %s73
      %s76 = sphi 0, %s75
      %s90 = sphi 0, %s76
      %s94 = sphi 0, %s94
      %s96 = sphi 0, %s94
      %s97 = sphi 0, %s96
      %s111 = sphi 0, %s97
      %s115 = sphi 0, %s115
      %s117 = sphi 0, %s115
      %s118 = sphi 0, %s117
      %s132 = sphi 0, %s118
      %s136 = sphi 0, %s136
      %s138 = sphi 0, %s136
      %s139 = sphi 0, %s138
      %s153 = sphi 0, %s139
      %s157 = sphi 0, %s157
      %s159 = sphi 0, %s157
      %s160 = sphi 0, %s159
      %s174 = sphi 0, %s160
      %s178 = sphi 0, %s178
      %s180 = sphi 0, %s178
      %s181 = sphi 0, %s180
      %s195 = sphi 0, %s181
      %s203 = sphi 0, %s205
      %s206 = sphi 0, %s203
      %s207 = sphi 0, %s206
      %s223 = sphi 0, %s207
      %s231 = sphi 0, %s233
      %s234 = sphi 0, %s231
      %s235 = sphi 0, %s234
      %s251 = sphi 0, %s235
    $region4: #{downsample_forward.1} parent=1 // loop_header_branch
      %30 = sbr.rel (%p28) target = $region8
    $region5: #{downsample_forward.1} parent=1 // loop_body
      %s32 = ssub.s32 %s27, 1
      %s33 = ssub.s32 %s27, 2
      %s40 = sadd.s32 1, %s35
      %p41 = scmp.ge.s32.totalorder %s40, 2
      %s42 = scalar_select %p41, 0, %s40
      %s43 = sadd.s32 1, %s34
      %s44 = scalar_select %p41, %s43, %s34
      %p45 = scmp.ge.s32.totalorder %s44, 2
      %s46 = scalar_select %p45, 0, %s44
      %s47 = ssub.s32 %s34, %s46
      %p48 = scmp.eq.s32.totalorder %s47, 0
      %s50 = sadd.s32 %s49, 1
      %s51 = scalar_select %p48, %s49, %s50
      %p54 = pneg %p48
      %p55 = scmp.eq.s32.totalorder %s27, 3
      %p56 = por %p54, %p55
      %p57 = scmp.ne.s32.totalorder %s49, %s52
      %p58 = scmp.eq.s32.totalorder %s27, 0
      %p59 = por %p57, %p58
      %p60 = scmp.ne.s32.totalorder %s49, %s52
      %p61 = scmp.eq.s32.totalorder %s32, 3
      %p62 = por %p60, %p61
      %p63 = scmp.ne.s32.totalorder %s52, %s53
      %p64 = scmp.eq.s32.totalorder %s32, 0
      %p65 = por %p63, %p64
      %p66 = scmp.ne.s32.totalorder %s52, %s53
      %p67 = scmp.eq.s32.totalorder %s33, 3
      %p68 = por %p66, %p67
      %p70 = scmp.ne.s32.totalorder %s53, %s69
      %p71 = scmp.eq.s32.totalorder %s33, 0
      %p72 = por %p70, %p71
      %s74 = sadd.s32 %s73, 1
      %p77 = scmp.eq.s32.totalorder %s27, 3
      %p78 = scmp.ne.s32.totalorder %s73, %s75
      %p79 = scmp.eq.s32.totalorder %s27, 0
      %p80 = por %p78, %p79
      %p81 = scmp.ne.s32.totalorder %s73, %s75
      %p82 = scmp.eq.s32.totalorder %s32, 3
      %p83 = por %p81, %p82
      %p84 = scmp.ne.s32.totalorder %s75, %s76
      %p85 = scmp.eq.s32.totalorder %s32, 0
      %p86 = por %p84, %p85
      %p87 = scmp.ne.s32.totalorder %s75, %s76
      %p88 = scmp.eq.s32.totalorder %s33, 3
      %p89 = por %p87, %p88
      %p91 = scmp.ne.s32.totalorder %s76, %s90
      %p92 = scmp.eq.s32.totalorder %s33, 0
      %p93 = por %p91, %p92
      %s95 = sadd.s32 %s94, 1
      %p98 = scmp.eq.s32.totalorder %s27, 3
      %p99 = scmp.ne.s32.totalorder %s94, %s96
      %p100 = scmp.eq.s32.totalorder %s27, 0
      %p101 = por %p99, %p100
      %p102 = scmp.ne.s32.totalorder %s94, %s96
      %p103 = scmp.eq.s32.totalorder %s32, 3
      %p104 = por %p102, %p103
      %p105 = scmp.ne.s32.totalorder %s96, %s97
      %p106 = scmp.eq.s32.totalorder %s32, 0
      %p107 = por %p105, %p106
      %p108 = scmp.ne.s32.totalorder %s96, %s97
      %p109 = scmp.eq.s32.totalorder %s33, 3
      %p110 = por %p108, %p109
      %p112 = scmp.ne.s32.totalorder %s97, %s111
      %p113 = scmp.eq.s32.totalorder %s33, 0
      %p114 = por %p112, %p113
      %s116 = sadd.s32 %s115, 1
      %p119 = scmp.eq.s32.totalorder %s27, 3
      %p120 = scmp.ne.s32.totalorder %s115, %s117
      %p121 = scmp.eq.s32.totalorder %s27, 0
      %p122 = por %p120, %p121
      %p123 = scmp.ne.s32.totalorder %s115, %s117
      %p124 = scmp.eq.s32.totalorder %s32, 3
      %p125 = por %p123, %p124
      %p126 = scmp.ne.s32.totalorder %s117, %s118
      %p127 = scmp.eq.s32.totalorder %s32, 0
      %p128 = por %p126, %p127
      %p129 = scmp.ne.s32.totalorder %s117, %s118
      %p130 = scmp.eq.s32.totalorder %s33, 3
      %p131 = por %p129, %p130
      %p133 = scmp.ne.s32.totalorder %s118, %s132
      %p134 = scmp.eq.s32.totalorder %s33, 0
      %p135 = por %p133, %p134
      %s137 = sadd.s32 %s136, 1
      %p140 = scmp.eq.s32.totalorder %s27, 3
      %p141 = scmp.ne.s32.totalorder %s136, %s138
      %p142 = scmp.eq.s32.totalorder %s27, 0
      %p143 = por %p141, %p142
      %p144 = scmp.ne.s32.totalorder %s136, %s138
      %p145 = scmp.eq.s32.totalorder %s32, 3
      %p146 = por %p144, %p145
      %p147 = scmp.ne.s32.totalorder %s138, %s139
      %p148 = scmp.eq.s32.totalorder %s32, 0
      %p149 = por %p147, %p148
      %p150 = scmp.ne.s32.totalorder %s138, %s139
      %p151 = scmp.eq.s32.totalorder %s33, 3
      %p152 = por %p150, %p151
      %p154 = scmp.ne.s32.totalorder %s139, %s153
      %p155 = scmp.eq.s32.totalorder %s33, 0
      %p156 = por %p154, %p155
      %s158 = sadd.s32 %s157, 1
      %p161 = scmp.eq.s32.totalorder %s27, 3
      %p162 = scmp.ne.s32.totalorder %s157, %s159
      %p163 = scmp.eq.s32.totalorder %s27, 0
      %p164 = por %p162, %p163
      %p165 = scmp.ne.s32.totalorder %s157, %s159
      %p166 = scmp.eq.s32.totalorder %s32, 3
      %p167 = por %p165, %p166
      %p168 = scmp.ne.s32.totalorder %s159, %s160
      %p169 = scmp.eq.s32.totalorder %s32, 0
      %p170 = por %p168, %p169
      %p171 = scmp.ne.s32.totalorder %s159, %s160
      %p172 = scmp.eq.s32.totalorder %s33, 3
      %p173 = por %p171, %p172
      %p175 = scmp.ne.s32.totalorder %s160, %s174
      %p176 = scmp.eq.s32.totalorder %s33, 0
      %p177 = por %p175, %p176
      %s179 = sadd.s32 %s178, 1
      %p182 = scmp.eq.s32.totalorder %s27, 3
      %p183 = scmp.ne.s32.totalorder %s178, %s180
      %p184 = scmp.eq.s32.totalorder %s27, 0
      %p185 = por %p183, %p184
      %p186 = scmp.ne.s32.totalorder %s178, %s180
      %p187 = scmp.eq.s32.totalorder %s32, 3
      %p188 = por %p186, %p187
      %p189 = scmp.ne.s32.totalorder %s180, %s181
      %p190 = scmp.eq.s32.totalorder %s32, 0
      %p191 = por %p189, %p190
      %p192 = scmp.ne.s32.totalorder %s180, %s181
      %p193 = scmp.eq.s32.totalorder %s33, 3
      %p194 = por %p192, %p193
      %p196 = scmp.ne.s32.totalorder %s181, %s195
      %p197 = scmp.eq.s32.totalorder %s33, 0
      %p198 = por %p196, %p197
      %s199 = ssub.s32 %s34, %s46
      %s200 = ssub.s32 %s35, %s42
      %s201 = sor.u32 %s199, %s200
      %p202 = scmp.eq.s32.totalorder %s201, 0
      %s204 = sadd.s32 %s203, 1
      %s205 = scalar_select %p202, %s203, %s204
      %p208 = pneg %p202
      %p209 = scmp.eq.s32.totalorder %s27, 3
      %p210 = por %p208, %p209
      %p211 = scmp.ne.s32.totalorder %s203, %s206
      %p212 = scmp.eq.s32.totalorder %s27, 0
      %p213 = por %p211, %p212
      %p214 = scmp.ne.s32.totalorder %s203, %s206
      %p215 = scmp.eq.s32.totalorder %s32, 3
      %p216 = por %p214, %p215
      %p217 = scmp.ne.s32.totalorder %s206, %s207
      %p218 = scmp.eq.s32.totalorder %s32, 0
      %p219 = por %p217, %p218
      %p220 = scmp.ne.s32.totalorder %s206, %s207
      %p221 = scmp.eq.s32.totalorder %s33, 3
      %p222 = por %p220, %p221
      %p224 = scmp.ne.s32.totalorder %s207, %s223
      %p225 = scmp.eq.s32.totalorder %s33, 0
      %p226 = por %p224, %p225
      %s227 = ssub.s32 %s34, %s46
      %s228 = ssub.s32 %s35, %s42
      %s229 = sor.u32 %s227, %s228
      %p230 = scmp.eq.s32.totalorder %s229, 0
      %s232 = sadd.s32 %s231, 1
      %s233 = scalar_select %p230, %s231, %s232
      %p236 = pneg %p230
      %p237 = scmp.eq.s32.totalorder %s27, 3
      %p238 = por %p236, %p237
      %p239 = scmp.ne.s32.totalorder %s231, %s234
      %p240 = scmp.eq.s32.totalorder %s27, 0
      %p241 = por %p239, %p240
      %p242 = scmp.ne.s32.totalorder %s231, %s234
      %p243 = scmp.eq.s32.totalorder %s32, 3
      %p244 = por %p242, %p243
      %p245 = scmp.ne.s32.totalorder %s234, %s235
      %p246 = scmp.eq.s32.totalorder %s32, 0
      %p247 = por %p245, %p246
      %p248 = scmp.ne.s32.totalorder %s234, %s235
      %p249 = scmp.eq.s32.totalorder %s33, 3
      %p250 = por %p248, %p249
      %p252 = scmp.ne.s32.totalorder %s235, %s251
      %p253 = scmp.eq.s32.totalorder %s33, 0
      %p254 = por %p252, %p253
      %p255 = scmp.le.s32.totalorder 1, %s27
      %p256 = scmp.lt.s32.totalorder %s27, 5
      %p257 = pnand %p255, %p256
      %p258 = pneg %p257
      // Predicated region
      $region9: #{downsample_forward.1} parent=5 // pred_check
        _
      $region10: #{downsample_forward.1} parent=5 // pred_check_branch
        %260 = sbr.rel (%p257) target = $region12
      $region11: #{downsample_forward.1} parent=5 // pred_region
        %s261 = ssub.s32 %s27, 1
        // Predicated region
        $region13: #{downsample_forward.1} parent=11 // pred_check
          %p262 = pneg %p86
        $region14: #{downsample_forward.1} parent=11 // pred_check_branch
          %264 = sbr.rel (%p262) target = $region16
        $region15: #{downsample_forward.1} parent=11 // pred_region
          %s266 = ssub.s32 18432, 18432
          %267 = vsyncadd [#allocation7], %s266
          %s268 = sshll.u32 [#allocation6], 4
          %s269 = int_to_ptr.vmem [resolvable:$true] %s268
          %274 = dma.hbm_to_vmem [thread:$0]  %s1, 18432, %s269, [#allocation7], 128, 128, 8
        $region16: #{downsample_forward.1} parent=11 // pred_fallthru
          _
        // Predicated region
        $region17: #{downsample_forward.1} parent=11 // pred_check
          %p275 = pneg %p107
        $region18: #{downsample_forward.1} parent=11 // pred_check_branch
          %277 = sbr.rel (%p275) target = $region20
        $region19: #{downsample_forward.1} parent=11 // pred_region
          %s279 = ssub.s32 16, 16
          %280 = vsyncadd [#allocation7], %s279
          %s282 = sshll.u32 [#allocation8], 4
          %s283 = int_to_ptr.vmem [resolvable:$true] %s282
          %285 = dma.hbm_to_vmem [thread:$0]  %s2, 16, %s283, [#allocation7]
        $region20: #{downsample_forward.1} parent=11 // pred_fallthru
          _
        // Predicated region
        $region21: #{downsample_forward.1} parent=11 // pred_check
          %p286 = pneg %p128
        $region22: #{downsample_forward.1} parent=11 // pred_check_branch
          %288 = sbr.rel (%p286) target = $region24
        $region23: #{downsample_forward.1} parent=11 // pred_region
          %s290 = ssub.s32 16, 16
          %291 = vsyncadd [#allocation10], %s290
          %s293 = sshll.u32 [#allocation9], 4
          %s294 = int_to_ptr.vmem [resolvable:$true] %s293
          %296 = dma.hbm_to_vmem [thread:$0]  %s3, 16, %s294, [#allocation10]
        $region24: #{downsample_forward.1} parent=11 // pred_fallthru
          _
        // Predicated region
        $region25: #{downsample_forward.1} parent=11 // pred_check
          %p297 = pneg %p149
        $region26: #{downsample_forward.1} parent=11 // pred_check_branch
          %299 = sbr.rel (%p297) target = $region28
        $region27: #{downsample_forward.1} parent=11 // pred_region
          %s301 = ssub.s32 18432, 18432
          %302 = vsyncadd [#allocation10], %s301
          %s303 = sshll.u32 [#allocation11], 4
          %s304 = int_to_ptr.vmem [resolvable:$true] %s303
          %309 = dma.hbm_to_vmem [thread:$0]  %s4, 18432, %s304, [#allocation10], 128, 128, 8
        $region28: #{downsample_forward.1} parent=11 // pred_fallthru
          _
        // Predicated region
        $region29: #{downsample_forward.1} parent=11 // pred_check
          %p310 = pneg %p170
        $region30: #{downsample_forward.1} parent=11 // pred_check_branch
          %312 = sbr.rel (%p310) target = $region32
        $region31: #{downsample_forward.1} parent=11 // pred_region
          %s314 = ssub.s32 16, 16
          %315 = vsyncadd [#allocation13], %s314
          %s317 = sshll.u32 [#allocation12], 4
          %s318 = int_to_ptr.vmem [resolvable:$true] %s317
          %320 = dma.hbm_to_vmem [thread:$0]  %s5, 16, %s318, [#allocation13]
        $region32: #{downsample_forward.1} parent=11 // pred_fallthru
          _
        // Predicated region
        $region33: #{downsample_forward.1} parent=11 // pred_check
          %p321 = pneg %p191
        $region34: #{downsample_forward.1} parent=11 // pred_check_branch
          %323 = sbr.rel (%p321) target = $region36
        $region35: #{downsample_forward.1} parent=11 // pred_region
          %s325 = ssub.s32 16, 16
          %326 = vsyncadd [#allocation13], %s325
          %s328 = sshll.u32 [#allocation14], 4
          %s329 = int_to_ptr.vmem [resolvable:$true] %s328
          %331 = dma.hbm_to_vmem [thread:$0]  %s6, 16, %s329, [#allocation13]
        $region36: #{downsample_forward.1} parent=11 // pred_fallthru
          _
      $region12: #{downsample_forward.1} parent=5 // pred_fallthru
        _
      %p332 = scmp.lt.s32.totalorder %s27, 4
      // Predicated region
      $region37: #{downsample_forward.1} parent=5 // pred_check
        %p333 = pneg %p332
      $region38: #{downsample_forward.1} parent=5 // pred_check_branch
        %335 = sbr.rel (%p333) target = $region40
      $region39: #{downsample_forward.1} parent=5 // pred_region
        // Predicated region
        $region41: #{downsample_forward.1} parent=39 // pred_check
          %p336 = pneg %p59
        $region42: #{downsample_forward.1} parent=39 // pred_check_branch
          %338 = sbr.rel (%p336) target = $region44
        $region43: #{downsample_forward.1} parent=39 // pred_region
          %s339 = sand.u32 %s49, 1
          %s340 = scalar_lea.sflag [#allocation4], %s339
          %s341 = sand.u32 %s49, 1
          %s342 = smul.addr %s341, 480
          %s343 = scalar_lea.vmem [#allocation3], %s342
          %s345 = ssub.s32 7680, 7680
          %346 = vsyncadd %s340, %s345
          %s347 = smul.addr %s34, 60
          %s348 = smul.addr %s347, 128
          %s349 = scalar_lea.hbm %s0, %s348
          %s350 = sshll.u32 %s343, 4
          %s351 = int_to_ptr.vmem [resolvable:$true] %s350
          %356 = dma.hbm_to_vmem [thread:$0]  %s349, 7680, %s351, %s340, 128, 128, 8
        $region44: #{downsample_forward.1} parent=39 // pred_fallthru
          _
      $region40: #{downsample_forward.1} parent=5 // pred_fallthru
        _
      %p357 = scmp.le.s32.totalorder 1, %s27
      %p358 = scmp.lt.s32.totalorder %s27, 5
      %p359 = pnand %p357, %p358
      %p360 = pneg %p359
      // Predicated region
      $region45: #{downsample_forward.1} parent=5 // pred_check
        _
      $region46: #{downsample_forward.1} parent=5 // pred_check_branch
        %362 = sbr.rel (%p359) target = $region48
      $region47: #{downsample_forward.1} parent=5 // pred_region
        %s363 = ssub.s32 %s27, 1
        %s364 = sand.u32 %s52, 1
        %s365 = scalar_lea.sflag [#allocation4], %s364
        %s366 = sand.u32 %s52, 1
        %s367 = smul.addr %s366, 480
        %s368 = scalar_lea.vmem [#allocation3], %s367
        // Predicated region
        $region49: #{downsample_forward.1} parent=47 // pred_check
          %p369 = pneg %p65
        $region50: #{downsample_forward.1} parent=47 // pred_check_branch
          %371 = sbr.rel (%p369) target = $region52
        $region51: #{downsample_forward.1} parent=47 // pred_region
          %372 = dma.done %s365, 7680
        $region52: #{downsample_forward.1} parent=47 // pred_fallthru
          _
        // Predicated region
        $region53: #{downsample_forward.1} parent=47 // pred_check
          %p373 = pneg %p86
        $region54: #{downsample_forward.1} parent=47 // pred_check_branch
          %375 = sbr.rel (%p373) target = $region56
        $region55: #{downsample_forward.1} parent=47 // pred_region
          %376 = dma.done [#allocation7], 18432
        $region56: #{downsample_forward.1} parent=47 // pred_fallthru
          _
        // Predicated region
        $region57: #{downsample_forward.1} parent=47 // pred_check
          %p377 = pneg %p107
        $region58: #{downsample_forward.1} parent=47 // pred_check_branch
          %379 = sbr.rel (%p377) target = $region60
        $region59: #{downsample_forward.1} parent=47 // pred_region
          %380 = dma.done [#allocation7], 16
        $region60: #{downsample_forward.1} parent=47 // pred_fallthru
          _
        // Predicated region
        $region61: #{downsample_forward.1} parent=47 // pred_check
          %p381 = pneg %p128
        $region62: #{downsample_forward.1} parent=47 // pred_check_branch
          %383 = sbr.rel (%p381) target = $region64
        $region63: #{downsample_forward.1} parent=47 // pred_region
          %384 = dma.done [#allocation10], 16
        $region64: #{downsample_forward.1} parent=47 // pred_fallthru
          _
        // Predicated region
        $region65: #{downsample_forward.1} parent=47 // pred_check
          %p385 = pneg %p149
        $region66: #{downsample_forward.1} parent=47 // pred_check_branch
          %387 = sbr.rel (%p385) target = $region68
        $region67: #{downsample_forward.1} parent=47 // pred_region
          %388 = dma.done [#allocation10], 18432
        $region68: #{downsample_forward.1} parent=47 // pred_fallthru
          _
        // Predicated region
        $region69: #{downsample_forward.1} parent=47 // pred_check
          %p389 = pneg %p170
        $region70: #{downsample_forward.1} parent=47 // pred_check_branch
          %391 = sbr.rel (%p389) target = $region72
        $region71: #{downsample_forward.1} parent=47 // pred_region
          %392 = dma.done [#allocation13], 16
        $region72: #{downsample_forward.1} parent=47 // pred_fallthru
          _
        // Predicated region
        $region73: #{downsample_forward.1} parent=47 // pred_check
          %p393 = pneg %p191
        $region74: #{downsample_forward.1} parent=47 // pred_check_branch
          %395 = sbr.rel (%p393) target = $region76
        $region75: #{downsample_forward.1} parent=47 // pred_region
          %396 = dma.done [#allocation13], 16
        $region76: #{downsample_forward.1} parent=47 // pred_fallthru
          _
        %s397 = sand.u32 %s52, 1
        %s398 = scalar_lea.sflag [#allocation4], %s397
        %s399 = sand.u32 %s52, 1
        %s400 = smul.addr %s399, 480
        %s401 = scalar_lea.vmem [#allocation3], %s400
        %p402 = pneg %p65
        %p403 = pneg %p62
        %p404 = pneg %p86
        %p405 = pneg %p83
        %p406 = pneg %p107
        %p407 = pneg %p104
        %p408 = pneg %p128
        %p409 = pneg %p125
        %p410 = pneg %p149
        %p411 = pneg %p146
        %p412 = pneg %p170
        %p413 = pneg %p167
        %p414 = pneg %p191
        %p415 = pneg %p188
        %p416 = pneg %p219
        %p417 = pneg %p216
        %s418 = sand.u32 %s206, 1
        %s419 = scalar_lea.sflag [#allocation5], %s418
        %s420 = sand.u32 %s206, 1
        %s421 = smul.addr %s420, 128
        %s422 = scalar_lea.vmem [#allocation15], %s421
        %p423 = pneg %p247
        %p424 = pneg %p244
        %s425 = sand.u32 %s234, 1
        %s426 = scalar_lea.sflag [#allocation17], %s425
        %s427 = sand.u32 %s234, 1
        %s428 = smul.addr %s427, 32
        %s429 = scalar_lea.vmem [#allocation16], %s428
        %s430 = smul.u32 8, %s37
        %s431 = smul.u32 4, %s37
        %s432 = smul.u32 %s37, 8
        %s433 = smul.u32 %s432, 24
        %s434 = scalar_lea.vmem %s368, %s433 [#allocation3]
        %v435 = vld [vmem:[%s434 + $0x1] sm:$0xff]
        %v436 = vld [vmem:[%s434 + $0x9] sm:$0xff]
        %v437 = vld [vmem:[%s434 + $0x19] sm:$0xff]
        %v438 = vld [vmem:[%s434 + $0x21] sm:$0xff]
        %v439 = vld [vmem:[%s434 + $0x31] sm:$0xff]
        %v440 = vld [vmem:[%s434 + $0x39] sm:$0xff]
        %v441 = vld [vmem:[%s434 + $0x49] sm:$0xff]
        %v442 = vld [vmem:[%s434 + $0x51] sm:$0xff]
        %v443 = vld [vmem:[%s434 + $0x61] sm:$0xff]
        %v444 = vld [vmem:[%s434 + $0x69] sm:$0xff]
        %v445 = vld [vmem:[%s434 + $0x79] sm:$0xff]
        %v446 = vld [vmem:[%s434 + $0x81] sm:$0xff]
        %v447 = vld [vmem:[%s434 + $0x91] sm:$0xff]
        %v448 = vld [vmem:[%s434 + $0x99] sm:$0xff]
        %v449 = vld [vmem:[%s434 + $0xa9] sm:$0xff]
        %v450 = vld [vmem:[%s434 + $0xb1] sm:$0xff]
        %v451 = vld [vmem:[%s434 + $0xc1] sm:$0xff]
        %v452 = vld [vmem:[%s434 + $0xc9] sm:$0xff]
        %v453 = vld [vmem:[%s434 + $0xd9] sm:$0xff]
        %v454 = vld [vmem:[%s434 + $0xe1] sm:$0xff]
        %v455 = vld [vmem:[#allocation6] sm:$0xff]
        %v456 = vld [vmem:[#allocation6 + $0x8] sm:$0xff]
        %v457 = vld [vmem:[#allocation6 + $0x10] sm:$0xff]
        %v458 = vld [vmem:[#allocation6 + $0x18] sm:$0xff]
        %v459 = vld [vmem:[#allocation6 + $0x20] sm:$0xff]
        %v460 = vld [vmem:[#allocation6 + $0x28] sm:$0xff]
        %v461 = vld [vmem:[#allocation6 + $0x30] sm:$0xff]
        %v462 = vld [vmem:[#allocation6 + $0x38] sm:$0xff]
        %v463 = vld [vmem:[#allocation6 + $0x40] sm:$0xff]
        %v464 = vld [vmem:[#allocation6 + $0x48] sm:$0xff]
        %v465 = vld [vmem:[#allocation6 + $0x50] sm:$0xff]
        %v466 = vld [vmem:[#allocation6 + $0x58] sm:$0xff]
        %v467 = vld [vmem:[#allocation6 + $0x60] sm:$0xff]
        %v468 = vld [vmem:[#allocation6 + $0x68] sm:$0xff]
        %v469 = vld [vmem:[#allocation6 + $0x70] sm:$0xff]
        %v470 = vld [vmem:[#allocation6 + $0x78] sm:$0xff]
        %v471 = vld [vmem:[%s434 + $0x2] sm:$0xff]
        %v472 = vld [vmem:[%s434 + $0xa] sm:$0xff]
        %v473 = vld [vmem:[%s434 + $0x1a] sm:$0xff]
        %v474 = vld [vmem:[%s434 + $0x22] sm:$0xff]
        %v475 = vld [vmem:[%s434 + $0x32] sm:$0xff]
        %v476 = vld [vmem:[%s434 + $0x3a] sm:$0xff]
        %v477 = vld [vmem:[%s434 + $0x4a] sm:$0xff]
        %v478 = vld [vmem:[%s434 + $0x52] sm:$0xff]
        %v479 = vld [vmem:[%s434 + $0x62] sm:$0xff]
        %v480 = vld [vmem:[%s434 + $0x6a] sm:$0xff]
        %v481 = vld [vmem:[%s434 + $0x7a] sm:$0xff]
        %v482 = vld [vmem:[%s434 + $0x82] sm:$0xff]
        %v483 = vld [vmem:[%s434 + $0x92] sm:$0xff]
        %v484 = vld [vmem:[%s434 + $0x9a] sm:$0xff]
        %v485 = vld [vmem:[%s434 + $0xaa] sm:$0xff]
        %v486 = vld [vmem:[%s434 + $0xb2] sm:$0xff]
        %v487 = vld [vmem:[%s434 + $0xc2] sm:$0xff]
        %v488 = vld [vmem:[%s434 + $0xca] sm:$0xff]
        %v489 = vld [vmem:[%s434 + $0xda] sm:$0xff]
        %v490 = vld [vmem:[%s434 + $0xe2] sm:$0xff]
        %s491 = scalar_lea.vmem [#allocation6], 128
        %v492 = vld [vmem:[%s491] sm:$0xff]
        %v493 = vld [vmem:[%s491 + $0x8] sm:$0xff]
        %v494 = vld [vmem:[%s491 + $0x10] sm:$0xff]
        %v495 = vld [vmem:[%s491 + $0x18] sm:$0xff]
        %v496 = vld [vmem:[%s491 + $0x20] sm:$0xff]
        %v497 = vld [vmem:[%s491 + $0x28] sm:$0xff]
        %v498 = vld [vmem:[%s491 + $0x30] sm:$0xff]
        %v499 = vld [vmem:[%s491 + $0x38] sm:$0xff]
        %v500 = vld [vmem:[%s491 + $0x40] sm:$0xff]
        %v501 = vld [vmem:[%s491 + $0x48] sm:$0xff]
        %v502 = vld [vmem:[%s491 + $0x50] sm:$0xff]
        %v503 = vld [vmem:[%s491 + $0x58] sm:$0xff]
        %v504 = vld [vmem:[%s491 + $0x60] sm:$0xff]
        %v505 = vld [vmem:[%s491 + $0x68] sm:$0xff]
        %v506 = vld [vmem:[%s491 + $0x70] sm:$0xff]
        %v507 = vld [vmem:[%s491 + $0x78] sm:$0xff]
        %508 = vmatprep.subr.mxu0 0.0
        %509 = vmatpush1.msra.mxu0 %v492
        %510 = vmatprep.subr.mxu0 0.0
        %511 = vmatpush1.msra.mxu0 %v493
        %512 = vmatprep.subr.mxu0 0.0
        %513 = vmatpush1.msra.mxu0 %v494
        %514 = vmatprep.subr.mxu0 0.0
        %515 = vmatpush1.msra.mxu0 %v495
        %516 = vmatprep.subr.mxu0 0.0
        %517 = vmatpush1.msra.mxu0 %v496
        %518 = vmatprep.subr.mxu0 0.0
        %519 = vmatpush1.msra.mxu0 %v497
        %520 = vmatprep.subr.mxu0 0.0
        %521 = vmatpush1.msra.mxu0 %v498
        %522 = vmatprep.subr.mxu0 0.0
        %523 = vmatpush1.msra.mxu0 %v499
        %524 = vmatprep.subr.mxu0 0.0
        %525 = vmatpush1.msra.mxu0 %v500
        %526 = vmatprep.subr.mxu0 0.0
        %527 = vmatpush1.msra.mxu0 %v501
        %528 = vmatprep.subr.mxu0 0.0
        %529 = vmatpush1.msra.mxu0 %v502
        %530 = vmatprep.subr.mxu0 0.0
        %531 = vmatpush1.msra.mxu0 %v503
        %532 = vmatprep.subr.mxu0 0.0
        %533 = vmatpush1.msra.mxu0 %v504
        %534 = vmatprep.subr.mxu0 0.0
        %535 = vmatpush1.msra.mxu0 %v505
        %536 = vmatprep.subr.mxu0 0.0
        %537 = vmatpush1.msra.mxu0 %v506
        %538 = vmatprep.subr.mxu0 0.0
        %539 = vmatpush1.msra.mxu0 %v507
        %540 = vmatprep.subr.mxu0 0.0
        %541 = vmatpush1.msra.mxu0 0.0
        %542 = vmatprep.subr.mxu0 0.0
        %543 = vmatpush1.msra.mxu0 0.0
        %544 = vmatprep.subr.mxu0 0.0
        %545 = vmatpush1.msra.mxu0 0.0
        %546 = vmatprep.subr.mxu0 0.0
        %547 = vmatpush1.msra.mxu0 0.0
        %548 = vmatprep.subr.mxu0 0.0
        %549 = vmatpush1.msra.mxu0 0.0
        %550 = vmatprep.subr.mxu0 0.0
        %551 = vmatpush1.msra.mxu0 0.0
        %552 = vmatprep.subr.mxu0 0.0
        %553 = vmatpush1.msra.mxu0 0.0
        %554 = vmatprep.subr.mxu0 0.0
        %555 = vmatpush1.msra.mxu0 0.0
        %556 = vmatprep.subr.mxu0 0.0
        %557 = vmatpush1.msra.mxu0 0.0
        %558 = vmatprep.subr.mxu0 0.0
        %559 = vmatpush1.msra.mxu0 0.0
        %560 = vmatprep.subr.mxu0 0.0
        %561 = vmatpush1.msra.mxu0 0.0
        %562 = vmatprep.subr.mxu0 0.0
        %563 = vmatpush1.msra.mxu0 0.0
        %564 = vmatprep.subr.mxu0 0.0
        %565 = vmatpush1.msra.mxu0 0.0
        %566 = vmatprep.subr.mxu0 0.0
        %567 = vmatpush1.msra.mxu0 0.0
        %568 = vmatprep.subr.mxu0 0.0
        %569 = vmatpush1.msra.mxu0 0.0
        %570 = vmatprep.subr.mxu0 0.0
        %571 = vmatpush1.msra.mxu0 0.0
        %572 = vmatprep.mubr.f32.mxu0 0.0
        %573 = vmatmul.mubr.f32.gmra.mrb[0].mxu0 %v471
        %v574 = vpop.f32.mrb[0].mxu0
        %v575 = vadd.f32 0.0, %v574
        %v576 = vpop.f32.mrb[0].mxu0
        %577 = vmatprep.mubr.f32.mxu0 0.0
        %578 = vmatmul.mubr.f32.gmra.mrb[0].mxu0 %v472
        %v579 = vpop.f32.mrb[0].mxu0
        %v580 = vadd.f32 0.0, %v579
        %v581 = vpop.f32.mrb[0].mxu0
        %582 = vmatprep.mubr.f32.mxu0 0.0
        %583 = vmatmul.mubr.f32.gmra.mrb[0].mxu0 %v473
        %v584 = vpop.f32.mrb[0].mxu0
        %v585 = vadd.f32 0.0, %v584
        %v586 = vpop.f32.mrb[0].mxu0
        %587 = vmatprep.mubr.f32.mxu0 0.0
        %588 = vmatmul.mubr.f32.gmra.mrb[0].mxu0 %v474
        %v589 = vpop.f32.mrb[0].mxu0
        %v590 = vadd.f32 0.0, %v589
        %v591 = vpop.f32.mrb[0].mxu0
        %592 = vmatprep.mubr.f32.mxu0 0.0
        %593 = vmatmul.mubr.f32.gmra.mrb[0].mxu0 %v475
        %v594 = vpop.f32.mrb[0].mxu0
        %v595 = vadd.f32 0.0, %v594
        %v596 = vpop.f32.mrb[0].mxu0
        %597 = vmatprep.mubr.f32.mxu0 0.0
        %598 = vmatmul.mubr.f32.gmra.mrb[0].mxu0 %v476
        %v599 = vpop.f32.mrb[0].mxu0
        %v600 = vadd.f32 0.0, %v599
        %v601 = vpop.f32.mrb[0].mxu0
        %602 = vmatprep.mubr.f32.mxu0 0.0
        %603 = vmatmul.mubr.f32.gmra.mrb[0].mxu0 %v477
        %v604 = vpop.f32.mrb[0].mxu0
        %v605 = vadd.f32 0.0, %v604
        %v606 = vpop.f32.mrb[0].mxu0
        %607 = vmatprep.mubr.f32.mxu0 0.0
        %608 = vmatmul.mubr.f32.gmra.mrb[0].mxu0 %v478
        %v609 = vpop.f32.mrb[0].mxu0
        %v610 = vadd.f32 0.0, %v609
        %v611 = vpop.f32.mrb[0].mxu0
        %612 = vmatprep.mubr.f32.mxu0 0.0
        %613 = vmatmul.mubr.f32.gmra.mrb[0].mxu0 %v479
        %v614 = vpop.f32.mrb[0].mxu0
        %v615 = vadd.f32 0.0, %v614
        %v616 = vpop.f32.mrb[0].mxu0
        %617 = vmatprep.mubr.f32.mxu0 0.0
        %618 = vmatmul.mubr.f32.gmra.mrb[0].mxu0 %v480
        %v619 = vpop.f32.mrb[0].mxu0
        %v620 = vadd.f32 0.0, %v619
        %v621 = vpop.f32.mrb[0].mxu0
        %622 = vmatprep.mubr.f32.mxu0 0.0
        %623 = vmatmul.mubr.f32.gmra.mrb[0].mxu0 %v481
        %v624 = vpop.f32.mrb[0].mxu0
        %v625 = vadd.f32 0.0, %v624
        %v626 = vpop.f32.mrb[0].mxu0
        %627 = vmatprep.mubr.f32.mxu0 0.0
        %628 = vmatmul.mubr.f32.gmra.mrb[0].mxu0 %v482
        %v629 = vpop.f32.mrb[0].mxu0
        %v630 = vadd.f32 0.0, %v629
        %v631 = vpop.f32.mrb[0].mxu0
        %632 = vmatprep.mubr.f32.mxu0 0.0
        %633 = vmatmul.mubr.f32.gmra.mrb[0].mxu0 %v483
        %v634 = vpop.f32.mrb[0].mxu0
        %v635 = vadd.f32 0.0, %v634
        %v636 = vpop.f32.mrb[0].mxu0
        %637 = vmatprep.mubr.f32.mxu0 0.0
        %638 = vmatmul.mubr.f32.gmra.mrb[0].mxu0 %v484
        %v639 = vpop.f32.mrb[0].mxu0
        %v640 = vadd.f32 0.0, %v639
        %v641 = vpop.f32.mrb[0].mxu0
        %642 = vmatprep.mubr.f32.mxu0 0.0
        %643 = vmatmul.mubr.f32.gmra.mrb[0].mxu0 %v485
        %v644 = vpop.f32.mrb[0].mxu0
        %v645 = vadd.f32 0.0, %v644
        %v646 = vpop.f32.mrb[0].mxu0
        %647 = vmatprep.mubr.f32.mxu0 0.0
        %648 = vmatmul.mubr.f32.gmra.mrb[0].mxu0 %v486
        %v649 = vpop.f32.mrb[0].mxu0
        %v650 = vadd.f32 0.0, %v649
        %v651 = vpop.f32.mrb[0].mxu0
        %652 = vmatprep.mubr.f32.mxu0 0.0
        %653 = vmatmul.mubr.f32.gmra.mrb[0].mxu0 %v487
        %v654 = vpop.f32.mrb[0].mxu0
        %v655 = vadd.f32 0.0, %v654
        %v656 = vpop.f32.mrb[0].mxu0
        %657 = vmatprep.mubr.f32.mxu0 0.0
        %658 = vmatmul.mubr.f32.gmra.mrb[0].mxu0 %v488
        %v659 = vpop.f32.mrb[0].mxu0
        %v660 = vadd.f32 0.0, %v659
        %v661 = vpop.f32.mrb[0].mxu0
        %662 = vmatprep.mubr.f32.mxu0 0.0
        %663 = vmatmul.mubr.f32.gmra.mrb[0].mxu0 %v489
        %v664 = vpop.f32.mrb[0].mxu0
        %v665 = vadd.f32 0.0, %v664
        %v666 = vpop.f32.mrb[0].mxu0
        %667 = vmatprep.mubr.f32.mxu0 0.0
        %668 = vmatmul.mubr.f32.gmra.mrb[0].mxu0 %v490
        %v669 = vpop.f32.mrb[0].mxu0
        %v670 = vadd.f32 0.0, %v669
        %v671 = vpop.f32.mrb[0].mxu0
        %672 = vdwg.mxu0
        %673 = vmatprep.subr.mxu0 0.0
        %674 = vmatpush1.msra.mxu0 %v455
        %675 = vmatprep.subr.mxu0 0.0
        %676 = vmatpush1.msra.mxu0 %v456
        %677 = vmatprep.subr.mxu0 0.0
        %678 = vmatpush1.msra.mxu0 %v457
        %679 = vmatprep.subr.mxu0 0.0
        %680 = vmatpush1.msra.mxu0 %v458
        %681 = vmatprep.subr.mxu0 0.0
        %682 = vmatpush1.msra.mxu0 %v459
        %683 = vmatprep.subr.mxu0 0.0
        %684 = vmatpush1.msra.mxu0 %v460
        %685 = vmatprep.subr.mxu0 0.0
        %686 = vmatpush1.msra.mxu0 %v461
        %687 = vmatprep.subr.mxu0 0.0
        %688 = vmatpush1.msra.mxu0 %v462
        %689 = vmatprep.subr.mxu0 0.0
        %690 = vmatpush1.msra.mxu0 %v463
        %691 = vmatprep.subr.mxu0 0.0
        %692 = vmatpush1.msra.mxu0 %v464
        %693 = vmatprep.subr.mxu0 0.0
        %694 = vmatpush1.msra.mxu0 %v465
        %695 = vmatprep.subr.mxu0 0.0
        %696 = vmatpush1.msra.mxu0 %v466
        %697 = vmatprep.subr.mxu0 0.0
        %698 = vmatpush1.msra.mxu0 %v467
        %699 = vmatprep.subr.mxu0 0.0
        %700 = vmatpush1.msra.mxu0 %v468
        %701 = vmatprep.subr.mxu0 0.0
        %702 = vmatpush1.msra.mxu0 %v469
        %703 = vmatprep.subr.mxu0 0.0
        %704 = vmatpush1.msra.mxu0 %v470
        %705 = vmatprep.subr.mxu0 0.0
        %706 = vmatpush1.msra.mxu0 0.0
        %707 = vmatprep.subr.mxu0 0.0
        %708 = vmatpush1.msra.mxu0 0.0
        %709 = vmatprep.subr.mxu0 0.0
        %710 = vmatpush1.msra.mxu0 0.0
        %711 = vmatprep.subr.mxu0 0.0
        %712 = vmatpush1.msra.mxu0 0.0
        %713 = vmatprep.subr.mxu0 0.0
        %714 = vmatpush1.msra.mxu0 0.0
        %715 = vmatprep.subr.mxu0 0.0
        %716 = vmatpush1.msra.mxu0 0.0
        %717 = vmatprep.subr.mxu0 0.0
        %718 = vmatpush1.msra.mxu0 0.0
        %719 = vmatprep.subr.mxu0 0.0
        %720 = vmatpush1.msra.mxu0 0.0
        %721 = vmatprep.subr.mxu0 0.0
        %722 = vmatpush1.msra.mxu0 0.0
        %723 = vmatprep.subr.mxu0 0.0
        %724 = vmatpush1.msra.mxu0 0.0
        %725 = vmatprep.subr.mxu0 0.0
        %726 = vmatpush1.msra.mxu0 0.0
        %727 = vmatprep.subr.mxu0 0.0
        %728 = vmatpush1.msra.mxu0 0.0
        %729 = vmatprep.subr.mxu0 0.0
        %730 = vmatpush1.msra.mxu0 0.0
        %731 = vmatprep.subr.mxu0 0.0
        %732 = vmatpush1.msra.mxu0 0.0
        %733 = vmatprep.subr.mxu0 0.0
        %734 = vmatpush1.msra.mxu0 0.0
        %735 = vmatprep.subr.mxu0 0.0
        %736 = vmatpush1.msra.mxu0 0.0
        %737 = vmatprep.mubr.f32.mxu0 0.0
        %738 = vmatmul.mubr.f32.gmra.mrb[0].mxu0 %v435
        %v739 = vpop.f32.mrb[0].mxu0
        %v740 = vadd.f32 %v575, %v739
        %v741 = vpop.f32.mrb[0].mxu0
        %742 = vmatprep.mubr.f32.mxu0 0.0
        %743 = vmatmul.mubr.f32.gmra.mrb[0].mxu0 %v436
        %v744 = vpop.f32.mrb[0].mxu0
        %v745 = vadd.f32 %v580, %v744
        %v746 = vpop.f32.mrb[0].mxu0
        %747 = vmatprep.mubr.f32.mxu0 0.0
        %748 = vmatmul.mubr.f32.gmra.mrb[0].mxu0 %v437
        %v749 = vpop.f32.mrb[0].mxu0
        %v750 = vadd.f32 %v585, %v749
        %v751 = vpop.f32.mrb[0].mxu0
        %752 = vmatprep.mubr.f32.mxu0 0.0
        %753 = vmatmul.mubr.f32.gmra.mrb[0].mxu0 %v438
        %v754 = vpop.f32.mrb[0].mxu0
        %v755 = vadd.f32 %v590, %v754
        %v756 = vpop.f32.mrb[0].mxu0
        %757 = vmatprep.mubr.f32.mxu0 0.0
        %758 = vmatmul.mubr.f32.gmra.mrb[0].mxu0 %v439
        %v759 = vpop.f32.mrb[0].mxu0
        %v760 = vadd.f32 %v595, %v759
        %v761 = vpop.f32.mrb[0].mxu0
        %762 = vmatprep.mubr.f32.mxu0 0.0
        %763 = vmatmul.mubr.f32.gmra.mrb[0].mxu0 %v440
        %v764 = vpop.f32.mrb[0].mxu0
        %v765 = vadd.f32 %v600, %v764
        %v766 = vpop.f32.mrb[0].mxu0
        %767 = vmatprep.mubr.f32.mxu0 0.0
        %768 = vmatmul.mubr.f32.gmra.mrb[0].mxu0 %v441
        %v769 = vpop.f32.mrb[0].mxu0
        %v770 = vadd.f32 %v605, %v769
        %v771 = vpop.f32.mrb[0].mxu0
        %772 = vmatprep.mubr.f32.mxu0 0.0
        %773 = vmatmul.mubr.f32.gmra.mrb[0].mxu0 %v442
        %v774 = vpop.f32.mrb[0].mxu0
        %v775 = vadd.f32 %v610, %v774
        %v776 = vpop.f32.mrb[0].mxu0
        %777 = vmatprep.mubr.f32.mxu0 0.0
        %778 = vmatmul.mubr.f32.gmra.mrb[0].mxu0 %v443
        %v779 = vpop.f32.mrb[0].mxu0
        %v780 = vadd.f32 %v615, %v779
        %v781 = vpop.f32.mrb[0].mxu0
        %782 = vmatprep.mubr.f32.mxu0 0.0
        %783 = vmatmul.mubr.f32.gmra.mrb[0].mxu0 %v444
        %v784 = vpop.f32.mrb[0].mxu0
        %v785 = vadd.f32 %v620, %v784
        %v786 = vpop.f32.mrb[0].mxu0
        %787 = vmatprep.mubr.f32.mxu0 0.0
        %788 = vmatmul.mubr.f32.gmra.mrb[0].mxu0 %v445
        %v789 = vpop.f32.mrb[0].mxu0
        %v790 = vadd.f32 %v625, %v789
        %v791 = vpop.f32.mrb[0].mxu0
        %792 = vmatprep.mubr.f32.mxu0 0.0
        %793 = vmatmul.mubr.f32.gmra.mrb[0].mxu0 %v446
        %v794 = vpop.f32.mrb[0].mxu0
        %v795 = vadd.f32 %v630, %v794
        %v796 = vpop.f32.mrb[0].mxu0
        %797 = vmatprep.mubr.f32.mxu0 0.0
        %798 = vmatmul.mubr.f32.gmra.mrb[0].mxu0 %v447
        %v799 = vpop.f32.mrb[0].mxu0
        %v800 = vadd.f32 %v635, %v799
        %v801 = vpop.f32.mrb[0].mxu0
        %802 = vmatprep.mubr.f32.mxu0 0.0
        %803 = vmatmul.mubr.f32.gmra.mrb[0].mxu0 %v448
        %v804 = vpop.f32.mrb[0].mxu0
        %v805 = vadd.f32 %v640, %v804
        %v806 = vpop.f32.mrb[0].mxu0
        %807 = vmatprep.mubr.f32.mxu0 0.0
        %808 = vmatmul.mubr.f32.gmra.mrb[0].mxu0 %v449
        %v809 = vpop.f32.mrb[0].mxu0
        %v810 = vadd.f32 %v645, %v809
        %v811 = vpop.f32.mrb[0].mxu0
        %812 = vmatprep.mubr.f32.mxu0 0.0
        %813 = vmatmul.mubr.f32.gmra.mrb[0].mxu0 %v450
        %v814 = vpop.f32.mrb[0].mxu0
        %v815 = vadd.f32 %v650, %v814
        %v816 = vpop.f32.mrb[0].mxu0
        %817 = vmatprep.mubr.f32.mxu0 0.0
        %818 = vmatmul.mubr.f32.gmra.mrb[0].mxu0 %v451
        %v819 = vpop.f32.mrb[0].mxu0
        %v820 = vadd.f32 %v655, %v819
        %v821 = vpop.f32.mrb[0].mxu0
        %822 = vmatprep.mubr.f32.mxu0 0.0
        %823 = vmatmul.mubr.f32.gmra.mrb[0].mxu0 %v452
        %v824 = vpop.f32.mrb[0].mxu0
        %v825 = vadd.f32 %v660, %v824
        %v826 = vpop.f32.mrb[0].mxu0
        %827 = vmatprep.mubr.f32.mxu0 0.0
        %828 = vmatmul.mubr.f32.gmra.mrb[0].mxu0 %v453
        %v829 = vpop.f32.mrb[0].mxu0
        %v830 = vadd.f32 %v665, %v829
        %v831 = vpop.f32.mrb[0].mxu0
        %832 = vmatprep.mubr.f32.mxu0 0.0
        %833 = vmatmul.mubr.f32.gmra.mrb[0].mxu0 %v454
        %v834 = vpop.f32.mrb[0].mxu0
        %v835 = vadd.f32 %v670, %v834
        %v836 = vpop.f32.mrb[0].mxu0
        %837 = vdwg.mxu0
        %v838 = vld [vmem:[%s434 + $0x3] sm:$0xff]
        %v839 = vld [vmem:[%s434 + $0xb] sm:$0xff]
        %v840 = vld [vmem:[%s434 + $0x1b] sm:$0xff]
        %v841 = vld [vmem:[%s434 + $0x23] sm:$0xff]
        %v842 = vld [vmem:[%s434 + $0x33] sm:$0xff]
        %v843 = vld [vmem:[%s434 + $0x3b] sm:$0xff]
        %v844 = vld [vmem:[%s434 + $0x4b] sm:$0xff]
        %v845 = vld [vmem:[%s434 + $0x53] sm:$0xff]
        %v846 = vld [vmem:[%s434 + $0x63] sm:$0xff]
        %v847 = vld [vmem:[%s434 + $0x6b] sm:$0xff]
        %v848 = vld [vmem:[%s434 + $0x7b] sm:$0xff]
        %v849 = vld [vmem:[%s434 + $0x83] sm:$0xff]
        %v850 = vld [vmem:[%s434 + $0x93] sm:$0xff]
        %v851 = vld [vmem:[%s434 + $0x9b] sm:$0xff]
        %v852 = vld [vmem:[%s434 + $0xab] sm:$0xff]
        %v853 = vld [vmem:[%s434 + $0xb3] sm:$0xff]
        %v854 = vld [vmem:[%s434 + $0xc3] sm:$0xff]
        %v855 = vld [vmem:[%s434 + $0xcb] sm:$0xff]
        %v856 = vld [vmem:[%s434 + $0xdb] sm:$0xff]
        %v857 = vld [vmem:[%s434 + $0xe3] sm:$0xff]
        %s858 = scalar_lea.vmem [#allocation6], 256
        %v859 = vld [vmem:[%s858] sm:$0xff]
        %v860 = vld [vmem:[%s858 + $0x8] sm:$0xff]
        %v861 = vld [vmem:[%s858 + $0x10] sm:$0xff]
        %v862 = vld [vmem:[%s858 + $0x18] sm:$0xff]
        %v863 = vld [vmem:[%s858 + $0x20] sm:$0xff]
        %v864 = vld [vmem:[%s858 + $0x28] sm:$0xff]
        %v865 = vld [vmem:[%s858 + $0x30] sm:$0xff]
        %v866 = vld [vmem:[%s858 + $0x38] sm:$0xff]
        %v867 = vld [vmem:[%s858 + $0x40] sm:$0xff]
        %v868 = vld [vmem:[%s858 + $0x48] sm:$0xff]
        %v869 = vld [vmem:[%s858 + $0x50] sm:$0xff]
        %v870 = vld [vmem:[%s858 + $0x58] sm:$0xff]
        %v871 = vld [vmem:[%s858 + $0x60] sm:$0xff]
        %v872 = vld [vmem:[%s858 + $0x68] sm:$0xff]
        %v873 = vld [vmem:[%s858 + $0x70] sm:$0xff]
        %v874 = vld [vmem:[%s858 + $0x78] sm:$0xff]
        %875 = vmatprep.subr.mxu0 0.0
        %876 = vmatpush1.msra.mxu0 %v859
        %877 = vmatprep.subr.mxu0 0.0
        %878 = vmatpush1.msra.mxu0 %v860
        %879 = vmatprep.subr.mxu0 0.0
        %880 = vmatpush1.msra.mxu0 %v861
        %881 = vmatprep.subr.mxu0 0.0
        %882 = vmatpush1.msra.mxu0 %v862
        %883 = vmatprep.subr.mxu0 0.0
        %884 = vmatpush1.msra.mxu0 %v863
        %885 = vmatprep.subr.mxu0 0.0
        %886 = vmatpush1.msra.mxu0 %v864
        %887 = vmatprep.subr.mxu0 0.0
        %888 = vmatpush1.msra.mxu0 %v865
        %889 = vmatprep.subr.mxu0 0.0
        %890 = vmatpush1.msra.mxu0 %v866
        %891 = vmatprep.subr.mxu0 0.0
        %892 = vmatpush1.msra.mxu0 %v867
        %893 = vmatprep.subr.mxu0 0.0
        %894 = vmatpush1.msra.mxu0 %v868
        %895 = vmatprep.subr.mxu0 0.0
        %896 = vmatpush1.msra.mxu0 %v869
        %897 = vmatprep.subr.mxu0 0.0
        %898 = vmatpush1.msra.mxu0 %v870
        %899 = vmatprep.subr.mxu0 0.0
        %900 = vmatpush1.msra.mxu0 %v871
        %901 = vmatprep.subr.mxu0 0.0
        %902 = vmatpush1.msra.mxu0 %v872
        %903 = vmatprep.subr.mxu0 0.0
        %904 = vmatpush1.msra.mxu0 %v873
        %905 = vmatprep.subr.mxu0 0.0
        %906 = vmatpush1.msra.mxu0 %v874
        %907 = vmatprep.subr.mxu0 0.0
        %908 = vmatpush1.msra.mxu0 0.0
        %909 = vmatprep.subr.mxu0 0.0
        %910 = vmatpush1.msra.mxu0 0.0
        %911 = vmatprep.subr.mxu0 0.0
        %912 = vmatpush1.msra.mxu0 0.0
        %913 = vmatprep.subr.mxu0 0.0
        %914 = vmatpush1.msra.mxu0 0.0
        %915 = vmatprep.subr.mxu0 0.0
        %916 = vmatpush1.msra.mxu0 0.0
        %917 = vmatprep.subr.mxu0 0.0
        %918 = vmatpush1.msra.mxu0 0.0
        %919 = vmatprep.subr.mxu0 0.0
        %920 = vmatpush1.msra.mxu0 0.0
        %921 = vmatprep.subr.mxu0 0.0
        %922 = vmatpush1.msra.mxu0 0.0
        %923 = vmatprep.subr.mxu0 0.0
        %924 = vmatpush1.msra.mxu0 0.0
        %925 = vmatprep.subr.mxu0 0.0
        %926 = vmatpush1.msra.mxu0 0.0
        %927 = vmatprep.subr.mxu0 0.0
        %928 = vmatpush1.msra.mxu0 0.0
        %929 = vmatprep.subr.mxu0 0.0
        %930 = vmatpush1.msra.mxu0 0.0
        %931 = vmatprep.subr.mxu0 0.0
        %932 = vmatpush1.msra.mxu0 0.0
        %933 = vmatprep.subr.mxu0 0.0
        %934 = vmatpush1.msra.mxu0 0.0
        %935 = vmatprep.subr.mxu0 0.0
        %936 = vmatpush1.msra.mxu0 0.0
        %937 = vmatprep.subr.mxu0 0.0
        %938 = vmatpush1.msra.mxu0 0.0
        %939 = vmatprep.mubr.f32.mxu0 0.0
        %940 = vmatmul.mubr.f32.gmra.mrb[0].mxu0 %v838
        %v941 = vpop.f32.mrb[0].mxu0
        %v942 = vadd.f32 0.0, %v941
        %v943 = vpop.f32.mrb[0].mxu0
        %944 = vmatprep.mubr.f32.mxu0 0.0
        %945 = vmatmul.mubr.f32.gmra.mrb[0].mxu0 %v839
        %v946 = vpop.f32.mrb[0].mxu0
        %v947 = vadd.f32 0.0, %v946
        %v948 = vpop.f32.mrb[0].mxu0
        %949 = vmatprep.mubr.f32.mxu0 0.0
        %950 = vmatmul.mubr.f32.gmra.mrb[0].mxu0 %v840
        %v951 = vpop.f32.mrb[0].mxu0
        %v952 = vadd.f32 0.0, %v951
        %v953 = vpop.f32.mrb[0].mxu0
        %954 = vmatprep.mubr.f32.mxu0 0.0
        %955 = vmatmul.mubr.f32.gmra.mrb[0].mxu0 %v841
        %v956 = vpop.f32.mrb[0].mxu0
        %v957 = vadd.f32 0.0, %v956
        %v958 = vpop.f32.mrb[0].mxu0
        %959 = vmatprep.mubr.f32.mxu0 0.0
        %960 = vmatmul.mubr.f32.gmra.mrb[0].mxu0 %v842
        %v961 = vpop.f32.mrb[0].mxu0
        %v962 = vadd.f32 0.0, %v961
        %v963 = vpop.f32.mrb[0].mxu0
        %964 = vmatprep.mubr.f32.mxu0 0.0
        %965 = vmatmul.mubr.f32.gmra.mrb[0].mxu0 %v843
        %v966 = vpop.f32.mrb[0].mxu0
        %v967 = vadd.f32 0.0, %v966
        %v968 = vpop.f32.mrb[0].mxu0
        %969 = vmatprep.mubr.f32.mxu0 0.0
        %970 = vmatmul.mubr.f32.gmra.mrb[0].mxu0 %v844
        %v971 = vpop.f32.mrb[0].mxu0
        %v972 = vadd.f32 0.0, %v971
        %v973 = vpop.f32.mrb[0].mxu0
        %974 = vmatprep.mubr.f32.mxu0 0.0
        %975 = vmatmul.mubr.f32.gmra.mrb[0].mxu0 %v845
        %v976 = vpop.f32.mrb[0].mxu0
        %v977 = vadd.f32 0.0, %v976
        %v978 = vpop.f32.mrb[0].mxu0
        %979 = vmatprep.mubr.f32.mxu0 0.0
        %980 = vmatmul.mubr.f32.gmra.mrb[0].mxu0 %v846
        %v981 = vpop.f32.mrb[0].mxu0
        %v982 = vadd.f32 0.0, %v981
        %v983 = vpop.f32.mrb[0].mxu0
        %984 = vmatprep.mubr.f32.mxu0 0.0
        %985 = vmatmul.mubr.f32.gmra.mrb[0].mxu0 %v847
        %v986 = vpop.f32.mrb[0].mxu0
        %v987 = vadd.f32 0.0, %v986
        %v988 = vpop.f32.mrb[0].mxu0
        %989 = vmatprep.mubr.f32.mxu0 0.0
        %990 = vmatmul.mubr.f32.gmra.mrb[0].mxu0 %v848
        %v991 = vpop.f32.mrb[0].mxu0
        %v992 = vadd.f32 0.0, %v991
        %v993 = vpop.f32.mrb[0].mxu0
        %994 = vmatprep.mubr.f32.mxu0 0.0
        %995 = vmatmul.mubr.f32.gmra.mrb[0].mxu0 %v849
        %v996 = vpop.f32.mrb[0].mxu0
        %v997 = vadd.f32 0.0, %v996
        %v998 = vpop.f32.mrb[0].mxu0
        %999 = vmatprep.mubr.f32.mxu0 0.0
        %1000 = vmatmul.mubr.f32.gmra.mrb[0].mxu0 %v850
        %v1001 = vpop.f32.mrb[0].mxu0
        %v1002 = vadd.f32 0.0, %v1001
        %v1003 = vpop.f32.mrb[0].mxu0
        %1004 = vmatprep.mubr.f32.mxu0 0.0
        %1005 = vmatmul.mubr.f32.gmra.mrb[0].mxu0 %v851
        %v1006 = vpop.f32.mrb[0].mxu0
        %v1007 = vadd.f32 0.0, %v1006
        %v1008 = vpop.f32.mrb[0].mxu0
        %1009 = vmatprep.mubr.f32.mxu0 0.0
        %1010 = vmatmul.mubr.f32.gmra.mrb[0].mxu0 %v852
        %v1011 = vpop.f32.mrb[0].mxu0
        %v1012 = vadd.f32 0.0, %v1011
        %v1013 = vpop.f32.mrb[0].mxu0
        %1014 = vmatprep.mubr.f32.mxu0 0.0
        %1015 = vmatmul.mubr.f32.gmra.mrb[0].mxu0 %v853
        %v1016 = vpop.f32.mrb[0].mxu0
        %v1017 = vadd.f32 0.0, %v1016
        %v1018 = vpop.f32.mrb[0].mxu0
        %1019 = vmatprep.mubr.f32.mxu0 0.0
        %1020 = vmatmul.mubr.f32.gmra.mrb[0].mxu0 %v854
        %v1021 = vpop.f32.mrb[0].mxu0
        %v1022 = vadd.f32 0.0, %v1021
        %v1023 = vpop.f32.mrb[0].mxu0
        %1024 = vmatprep.mubr.f32.mxu0 0.0
        %1025 = vmatmul.mubr.f32.gmra.mrb[0].mxu0 %v855
        %v1026 = vpop.f32.mrb[0].mxu0
        %v1027 = vadd.f32 0.0, %v1026
        %v1028 = vpop.f32.mrb[0].mxu0
        %1029 = vmatprep.mubr.f32.mxu0 0.0
        %1030 = vmatmul.mubr.f32.gmra.mrb[0].mxu0 %v856
        %v1031 = vpop.f32.mrb[0].mxu0
        %v1032 = vadd.f32 0.0, %v1031
        %v1033 = vpop.f32.mrb[0].mxu0
        %1034 = vmatprep.mubr.f32.mxu0 0.0
        %1035 = vmatmul.mubr.f32.gmra.mrb[0].mxu0 %v857
        %v1036 = vpop.f32.mrb[0].mxu0
        %v1037 = vadd.f32 0.0, %v1036
        %v1038 = vpop.f32.mrb[0].mxu0
        %1039 = vdwg.mxu0
        %v1040 = vadd.f32 %v740, %v942
        %v1041 = vadd.f32 %v745, %v947
        %v1042 = vadd.f32 %v750, %v952
        %v1043 = vadd.f32 %v755, %v957
        %v1044 = vadd.f32 %v760, %v962
        %v1045 = vadd.f32 %v765, %v967
        %v1046 = vadd.f32 %v770, %v972
        %v1047 = vadd.f32 %v775, %v977
        %v1048 = vadd.f32 %v780, %v982
        %v1049 = vadd.f32 %v785, %v987
        %v1050 = vadd.f32 %v790, %v992
        %v1051 = vadd.f32 %v795, %v997
        %v1052 = vadd.f32 %v800, %v1002
        %v1053 = vadd.f32 %v805, %v1007
        %v1054 = vadd.f32 %v810, %v1012
        %v1055 = vadd.f32 %v815, %v1017
        %v1056 = vadd.f32 %v820, %v1022
        %v1057 = vadd.f32 %v825, %v1027
        %v1058 = vadd.f32 %v830, %v1032
        %v1059 = vadd.f32 %v835, %v1037
        %s1060 = sadd.s32 %s432, 1
        %s1061 = smul.u32 %s1060, 24
        %s1062 = scalar_lea.vmem %s368, %s1061 [#allocation3]
        %v1063 = vld [vmem:[%s1062 + $0x1] sm:$0xff]
        %v1064 = vld [vmem:[%s1062 + $0x9] sm:$0xff]
        %v1065 = vld [vmem:[%s1062 + $0x19] sm:$0xff]
        %v1066 = vld [vmem:[%s1062 + $0x21] sm:$0xff]
        %v1067 = vld [vmem:[%s1062 + $0x31] sm:$0xff]
        %v1068 = vld [vmem:[%s1062 + $0x39] sm:$0xff]
        %v1069 = vld [vmem:[%s1062 + $0x49] sm:$0xff]
        %v1070 = vld [vmem:[%s1062 + $0x51] sm:$0xff]
        %v1071 = vld [vmem:[%s1062 + $0x61] sm:$0xff]
        %v1072 = vld [vmem:[%s1062 + $0x69] sm:$0xff]
        %v1073 = vld [vmem:[%s1062 + $0x79] sm:$0xff]
        %v1074 = vld [vmem:[%s1062 + $0x81] sm:$0xff]
        %v1075 = vld [vmem:[%s1062 + $0x91] sm:$0xff]
        %v1076 = vld [vmem:[%s1062 + $0x99] sm:$0xff]
        %v1077 = vld [vmem:[%s1062 + $0xa9] sm:$0xff]
        %v1078 = vld [vmem:[%s1062 + $0xb1] sm:$0xff]
        %v1079 = vld [vmem:[%s1062 + $0xc1] sm:$0xff]
        %v1080 = vld [vmem:[%s1062 + $0xc9] sm:$0xff]
        %v1081 = vld [vmem:[%s1062 + $0xd9] sm:$0xff]
        %v1082 = vld [vmem:[%s1062 + $0xe1] sm:$0xff]
        %s1083 = scalar_lea.vmem [#allocation6], 384
        %v1084 = vld [vmem:[%s1083] sm:$0xff]
        %v1085 = vld [vmem:[%s1083 + $0x8] sm:$0xff]
        %v1086 = vld [vmem:[%s1083 + $0x10] sm:$0xff]
        %v1087 = vld [vmem:[%s1083 + $0x18] sm:$0xff]
        %v1088 = vld [vmem:[%s1083 + $0x20] sm:$0xff]
        %v1089 = vld [vmem:[%s1083 + $0x28] sm:$0xff]
        %v1090 = vld [vmem:[%s1083 + $0x30] sm:$0xff]
        %v1091 = vld [vmem:[%s1083 + $0x38] sm:$0xff]
        %v1092 = vld [vmem:[%s1083 + $0x40] sm:$0xff]
        %v1093 = vld [vmem:[%s1083 + $0x48] sm:$0xff]
        %v1094 = vld [vmem:[%s1083 + $0x50] sm:$0xff]
        %v1095 = vld [vmem:[%s1083 + $0x58] sm:$0xff]
        %v1096 = vld [vmem:[%s1083 + $0x60] sm:$0xff]
        %v1097 = vld [vmem:[%s1083 + $0x68] sm:$0xff]
        %v1098 = vld [vmem:[%s1083 + $0x70] sm:$0xff]
        %v1099 = vld [vmem:[%s1083 + $0x78] sm:$0xff]
        %1100 = vmatprep.subr.mxu0 0.0
        %1101 = vmatpush1.msra.mxu0 %v1084
        %1102 = vmatprep.subr.mxu0 0.0
        %1103 = vmatpush1.msra.mxu0 %v1085
        %1104 = vmatprep.subr.mxu0 0.0
        %1105 = vmatpush1.msra.mxu0 %v1086
        %1106 = vmatprep.subr.mxu0 0.0
        %1107 = vmatpush1.msra.mxu0 %v1087
        %1108 = vmatprep.subr.mxu0 0.0
        %1109 = vmatpush1.msra.mxu0 %v1088
        %1110 = vmatprep.subr.mxu0 0.0
        %1111 = vmatpush1.msra.mxu0 %v1089
        %1112 = vmatprep.subr.mxu0 0.0
        %1113 = vmatpush1.msra.mxu0 %v1090
        %1114 = vmatprep.subr.mxu0 0.0
        %1115 = vmatpush1.msra.mxu0 %v1091
        %1116 = vmatprep.subr.mxu0 0.0
        %1117 = vmatpush1.msra.mxu0 %v1092
        %1118 = vmatprep.subr.mxu0 0.0
        %1119 = vmatpush1.msra.mxu0 %v1093
        %1120 = vmatprep.subr.mxu0 0.0
        %1121 = vmatpush1.msra.mxu0 %v1094
        %1122 = vmatprep.subr.mxu0 0.0
        %1123 = vmatpush1.msra.mxu0 %v1095
        %1124 = vmatprep.subr.mxu0 0.0
        %1125 = vmatpush1.msra.mxu0 %v1096
        %1126 = vmatprep.subr.mxu0 0.0
        %1127 = vmatpush1.msra.mxu0 %v1097
        %1128 = vmatprep.subr.mxu0 0.0
        %1129 = vmatpush1.msra.mxu0 %v1098
        %1130 = vmatprep.subr.mxu0 0.0
        %1131 = vmatpush1.msra.mxu0 %v1099
        %1132 = vmatprep.subr.mxu0 0.0
        %1133 = vmatpush1.msra.mxu0 0.0
        %1134 = vmatprep.subr.mxu0 0.0
        %1135 = vmatpush1.msra.mxu0 0.0
        %1136 = vmatprep.subr.mxu0 0.0
        %1137 = vmatpush1.msra.mxu0 0.0
        %1138 = vmatprep.subr.mxu0 0.0
        %1139 = vmatpush1.msra.mxu0 0.0
        %1140 = vmatprep.subr.mxu0 0.0
        %1141 = vmatpush1.msra.mxu0 0.0
        %1142 = vmatprep.subr.mxu0 0.0
        %1143 = vmatpush1.msra.mxu0 0.0
        %1144 = vmatprep.subr.mxu0 0.0
        %1145 = vmatpush1.msra.mxu0 0.0
        %1146 = vmatprep.subr.mxu0 0.0
        %1147 = vmatpush1.msra.mxu0 0.0
        %1148 = vmatprep.subr.mxu0 0.0
        %1149 = vmatpush1.msra.mxu0 0.0
        %1150 = vmatprep.subr.mxu0 0.0
        %1151 = vmatpush1.msra.mxu0 0.0
        %1152 = vmatprep.subr.mxu0 0.0
        %1153 = vmatpush1.msra.mxu0 0.0
        %1154 = vmatprep.subr.mxu0 0.0
        %1155 = vmatpush1.msra.mxu0 0.0
        %1156 = vmatprep.subr.mxu0 0.0
        %1157 = vmatpush1.msra.mxu0 0.0
        %1158 = vmatprep.subr.mxu0 0.0
        %1159 = vmatpush1.msra.mxu0 0.0
        %1160 = vmatprep.subr.mxu0 0.0
        %1161 = vmatpush1.msra.mxu0 0.0
        %1162 = vmatprep.subr.mxu0 0.0
        %1163 = vmatpush1.msra.mxu0 0.0
        %1164 = vmatprep.mubr.f32.mxu0 0.0
        %1165 = vmatmul.mubr.f32.gmra.mrb[0].mxu0 %v1063
        %v1166 = vpop.f32.mrb[0].mxu0
        %v1167 = vadd.f32 0.0, %v1166
        %v1168 = vpop.f32.mrb[0].mxu0
        %1169 = vmatprep.mubr.f32.mxu0 0.0
        %1170 = vmatmul.mubr.f32.gmra.mrb[0].mxu0 %v1064
        %v1171 = vpop.f32.mrb[0].mxu0
        %v1172 = vadd.f32 0.0, %v1171
        %v1173 = vpop.f32.mrb[0].mxu0
        %1174 = vmatprep.mubr.f32.mxu0 0.0
        %1175 = vmatmul.mubr.f32.gmra.mrb[0].mxu0 %v1065
        %v1176 = vpop.f32.mrb[0].mxu0
        %v1177 = vadd.f32 0.0, %v1176
        %v1178 = vpop.f32.mrb[0].mxu0
        %1179 = vmatprep.mubr.f32.mxu0 0.0
        %1180 = vmatmul.mubr.f32.gmra.mrb[0].mxu0 %v1066
        %v1181 = vpop.f32.mrb[0].mxu0
        %v1182 = vadd.f32 0.0, %v1181
        %v1183 = vpop.f32.mrb[0].mxu0
        %1184 = vmatprep.mubr.f32.mxu0 0.0
        %1185 = vmatmul.mubr.f32.gmra.mrb[0].mxu0 %v1067
        %v1186 = vpop.f32.mrb[0].mxu0
        %v1187 = vadd.f32 0.0, %v1186
        %v1188 = vpop.f32.mrb[0].mxu0
        %1189 = vmatprep.mubr.f32.mxu0 0.0
        %1190 = vmatmul.mubr.f32.gmra.mrb[0].mxu0 %v1068
        %v1191 = vpop.f32.mrb[0].mxu0
        %v1192 = vadd.f32 0.0, %v1191
        %v1193 = vpop.f32.mrb[0].mxu0
        %1194 = vmatprep.mubr.f32.mxu0 0.0
        %1195 = vmatmul.mubr.f32.gmra.mrb[0].mxu0 %v1069
        %v1196 = vpop.f32.mrb[0].mxu0
        %v1197 = vadd.f32 0.0, %v1196
        %v1198 = vpop.f32.mrb[0].mxu0
        %1199 = vmatprep.mubr.f32.mxu0 0.0
        %1200 = vmatmul.mubr.f32.gmra.mrb[0].mxu0 %v1070
        %v1201 = vpop.f32.mrb[0].mxu0
        %v1202 = vadd.f32 0.0, %v1201
        %v1203 = vpop.f32.mrb[0].mxu0
        %1204 = vmatprep.mubr.f32.mxu0 0.0
        %1205 = vmatmul.mubr.f32.gmra.mrb[0].mxu0 %v1071
        %v1206 = vpop.f32.mrb[0].mxu0
        %v1207 = vadd.f32 0.0, %v1206
        %v1208 = vpop.f32.mrb[0].mxu0
        %1209 = vmatprep.mubr.f32.mxu0 0.0
        %1210 = vmatmul.mubr.f32.gmra.mrb[0].mxu0 %v1072
        %v1211 = vpop.f32.mrb[0].mxu0
        %v1212 = vadd.f32 0.0, %v1211
        %v1213 = vpop.f32.mrb[0].mxu0
        %1214 = vmatprep.mubr.f32.mxu0 0.0
        %1215 = vmatmul.mubr.f32.gmra.mrb[0].mxu0 %v1073
        %v1216 = vpop.f32.mrb[0].mxu0
        %v1217 = vadd.f32 0.0, %v1216
        %v1218 = vpop.f32.mrb[0].mxu0
        %1219 = vmatprep.mubr.f32.mxu0 0.0
        %1220 = vmatmul.mubr.f32.gmra.mrb[0].mxu0 %v1074
        %v1221 = vpop.f32.mrb[0].mxu0
        %v1222 = vadd.f32 0.0, %v1221
        %v1223 = vpop.f32.mrb[0].mxu0
        %1224 = vmatprep.mubr.f32.mxu0 0.0
        %1225 = vmatmul.mubr.f32.gmra.mrb[0].mxu0 %v1075
        %v1226 = vpop.f32.mrb[0].mxu0
        %v1227 = vadd.f32 0.0, %v1226
        %v1228 = vpop.f32.mrb[0].mxu0
        %1229 = vmatprep.mubr.f32.mxu0 0.0
        %1230 = vmatmul.mubr.f32.gmra.mrb[0].mxu0 %v1076
        %v1231 = vpop.f32.mrb[0].mxu0
        %v1232 = vadd.f32 0.0, %v1231
        %v1233 = vpop.f32.mrb[0].mxu0
        %1234 = vmatprep.mubr.f32.mxu0 0.0
        %1235 = vmatmul.mubr.f32.gmra.mrb[0].mxu0 %v1077
        %v1236 = vpop.f32.mrb[0].mxu0
        %v1237 = vadd.f32 0.0, %v1236
        %v1238 = vpop.f32.mrb[0].mxu0
        %1239 = vmatprep.mubr.f32.mxu0 0.0
        %1240 = vmatmul.mubr.f32.gmra.mrb[0].mxu0 %v1078
        %v1241 = vpop.f32.mrb[0].mxu0
        %v1242 = vadd.f32 0.0, %v1241
        %v1243 = vpop.f32.mrb[0].mxu0
        %1244 = vmatprep.mubr.f32.mxu0 0.0
        %1245 = vmatmul.mubr.f32.gmra.mrb[0].mxu0 %v1079
        %v1246 = vpop.f32.mrb[0].mxu0
        %v1247 = vadd.f32 0.0, %v1246
        %v1248 = vpop.f32.mrb[0].mxu0
        %1249 = vmatprep.mubr.f32.mxu0 0.0
        %1250 = vmatmul.mubr.f32.gmra.mrb[0].mxu0 %v1080
        %v1251 = vpop.f32.mrb[0].mxu0
        %v1252 = vadd.f32 0.0, %v1251
        %v1253 = vpop.f32.mrb[0].mxu0
        %1254 = vmatprep.mubr.f32.mxu0 0.0
        %1255 = vmatmul.mubr.f32.gmra.mrb[0].mxu0 %v1081
        %v1256 = vpop.f32.mrb[0].mxu0
        %v1257 = vadd.f32 0.0, %v1256
        %v1258 = vpop.f32.mrb[0].mxu0
        %1259 = vmatprep.mubr.f32.mxu0 0.0
        %1260 = vmatmul.mubr.f32.gmra.mrb[0].mxu0 %v1082
        %v1261 = vpop.f32.mrb[0].mxu0
        %v1262 = vadd.f32 0.0, %v1261
        %v1263 = vpop.f32.mrb[0].mxu0
        %1264 = vdwg.mxu0
        %v1265 = vadd.f32 %v1040, %v1167
        %v1266 = vadd.f32 %v1041, %v1172
        %v1267 = vadd.f32 %v1042, %v1177
        %v1268 = vadd.f32 %v1043, %v1182
        %v1269 = vadd.f32 %v1044, %v1187
        %v1270 = vadd.f32 %v1045, %v1192
        %v1271 = vadd.f32 %v1046, %v1197
        %v1272 = vadd.f32 %v1047, %v1202
        %v1273 = vadd.f32 %v1048, %v1207
        %v1274 = vadd.f32 %v1049, %v1212
        %v1275 = vadd.f32 %v1050, %v1217
        %v1276 = vadd.f32 %v1051, %v1222
        %v1277 = vadd.f32 %v1052, %v1227
        %v1278 = vadd.f32 %v1053, %v1232
        %v1279 = vadd.f32 %v1054, %v1237
        %v1280 = vadd.f32 %v1055, %v1242
        %v1281 = vadd.f32 %v1056, %v1247
        %v1282 = vadd.f32 %v1057, %v1252
        %v1283 = vadd.f32 %v1058, %v1257
        %v1284 = vadd.f32 %v1059, %v1262
        %v1285 = vld [vmem:[%s1062 + $0x2] sm:$0xff]
        %v1286 = vld [vmem:[%s1062 + $0xa] sm:$0xff]
        %v1287 = vld [vmem:[%s1062 + $0x1a] sm:$0xff]
        %v1288 = vld [vmem:[%s1062 + $0x22] sm:$0xff]
        %v1289 = vld [vmem:[%s1062 + $0x32] sm:$0xff]
        %v1290 = vld [vmem:[%s1062 + $0x3a] sm:$0xff]
        %v1291 = vld [vmem:[%s1062 + $0x4a] sm:$0xff]
        %v1292 = vld [vmem:[%s1062 + $0x52] sm:$0xff]
        %v1293 = vld [vmem:[%s1062 + $0x62] sm:$0xff]
        %v1294 = vld [vmem:[%s1062 + $0x6a] sm:$0xff]
        %v1295 = vld [vmem:[%s1062 + $0x7a] sm:$0xff]
        %v1296 = vld [vmem:[%s1062 + $0x82] sm:$0xff]
        %v1297 = vld [vmem:[%s1062 + $0x92] sm:$0xff]
        %v1298 = vld [vmem:[%s1062 + $0x9a] sm:$0xff]
        %v1299 = vld [vmem:[%s1062 + $0xaa] sm:$0xff]
        %v1300 = vld [vmem:[%s1062 + $0xb2] sm:$0xff]
        %v1301 = vld [vmem:[%s1062 + $0xc2] sm:$0xff]
        %v1302 = vld [vmem:[%s1062 + $0xca] sm:$0xff]
        %v1303 = vld [vmem:[%s1062 + $0xda] sm:$0xff]
        %v1304 = vld [vmem:[%s1062 + $0xe2] sm:$0xff]
        %s1305 = scalar_lea.vmem [#allocation6], 512
        %v1306 = vld [vmem:[%s1305] sm:$0xff]
        %v1307 = vld [vmem:[%s1305 + $0x8] sm:$0xff]
        %v1308 = vld [vmem:[%s1305 + $0x10] sm:$0xff]
        %v1309 = vld [vmem:[%s1305 + $0x18] sm:$0xff]
        %v1310 = vld [vmem:[%s1305 + $0x20] sm:$0xff]
        %v1311 = vld [vmem:[%s1305 + $0x28] sm:$0xff]
        %v1312 = vld [vmem:[%s1305 + $0x30] sm:$0xff]
        %v1313 = vld [vmem:[%s1305 + $0x38] sm:$0xff]
        %v1314 = vld [vmem:[%s1305 + $0x40] sm:$0xff]
        %v1315 = vld [vmem:[%s1305 + $0x48] sm:$0xff]
        %v1316 = vld [vmem:[%s1305 + $0x50] sm:$0xff]
        %v1317 = vld [vmem:[%s1305 + $0x58] sm:$0xff]
        %v1318 = vld [vmem:[%s1305 + $0x60] sm:$0xff]
        %v1319 = vld [vmem:[%s1305 + $0x68] sm:$0xff]
        %v1320 = vld [vmem:[%s1305 + $0x70] sm:$0xff]
        %v1321 = vld [vmem:[%s1305 + $0x78] sm:$0xff]
        %1322 = vmatprep.subr.mxu0 0.0
        %1323 = vmatpush1.msra.mxu0 %v1306
        %1324 = vmatprep.subr.mxu0 0.0
        %1325 = vmatpush1.msra.mxu0 %v1307
        %1326 = vmatprep.subr.mxu0 0.0
        %1327 = vmatpush1.msra.mxu0 %v1308
        %1328 = vmatprep.subr.mxu0 0.0
        %1329 = vmatpush1.msra.mxu0 %v1309
        %1330 = vmatprep.subr.mxu0 0.0
        %1331 = vmatpush1.msra.mxu0 %v1310
        %1332 = vmatprep.subr.mxu0 0.0
        %1333 = vmatpush1.msra.mxu0 %v1311
        %1334 = vmatprep.subr.mxu0 0.0
        %1335 = vmatpush1.msra.mxu0 %v1312
        %1336 = vmatprep.subr.mxu0 0.0
        %1337 = vmatpush1.msra.mxu0 %v1313
        %1338 = vmatprep.subr.mxu0 0.0
        %1339 = vmatpush1.msra.mxu0 %v1314
        %1340 = vmatprep.subr.mxu0 0.0
        %1341 = vmatpush1.msra.mxu0 %v1315
        %1342 = vmatprep.subr.mxu0 0.0
        %1343 = vmatpush1.msra.mxu0 %v1316
        %1344 = vmatprep.subr.mxu0 0.0
        %1345 = vmatpush1.msra.mxu0 %v1317
        %1346 = vmatprep.subr.mxu0 0.0
        %1347 = vmatpush1.msra.mxu0 %v1318
        %1348 = vmatprep.subr.mxu0 0.0
        %1349 = vmatpush1.msra.mxu0 %v1319
        %1350 = vmatprep.subr.mxu0 0.0
        %1351 = vmatpush1.msra.mxu0 %v1320
        %1352 = vmatprep.subr.mxu0 0.0
        %1353 = vmatpush1.msra.mxu0 %v1321
        %1354 = vmatprep.subr.mxu0 0.0
        %1355 = vmatpush1.msra.mxu0 0.0
        %1356 = vmatprep.subr.mxu0 0.0
        %1357 = vmatpush1.msra.mxu0 0.0
        %1358 = vmatprep.subr.mxu0 0.0
        %1359 = vmatpush1.msra.mxu0 0.0
        %1360 = vmatprep.subr.mxu0 0.0
        %1361 = vmatpush1.msra.mxu0 0.0
        %1362 = vmatprep.subr.mxu0 0.0
        %1363 = vmatpush1.msra.mxu0 0.0
        %1364 = vmatprep.subr.mxu0 0.0
        %1365 = vmatpush1.msra.mxu0 0.0
        %1366 = vmatprep.subr.mxu0 0.0
        %1367 = vmatpush1.msra.mxu0 0.0
        %1368 = vmatprep.subr.mxu0 0.0
        %1369 = vmatpush1.msra.mxu0 0.0
        %1370 = vmatprep.subr.mxu0 0.0
        %1371 = vmatpush1.msra.mxu0 0.0
        %1372 = vmatprep.subr.mxu0 0.0
        %1373 = vmatpush1.msra.mxu0 0.0
        %1374 = vmatprep.subr.mxu0 0.0
        %1375 = vmatpush1.msra.mxu0 0.0
        %1376 = vmatprep.subr.mxu0 0.0
        %1377 = vmatpush1.msra.mxu0 0.0
        %1378 = vmatprep.subr.mxu0 0.0
        %1379 = vmatpush1.msra.mxu0 0.0
        %1380 = vmatprep.subr.mxu0 0.0
        %1381 = vmatpush1.msra.mxu0 0.0
        %1382 = vmatprep.subr.mxu0 0.0
        %1383 = vmatpush1.msra.mxu0 0.0
        %1384 = vmatprep.subr.mxu0 0.0
        %1385 = vmatpush1.msra.mxu0 0.0
        %1386 = vmatprep.mubr.f32.mxu0 0.0
        %1387 = vmatmul.mubr.f32.gmra.mrb[0].mxu0 %v1285
        %v1388 = vpop.f32.mrb[0].mxu0
        %v1389 = vadd.f32 0.0, %v1388
        %v1390 = vpop.f32.mrb[0].mxu0
        %1391 = vmatprep.mubr.f32.mxu0 0.0
        %1392 = vmatmul.mubr.f32.gmra.mrb[0].mxu0 %v1286
        %v1393 = vpop.f32.mrb[0].mxu0
        %v1394 = vadd.f32 0.0, %v1393
        %v1395 = vpop.f32.mrb[0].mxu0
        %1396 = vmatprep.mubr.f32.mxu0 0.0
        %1397 = vmatmul.mubr.f32.gmra.mrb[0].mxu0 %v1287
        %v1398 = vpop.f32.mrb[0].mxu0
        %v1399 = vadd.f32 0.0, %v1398
        %v1400 = vpop.f32.mrb[0].mxu0
        %1401 = vmatprep.mubr.f32.mxu0 0.0
        %1402 = vmatmul.mubr.f32.gmra.mrb[0].mxu0 %v1288
        %v1403 = vpop.f32.mrb[0].mxu0
        %v1404 = vadd.f32 0.0, %v1403
        %v1405 = vpop.f32.mrb[0].mxu0
        %1406 = vmatprep.mubr.f32.mxu0 0.0
        %1407 = vmatmul.mubr.f32.gmra.mrb[0].mxu0 %v1289
        %v1408 = vpop.f32.mrb[0].mxu0
        %v1409 = vadd.f32 0.0, %v1408
        %v1410 = vpop.f32.mrb[0].mxu0
        %1411 = vmatprep.mubr.f32.mxu0 0.0
        %1412 = vmatmul.mubr.f32.gmra.mrb[0].mxu0 %v1290
        %v1413 = vpop.f32.mrb[0].mxu0
        %v1414 = vadd.f32 0.0, %v1413
        %v1415 = vpop.f32.mrb[0].mxu0
        %1416 = vmatprep.mubr.f32.mxu0 0.0
        %1417 = vmatmul.mubr.f32.gmra.mrb[0].mxu0 %v1291
        %v1418 = vpop.f32.mrb[0].mxu0
        %v1419 = vadd.f32 0.0, %v1418
        %v1420 = vpop.f32.mrb[0].mxu0
        %1421 = vmatprep.mubr.f32.mxu0 0.0
        %1422 = vmatmul.mubr.f32.gmra.mrb[0].mxu0 %v1292
        %v1423 = vpop.f32.mrb[0].mxu0
        %v1424 = vadd.f32 0.0, %v1423
        %v1425 = vpop.f32.mrb[0].mxu0
        %1426 = vmatprep.mubr.f32.mxu0 0.0
        %1427 = vmatmul.mubr.f32.gmra.mrb[0].mxu0 %v1293
        %v1428 = vpop.f32.mrb[0].mxu0
        %v1429 = vadd.f32 0.0, %v1428
        %v1430 = vpop.f32.mrb[0].mxu0
        %1431 = vmatprep.mubr.f32.mxu0 0.0
        %1432 = vmatmul.mubr.f32.gmra.mrb[0].mxu0 %v1294
        %v1433 = vpop.f32.mrb[0].mxu0
        %v1434 = vadd.f32 0.0, %v1433
        %v1435 = vpop.f32.mrb[0].mxu0
        %1436 = vmatprep.mubr.f32.mxu0 0.0
        %1437 = vmatmul.mubr.f32.gmra.mrb[0].mxu0 %v1295
        %v1438 = vpop.f32.mrb[0].mxu0
        %v1439 = vadd.f32 0.0, %v1438
        %v1440 = vpop.f32.mrb[0].mxu0
        %1441 = vmatprep.mubr.f32.mxu0 0.0
        %1442 = vmatmul.mubr.f32.gmra.mrb[0].mxu0 %v1296
        %v1443 = vpop.f32.mrb[0].mxu0
        %v1444 = vadd.f32 0.0, %v1443
        %v1445 = vpop.f32.mrb[0].mxu0
        %1446 = vmatprep.mubr.f32.mxu0 0.0
        %1447 = vmatmul.mubr.f32.gmra.mrb[0].mxu0 %v1297
        %v1448 = vpop.f32.mrb[0].mxu0
        %v1449 = vadd.f32 0.0, %v1448
        %v1450 = vpop.f32.mrb[0].mxu0
        %1451 = vmatprep.mubr.f32.mxu0 0.0
        %1452 = vmatmul.mubr.f32.gmra.mrb[0].mxu0 %v1298
        %v1453 = vpop.f32.mrb[0].mxu0
        %v1454 = vadd.f32 0.0, %v1453
        %v1455 = vpop.f32.mrb[0].mxu0
        %1456 = vmatprep.mubr.f32.mxu0 0.0
        %1457 = vmatmul.mubr.f32.gmra.mrb[0].mxu0 %v1299
        %v1458 = vpop.f32.mrb[0].mxu0
        %v1459 = vadd.f32 0.0, %v1458
        %v1460 = vpop.f32.mrb[0].mxu0
        %1461 = vmatprep.mubr.f32.mxu0 0.0
        %1462 = vmatmul.mubr.f32.gmra.mrb[0].mxu0 %v1300
        %v1463 = vpop.f32.mrb[0].mxu0
        %v1464 = vadd.f32 0.0, %v1463
        %v1465 = vpop.f32.mrb[0].mxu0
        %1466 = vmatprep.mubr.f32.mxu0 0.0
        %1467 = vmatmul.mubr.f32.gmra.mrb[0].mxu0 %v1301
        %v1468 = vpop.f32.mrb[0].mxu0
        %v1469 = vadd.f32 0.0, %v1468
        %v1470 = vpop.f32.mrb[0].mxu0
        %1471 = vmatprep.mubr.f32.mxu0 0.0
        %1472 = vmatmul.mubr.f32.gmra.mrb[0].mxu0 %v1302
        %v1473 = vpop.f32.mrb[0].mxu0
        %v1474 = vadd.f32 0.0, %v1473
        %v1475 = vpop.f32.mrb[0].mxu0
        %1476 = vmatprep.mubr.f32.mxu0 0.0
        %1477 = vmatmul.mubr.f32.gmra.mrb[0].mxu0 %v1303
        %v1478 = vpop.f32.mrb[0].mxu0
        %v1479 = vadd.f32 0.0, %v1478
        %v1480 = vpop.f32.mrb[0].mxu0
        %1481 = vmatprep.mubr.f32.mxu0 0.0
        %1482 = vmatmul.mubr.f32.gmra.mrb[0].mxu0 %v1304
        %v1483 = vpop.f32.mrb[0].mxu0
        %v1484 = vadd.f32 0.0, %v1483
        %v1485 = vpop.f32.mrb[0].mxu0
        %1486 = vdwg.mxu0
        %v1487 = vadd.f32 %v1265, %v1389
        %v1488 = vadd.f32 %v1266, %v1394
        %v1489 = vadd.f32 %v1267, %v1399
        %v1490 = vadd.f32 %v1268, %v1404
        %v1491 = vadd.f32 %v1269, %v1409
        %v1492 = vadd.f32 %v1270, %v1414
        %v1493 = vadd.f32 %v1271, %v1419
        %v1494 = vadd.f32 %v1272, %v1424
        %v1495 = vadd.f32 %v1273, %v1429
        %v1496 = vadd.f32 %v1274, %v1434
        %v1497 = vadd.f32 %v1275, %v1439
        %v1498 = vadd.f32 %v1276, %v1444
        %v1499 = vadd.f32 %v1277, %v1449
        %v1500 = vadd.f32 %v1278, %v1454
        %v1501 = vadd.f32 %v1279, %v1459
        %v1502 = vadd.f32 %v1280, %v1464
        %v1503 = vadd.f32 %v1281, %v1469
        %v1504 = vadd.f32 %v1282, %v1474
        %v1505 = vadd.f32 %v1283, %v1479
        %v1506 = vadd.f32 %v1284, %v1484
        %v1507 = vld [vmem:[%s1062 + $0x3] sm:$0xff]
        %v1508 = vld [vmem:[%s1062 + $0xb] sm:$0xff]
        %v1509 = vld [vmem:[%s1062 + $0x1b] sm:$0xff]
        %v1510 = vld [vmem:[%s1062 + $0x23] sm:$0xff]
        %v1511 = vld [vmem:[%s1062 + $0x33] sm:$0xff]
        %v1512 = vld [vmem:[%s1062 + $0x3b] sm:$0xff]
        %v1513 = vld [vmem:[%s1062 + $0x4b] sm:$0xff]
        %v1514 = vld [vmem:[%s1062 + $0x53] sm:$0xff]
        %v1515 = vld [vmem:[%s1062 + $0x63] sm:$0xff]
        %v1516 = vld [vmem:[%s1062 + $0x6b] sm:$0xff]
        %v1517 = vld [vmem:[%s1062 + $0x7b] sm:$0xff]
        %v1518 = vld [vmem:[%s1062 + $0x83] sm:$0xff]
        %v1519 = vld [vmem:[%s1062 + $0x93] sm:$0xff]
        %v1520 = vld [vmem:[%s1062 + $0x9b] sm:$0xff]
        %v1521 = vld [vmem:[%s1062 + $0xab] sm:$0xff]
        %v1522 = vld [vmem:[%s1062 + $0xb3] sm:$0xff]
        %v1523 = vld [vmem:[%s1062 + $0xc3] sm:$0xff]
        %v1524 = vld [vmem:[%s1062 + $0xcb] sm:$0xff]
        %v1525 = vld [vmem:[%s1062 + $0xdb] sm:$0xff]
        %v1526 = vld [vmem:[%s1062 + $0xe3] sm:$0xff]
        %s1527 = scalar_lea.vmem [#allocation6], 640
        %v1528 = vld [vmem:[%s1527] sm:$0xff]
        %v1529 = vld [vmem:[%s1527 + $0x8] sm:$0xff]
        %v1530 = vld [vmem:[%s1527 + $0x10] sm:$0xff]
        %v1531 = vld [vmem:[%s1527 + $0x18] sm:$0xff]
        %v1532 = vld [vmem:[%s1527 + $0x20] sm:$0xff]
        %v1533 = vld [vmem:[%s1527 + $0x28] sm:$0xff]
        %v1534 = vld [vmem:[%s1527 + $0x30] sm:$0xff]
        %v1535 = vld [vmem:[%s1527 + $0x38] sm:$0xff]
        %v1536 = vld [vmem:[%s1527 + $0x40] sm:$0xff]
        %v1537 = vld [vmem:[%s1527 + $0x48] sm:$0xff]
        %v1538 = vld [vmem:[%s1527 + $0x50] sm:$0xff]
        %v1539 = vld [vmem:[%s1527 + $0x58] sm:$0xff]
        %v1540 = vld [vmem:[%s1527 + $0x60] sm:$0xff]
        %v1541 = vld [vmem:[%s1527 + $0x68] sm:$0xff]
        %v1542 = vld [vmem:[%s1527 + $0x70] sm:$0xff]
        %v1543 = vld [vmem:[%s1527 + $0x78] sm:$0xff]
        %1544 = vmatprep.subr.mxu0 0.0
        %1545 = vmatpush1.msra.mxu0 %v1528
        %1546 = vmatprep.subr.mxu0 0.0
        %1547 = vmatpush1.msra.mxu0 %v1529
        %1548 = vmatprep.subr.mxu0 0.0
        %1549 = vmatpush1.msra.mxu0 %v1530
        %1550 = vmatprep.subr.mxu0 0.0
        %1551 = vmatpush1.msra.mxu0 %v1531
        %1552 = vmatprep.subr.mxu0 0.0
        %1553 = vmatpush1.msra.mxu0 %v1532
        %1554 = vmatprep.subr.mxu0 0.0
        %1555 = vmatpush1.msra.mxu0 %v1533
        %1556 = vmatprep.subr.mxu0 0.0
        %1557 = vmatpush1.msra.mxu0 %v1534
        %1558 = vmatprep.subr.mxu0 0.0
        %1559 = vmatpush1.msra.mxu0 %v1535
        %1560 = vmatprep.subr.mxu0 0.0
        %1561 = vmatpush1.msra.mxu0 %v1536
        %1562 = vmatprep.subr.mxu0 0.0
        %1563 = vmatpush1.msra.mxu0 %v1537
        %1564 = vmatprep.subr.mxu0 0.0
        %1565 = vmatpush1.msra.mxu0 %v1538
        %1566 = vmatprep.subr.mxu0 0.0
        %1567 = vmatpush1.msra.mxu0 %v1539
        %1568 = vmatprep.subr.mxu0 0.0
        %1569 = vmatpush1.msra.mxu0 %v1540
        %1570 = vmatprep.subr.mxu0 0.0
        %1571 = vmatpush1.msra.mxu0 %v1541
        %1572 = vmatprep.subr.mxu0 0.0
        %1573 = vmatpush1.msra.mxu0 %v1542
        %1574 = vmatprep.subr.mxu0 0.0
        %1575 = vmatpush1.msra.mxu0 %v1543
        %1576 = vmatprep.subr.mxu0 0.0
        %1577 = vmatpush1.msra.mxu0 0.0
        %1578 = vmatprep.subr.mxu0 0.0
        %1579 = vmatpush1.msra.mxu0 0.0
        %1580 = vmatprep.subr.mxu0 0.0
        %1581 = vmatpush1.msra.mxu0 0.0
        %1582 = vmatprep.subr.mxu0 0.0
        %1583 = vmatpush1.msra.mxu0 0.0
        %1584 = vmatprep.subr.mxu0 0.0
        %1585 = vmatpush1.msra.mxu0 0.0
        %1586 = vmatprep.subr.mxu0 0.0
        %1587 = vmatpush1.msra.mxu0 0.0
        %1588 = vmatprep.subr.mxu0 0.0
        %1589 = vmatpush1.msra.mxu0 0.0
        %1590 = vmatprep.subr.mxu0 0.0
        %1591 = vmatpush1.msra.mxu0 0.0
        %1592 = vmatprep.subr.mxu0 0.0
        %1593 = vmatpush1.msra.mxu0 0.0
        %1594 = vmatprep.subr.mxu0 0.0
        %1595 = vmatpush1.msra.mxu0 0.0
        %1596 = vmatprep.subr.mxu0 0.0
        %1597 = vmatpush1.msra.mxu0 0.0
        %1598 = vmatprep.subr.mxu0 0.0
        %1599 = vmatpush1.msra.mxu0 0.0
        %1600 = vmatprep.subr.mxu0 0.0
        %1601 = vmatpush1.msra.mxu0 0.0
        %1602 = vmatprep.subr.mxu0 0.0
        %1603 = vmatpush1.msra.mxu0 0.0
        %1604 = vmatprep.subr.mxu0 0.0
        %1605 = vmatpush1.msra.mxu0 0.0
        %1606 = vmatprep.subr.mxu0 0.0
        %1607 = vmatpush1.msra.mxu0 0.0
        %1608 = vmatprep.mubr.f32.mxu0 0.0
        %1609 = vmatmul.mubr.f32.gmra.mrb[0].mxu0 %v1507
        %v1610 = vpop.f32.mrb[0].mxu0
        %v1611 = vadd.f32 0.0, %v1610
        %v1612 = vpop.f32.mrb[0].mxu0
        %1613 = vmatprep.mubr.f32.mxu0 0.0
        %1614 = vmatmul.mubr.f32.gmra.mrb[0].mxu0 %v1508
        %v1615 = vpop.f32.mrb[0].mxu0
        %v1616 = vadd.f32 0.0, %v1615
        %v1617 = vpop.f32.mrb[0].mxu0
        %1618 = vmatprep.mubr.f32.mxu0 0.0
        %1619 = vmatmul.mubr.f32.gmra.mrb[0].mxu0 %v1509
        %v1620 = vpop.f32.mrb[0].mxu0
        %v1621 = vadd.f32 0.0, %v1620
        %v1622 = vpop.f32.mrb[0].mxu0
        %1623 = vmatprep.mubr.f32.mxu0 0.0
        %1624 = vmatmul.mubr.f32.gmra.mrb[0].mxu0 %v1510
        %v1625 = vpop.f32.mrb[0].mxu0
        %v1626 = vadd.f32 0.0, %v1625
        %v1627 = vpop.f32.mrb[0].mxu0
        %1628 = vmatprep.mubr.f32.mxu0 0.0
        %1629 = vmatmul.mubr.f32.gmra.mrb[0].mxu0 %v1511
        %v1630 = vpop.f32.mrb[0].mxu0
        %v1631 = vadd.f32 0.0, %v1630
        %v1632 = vpop.f32.mrb[0].mxu0
        %1633 = vmatprep.mubr.f32.mxu0 0.0
        %1634 = vmatmul.mubr.f32.gmra.mrb[0].mxu0 %v1512
        %v1635 = vpop.f32.mrb[0].mxu0
        %v1636 = vadd.f32 0.0, %v1635
        %v1637 = vpop.f32.mrb[0].mxu0
        %1638 = vmatprep.mubr.f32.mxu0 0.0
        %1639 = vmatmul.mubr.f32.gmra.mrb[0].mxu0 %v1513
        %v1640 = vpop.f32.mrb[0].mxu0
        %v1641 = vadd.f32 0.0, %v1640
        %v1642 = vpop.f32.mrb[0].mxu0
        %1643 = vmatprep.mubr.f32.mxu0 0.0
        %1644 = vmatmul.mubr.f32.gmra.mrb[0].mxu0 %v1514
        %v1645 = vpop.f32.mrb[0].mxu0
        %v1646 = vadd.f32 0.0, %v1645
        %v1647 = vpop.f32.mrb[0].mxu0
        %1648 = vmatprep.mubr.f32.mxu0 0.0
        %1649 = vmatmul.mubr.f32.gmra.mrb[0].mxu0 %v1515
        %v1650 = vpop.f32.mrb[0].mxu0
        %v1651 = vadd.f32 0.0, %v1650
        %v1652 = vpop.f32.mrb[0].mxu0
        %1653 = vmatprep.mubr.f32.mxu0 0.0
        %1654 = vmatmul.mubr.f32.gmra.mrb[0].mxu0 %v1516
        %v1655 = vpop.f32.mrb[0].mxu0
        %v1656 = vadd.f32 0.0, %v1655
        %v1657 = vpop.f32.mrb[0].mxu0
        %1658 = vmatprep.mubr.f32.mxu0 0.0
        %1659 = vmatmul.mubr.f32.gmra.mrb[0].mxu0 %v1517
        %v1660 = vpop.f32.mrb[0].mxu0
        %v1661 = vadd.f32 0.0, %v1660
        %v1662 = vpop.f32.mrb[0].mxu0
        %1663 = vmatprep.mubr.f32.mxu0 0.0
        %1664 = vmatmul.mubr.f32.gmra.mrb[0].mxu0 %v1518
        %v1665 = vpop.f32.mrb[0].mxu0
        %v1666 = vadd.f32 0.0, %v1665
        %v1667 = vpop.f32.mrb[0].mxu0
        %1668 = vmatprep.mubr.f32.mxu0 0.0
        %1669 = vmatmul.mubr.f32.gmra.mrb[0].mxu0 %v1519
        %v1670 = vpop.f32.mrb[0].mxu0
        %v1671 = vadd.f32 0.0, %v1670
        %v1672 = vpop.f32.mrb[0].mxu0
        %1673 = vmatprep.mubr.f32.mxu0 0.0
        %1674 = vmatmul.mubr.f32.gmra.mrb[0].mxu0 %v1520
        %v1675 = vpop.f32.mrb[0].mxu0
        %v1676 = vadd.f32 0.0, %v1675
        %v1677 = vpop.f32.mrb[0].mxu0
        %1678 = vmatprep.mubr.f32.mxu0 0.0
        %1679 = vmatmul.mubr.f32.gmra.mrb[0].mxu0 %v1521
        %v1680 = vpop.f32.mrb[0].mxu0
        %v1681 = vadd.f32 0.0, %v1680
        %v1682 = vpop.f32.mrb[0].mxu0
        %1683 = vmatprep.mubr.f32.mxu0 0.0
        %1684 = vmatmul.mubr.f32.gmra.mrb[0].mxu0 %v1522
        %v1685 = vpop.f32.mrb[0].mxu0
        %v1686 = vadd.f32 0.0, %v1685
        %v1687 = vpop.f32.mrb[0].mxu0
        %1688 = vmatprep.mubr.f32.mxu0 0.0
        %1689 = vmatmul.mubr.f32.gmra.mrb[0].mxu0 %v1523
        %v1690 = vpop.f32.mrb[0].mxu0
        %v1691 = vadd.f32 0.0, %v1690
        %v1692 = vpop.f32.mrb[0].mxu0
        %1693 = vmatprep.mubr.f32.mxu0 0.0
        %1694 = vmatmul.mubr.f32.gmra.mrb[0].mxu0 %v1524
        %v1695 = vpop.f32.mrb[0].mxu0
        %v1696 = vadd.f32 0.0, %v1695
        %v1697 = vpop.f32.mrb[0].mxu0
        %1698 = vmatprep.mubr.f32.mxu0 0.0
        %1699 = vmatmul.mubr.f32.gmra.mrb[0].mxu0 %v1525
        %v1700 = vpop.f32.mrb[0].mxu0
        %v1701 = vadd.f32 0.0, %v1700
        %v1702 = vpop.f32.mrb[0].mxu0
        %1703 = vmatprep.mubr.f32.mxu0 0.0
        %1704 = vmatmul.mubr.f32.gmra.mrb[0].mxu0 %v1526
        %v1705 = vpop.f32.mrb[0].mxu0
        %v1706 = vadd.f32 0.0, %v1705
        %v1707 = vpop.f32.mrb[0].mxu0
        %1708 = vdwg.mxu0
        %v1709 = vadd.f32 %v1487, %v1611
        %v1710 = vadd.f32 %v1488, %v1616
        %v1711 = vadd.f32 %v1489, %v1621
        %v1712 = vadd.f32 %v1490, %v1626
        %v1713 = vadd.f32 %v1491, %v1631
        %v1714 = vadd.f32 %v1492, %v1636
        %v1715 = vadd.f32 %v1493, %v1641
        %v1716 = vadd.f32 %v1494, %v1646
        %v1717 = vadd.f32 %v1495, %v1651
        %v1718 = vadd.f32 %v1496, %v1656
        %v1719 = vadd.f32 %v1497, %v1661
        %v1720 = vadd.f32 %v1498, %v1666
        %v1721 = vadd.f32 %v1499, %v1671
        %v1722 = vadd.f32 %v1500, %v1676
        %v1723 = vadd.f32 %v1501, %v1681
        %v1724 = vadd.f32 %v1502, %v1686
        %v1725 = vadd.f32 %v1503, %v1691
        %v1726 = vadd.f32 %v1504, %v1696
        %v1727 = vadd.f32 %v1505, %v1701
        %v1728 = vadd.f32 %v1506, %v1706
        %s1729 = sadd.s32 %s432, 2
        %s1730 = smul.u32 %s1729, 24
        %s1731 = scalar_lea.vmem %s368, %s1730 [#allocation3]
        %v1732 = vld [vmem:[%s1731 + $0x1] sm:$0xff]
        %v1733 = vld [vmem:[%s1731 + $0x9] sm:$0xff]
        %v1734 = vld [vmem:[%s1731 + $0x19] sm:$0xff]
        %v1735 = vld [vmem:[%s1731 + $0x21] sm:$0xff]
        %v1736 = vld [vmem:[%s1731 + $0x31] sm:$0xff]
        %v1737 = vld [vmem:[%s1731 + $0x39] sm:$0xff]
        %v1738 = vld [vmem:[%s1731 + $0x49] sm:$0xff]
        %v1739 = vld [vmem:[%s1731 + $0x51] sm:$0xff]
        %v1740 = vld [vmem:[%s1731 + $0x61] sm:$0xff]
        %v1741 = vld [vmem:[%s1731 + $0x69] sm:$0xff]
        %v1742 = vld [vmem:[%s1731 + $0x79] sm:$0xff]
        %v1743 = vld [vmem:[%s1731 + $0x81] sm:$0xff]
        %v1744 = vld [vmem:[%s1731 + $0x91] sm:$0xff]
        %v1745 = vld [vmem:[%s1731 + $0x99] sm:$0xff]
        %v1746 = vld [vmem:[%s1731 + $0xa9] sm:$0xff]
        %v1747 = vld [vmem:[%s1731 + $0xb1] sm:$0xff]
        %v1748 = vld [vmem:[%s1731 + $0xc1] sm:$0xff]
        %v1749 = vld [vmem:[%s1731 + $0xc9] sm:$0xff]
        %v1750 = vld [vmem:[%s1731 + $0xd9] sm:$0xff]
        %v1751 = vld [vmem:[%s1731 + $0xe1] sm:$0xff]
        %s1752 = scalar_lea.vmem [#allocation6], 768
        %v1753 = vld [vmem:[%s1752] sm:$0xff]
        %v1754 = vld [vmem:[%s1752 + $0x8] sm:$0xff]
        %v1755 = vld [vmem:[%s1752 + $0x10] sm:$0xff]
        %v1756 = vld [vmem:[%s1752 + $0x18] sm:$0xff]
        %v1757 = vld [vmem:[%s1752 + $0x20] sm:$0xff]
        %v1758 = vld [vmem:[%s1752 + $0x28] sm:$0xff]
        %v1759 = vld [vmem:[%s1752 + $0x30] sm:$0xff]
        %v1760 = vld [vmem:[%s1752 + $0x38] sm:$0xff]
        %v1761 = vld [vmem:[%s1752 + $0x40] sm:$0xff]
        %v1762 = vld [vmem:[%s1752 + $0x48] sm:$0xff]
        %v1763 = vld [vmem:[%s1752 + $0x50] sm:$0xff]
        %v1764 = vld [vmem:[%s1752 + $0x58] sm:$0xff]
        %v1765 = vld [vmem:[%s1752 + $0x60] sm:$0xff]
        %v1766 = vld [vmem:[%s1752 + $0x68] sm:$0xff]
        %v1767 = vld [vmem:[%s1752 + $0x70] sm:$0xff]
        %v1768 = vld [vmem:[%s1752 + $0x78] sm:$0xff]
        %1769 = vmatprep.subr.mxu0 0.0
        %1770 = vmatpush1.msra.mxu0 %v1753
        %1771 = vmatprep.subr.mxu0 0.0
        %1772 = vmatpush1.msra.mxu0 %v1754
        %1773 = vmatprep.subr.mxu0 0.0
        %1774 = vmatpush1.msra.mxu0 %v1755
        %1775 = vmatprep.subr.mxu0 0.0
        %1776 = vmatpush1.msra.mxu0 %v1756
        %1777 = vmatprep.subr.mxu0 0.0
        %1778 = vmatpush1.msra.mxu0 %v1757
        %1779 = vmatprep.subr.mxu0 0.0
        %1780 = vmatpush1.msra.mxu0 %v1758
        %1781 = vmatprep.subr.mxu0 0.0
        %1782 = vmatpush1.msra.mxu0 %v1759
        %1783 = vmatprep.subr.mxu0 0.0
        %1784 = vmatpush1.msra.mxu0 %v1760
        %1785 = vmatprep.subr.mxu0 0.0
        %1786 = vmatpush1.msra.mxu0 %v1761
        %1787 = vmatprep.subr.mxu0 0.0
        %1788 = vmatpush1.msra.mxu0 %v1762
        %1789 = vmatprep.subr.mxu0 0.0
        %1790 = vmatpush1.msra.mxu0 %v1763
        %1791 = vmatprep.subr.mxu0 0.0
        %1792 = vmatpush1.msra.mxu0 %v1764
        %1793 = vmatprep.subr.mxu0 0.0
        %1794 = vmatpush1.msra.mxu0 %v1765
        %1795 = vmatprep.subr.mxu0 0.0
        %1796 = vmatpush1.msra.mxu0 %v1766
        %1797 = vmatprep.subr.mxu0 0.0
        %1798 = vmatpush1.msra.mxu0 %v1767
        %1799 = vmatprep.subr.mxu0 0.0
        %1800 = vmatpush1.msra.mxu0 %v1768
        %1801 = vmatprep.subr.mxu0 0.0
        %1802 = vmatpush1.msra.mxu0 0.0
        %1803 = vmatprep.subr.mxu0 0.0
        %1804 = vmatpush1.msra.mxu0 0.0
        %1805 = vmatprep.subr.mxu0 0.0
        %1806 = vmatpush1.msra.mxu0 0.0
        %1807 = vmatprep.subr.mxu0 0.0
        %1808 = vmatpush1.msra.mxu0 0.0
        %1809 = vmatprep.subr.mxu0 0.0
        %1810 = vmatpush1.msra.mxu0 0.0
        %1811 = vmatprep.subr.mxu0 0.0
        %1812 = vmatpush1.msra.mxu0 0.0
        %1813 = vmatprep.subr.mxu0 0.0
        %1814 = vmatpush1.msra.mxu0 0.0
        %1815 = vmatprep.subr.mxu0 0.0
        %1816 = vmatpush1.msra.mxu0 0.0
        %1817 = vmatprep.subr.mxu0 0.0
        %1818 = vmatpush1.msra.mxu0 0.0
        %1819 = vmatprep.subr.mxu0 0.0
        %1820 = vmatpush1.msra.mxu0 0.0
        %1821 = vmatprep.subr.mxu0 0.0
        %1822 = vmatpush1.msra.mxu0 0.0
        %1823 = vmatprep.subr.mxu0 0.0
        %1824 = vmatpush1.msra.mxu0 0.0
        %1825 = vmatprep.subr.mxu0 0.0
        %1826 = vmatpush1.msra.mxu0 0.0
        %1827 = vmatprep.subr.mxu0 0.0
        %1828 = vmatpush1.msra.mxu0 0.0
        %1829 = vmatprep.subr.mxu0 0.0
        %1830 = vmatpush1.msra.mxu0 0.0
        %1831 = vmatprep.subr.mxu0 0.0
        %1832 = vmatpush1.msra.mxu0 0.0
        %1833 = vmatprep.mubr.f32.mxu0 0.0
        %1834 = vmatmul.mubr.f32.gmra.mrb[0].mxu0 %v1732
        %v1835 = vpop.f32.mrb[0].mxu0
        %v1836 = vadd.f32 0.0, %v1835
        %v1837 = vpop.f32.mrb[0].mxu0
        %1838 = vmatprep.mubr.f32.mxu0 0.0
        %1839 = vmatmul.mubr.f32.gmra.mrb[0].mxu0 %v1733
        %v1840 = vpop.f32.mrb[0].mxu0
        %v1841 = vadd.f32 0.0, %v1840
        %v1842 = vpop.f32.mrb[0].mxu0
        %1843 = vmatprep.mubr.f32.mxu0 0.0
        %1844 = vmatmul.mubr.f32.gmra.mrb[0].mxu0 %v1734
        %v1845 = vpop.f32.mrb[0].mxu0
        %v1846 = vadd.f32 0.0, %v1845
        %v1847 = vpop.f32.mrb[0].mxu0
        %1848 = vmatprep.mubr.f32.mxu0 0.0
        %1849 = vmatmul.mubr.f32.gmra.mrb[0].mxu0 %v1735
        %v1850 = vpop.f32.mrb[0].mxu0
        %v1851 = vadd.f32 0.0, %v1850
        %v1852 = vpop.f32.mrb[0].mxu0
        %1853 = vmatprep.mubr.f32.mxu0 0.0
        %1854 = vmatmul.mubr.f32.gmra.mrb[0].mxu0 %v1736
        %v1855 = vpop.f32.mrb[0].mxu0
        %v1856 = vadd.f32 0.0, %v1855
        %v1857 = vpop.f32.mrb[0].mxu0
        %1858 = vmatprep.mubr.f32.mxu0 0.0
        %1859 = vmatmul.mubr.f32.gmra.mrb[0].mxu0 %v1737
        %v1860 = vpop.f32.mrb[0].mxu0
        %v1861 = vadd.f32 0.0, %v1860
        %v1862 = vpop.f32.mrb[0].mxu0
        %1863 = vmatprep.mubr.f32.mxu0 0.0
        %1864 = vmatmul.mubr.f32.gmra.mrb[0].mxu0 %v1738
        %v1865 = vpop.f32.mrb[0].mxu0
        %v1866 = vadd.f32 0.0, %v1865
        %v1867 = vpop.f32.mrb[0].mxu0
        %1868 = vmatprep.mubr.f32.mxu0 0.0
        %1869 = vmatmul.mubr.f32.gmra.mrb[0].mxu0 %v1739
        %v1870 = vpop.f32.mrb[0].mxu0
        %v1871 = vadd.f32 0.0, %v1870
        %v1872 = vpop.f32.mrb[0].mxu0
        %1873 = vmatprep.mubr.f32.mxu0 0.0
        %1874 = vmatmul.mubr.f32.gmra.mrb[0].mxu0 %v1740
        %v1875 = vpop.f32.mrb[0].mxu0
        %v1876 = vadd.f32 0.0, %v1875
        %v1877 = vpop.f32.mrb[0].mxu0
        %1878 = vmatprep.mubr.f32.mxu0 0.0
        %1879 = vmatmul.mubr.f32.gmra.mrb[0].mxu0 %v1741
        %v1880 = vpop.f32.mrb[0].mxu0
        %v1881 = vadd.f32 0.0, %v1880
        %v1882 = vpop.f32.mrb[0].mxu0
        %1883 = vmatprep.mubr.f32.mxu0 0.0
        %1884 = vmatmul.mubr.f32.gmra.mrb[0].mxu0 %v1742
        %v1885 = vpop.f32.mrb[0].mxu0
        %v1886 = vadd.f32 0.0, %v1885
        %v1887 = vpop.f32.mrb[0].mxu0
        %1888 = vmatprep.mubr.f32.mxu0 0.0
        %1889 = vmatmul.mubr.f32.gmra.mrb[0].mxu0 %v1743
        %v1890 = vpop.f32.mrb[0].mxu0
        %v1891 = vadd.f32 0.0, %v1890
        %v1892 = vpop.f32.mrb[0].mxu0
        %1893 = vmatprep.mubr.f32.mxu0 0.0
        %1894 = vmatmul.mubr.f32.gmra.mrb[0].mxu0 %v1744
        %v1895 = vpop.f32.mrb[0].mxu0
        %v1896 = vadd.f32 0.0, %v1895
        %v1897 = vpop.f32.mrb[0].mxu0
        %1898 = vmatprep.mubr.f32.mxu0 0.0
        %1899 = vmatmul.mubr.f32.gmra.mrb[0].mxu0 %v1745
        %v1900 = vpop.f32.mrb[0].mxu0
        %v1901 = vadd.f32 0.0, %v1900
        %v1902 = vpop.f32.mrb[0].mxu0
        %1903 = vmatprep.mubr.f32.mxu0 0.0
        %1904 = vmatmul.mubr.f32.gmra.mrb[0].mxu0 %v1746
        %v1905 = vpop.f32.mrb[0].mxu0
        %v1906 = vadd.f32 0.0, %v1905
        %v1907 = vpop.f32.mrb[0].mxu0
        %1908 = vmatprep.mubr.f32.mxu0 0.0
        %1909 = vmatmul.mubr.f32.gmra.mrb[0].mxu0 %v1747
        %v1910 = vpop.f32.mrb[0].mxu0
        %v1911 = vadd.f32 0.0, %v1910
        %v1912 = vpop.f32.mrb[0].mxu0
        %1913 = vmatprep.mubr.f32.mxu0 0.0
        %1914 = vmatmul.mubr.f32.gmra.mrb[0].mxu0 %v1748
        %v1915 = vpop.f32.mrb[0].mxu0
        %v1916 = vadd.f32 0.0, %v1915
        %v1917 = vpop.f32.mrb[0].mxu0
        %1918 = vmatprep.mubr.f32.mxu0 0.0
        %1919 = vmatmul.mubr.f32.gmra.mrb[0].mxu0 %v1749
        %v1920 = vpop.f32.mrb[0].mxu0
        %v1921 = vadd.f32 0.0, %v1920
        %v1922 = vpop.f32.mrb[0].mxu0
        %1923 = vmatprep.mubr.f32.mxu0 0.0
        %1924 = vmatmul.mubr.f32.gmra.mrb[0].mxu0 %v1750
        %v1925 = vpop.f32.mrb[0].mxu0
        %v1926 = vadd.f32 0.0, %v1925
        %v1927 = vpop.f32.mrb[0].mxu0
        %1928 = vmatprep.mubr.f32.mxu0 0.0
        %1929 = vmatmul.mubr.f32.gmra.mrb[0].mxu0 %v1751
        %v1930 = vpop.f32.mrb[0].mxu0
        %v1931 = vadd.f32 0.0, %v1930
        %v1932 = vpop.f32.mrb[0].mxu0
        %1933 = vdwg.mxu0
        %v1934 = vadd.f32 %v1709, %v1836
        %v1935 = vadd.f32 %v1710, %v1841
        %v1936 = vadd.f32 %v1711, %v1846
        %v1937 = vadd.f32 %v1712, %v1851
        %v1938 = vadd.f32 %v1713, %v1856
        %v1939 = vadd.f32 %v1714, %v1861
        %v1940 = vadd.f32 %v1715, %v1866
        %v1941 = vadd.f32 %v1716, %v1871
        %v1942 = vadd.f32 %v1717, %v1876
        %v1943 = vadd.f32 %v1718, %v1881
        %v1944 = vadd.f32 %v1719, %v1886
        %v1945 = vadd.f32 %v1720, %v1891
        %v1946 = vadd.f32 %v1721, %v1896
        %v1947 = vadd.f32 %v1722, %v1901
        %v1948 = vadd.f32 %v1723, %v1906
        %v1949 = vadd.f32 %v1724, %v1911
        %v1950 = vadd.f32 %v1725, %v1916
        %v1951 = vadd.f32 %v1726, %v1921
        %v1952 = vadd.f32 %v1727, %v1926
        %v1953 = vadd.f32 %v1728, %v1931
        %v1954 = vld [vmem:[%s1731 + $0x2] sm:$0xff]
        %v1955 = vld [vmem:[%s1731 + $0xa] sm:$0xff]
        %v1956 = vld [vmem:[%s1731 + $0x1a] sm:$0xff]
        %v1957 = vld [vmem:[%s1731 + $0x22] sm:$0xff]
        %v1958 = vld [vmem:[%s1731 + $0x32] sm:$0xff]
        %v1959 = vld [vmem:[%s1731 + $0x3a] sm:$0xff]
        %v1960 = vld [vmem:[%s1731 + $0x4a] sm:$0xff]
        %v1961 = vld [vmem:[%s1731 + $0x52] sm:$0xff]
        %v1962 = vld [vmem:[%s1731 + $0x62] sm:$0xff]
        %v1963 = vld [vmem:[%s1731 + $0x6a] sm:$0xff]
        %v1964 = vld [vmem:[%s1731 + $0x7a] sm:$0xff]
        %v1965 = vld [vmem:[%s1731 + $0x82] sm:$0xff]
        %v1966 = vld [vmem:[%s1731 + $0x92] sm:$0xff]
        %v1967 = vld [vmem:[%s1731 + $0x9a] sm:$0xff]
        %v1968 = vld [vmem:[%s1731 + $0xaa] sm:$0xff]
        %v1969 = vld [vmem:[%s1731 + $0xb2] sm:$0xff]
        %v1970 = vld [vmem:[%s1731 + $0xc2] sm:$0xff]
        %v1971 = vld [vmem:[%s1731 + $0xca] sm:$0xff]
        %v1972 = vld [vmem:[%s1731 + $0xda] sm:$0xff]
        %v1973 = vld [vmem:[%s1731 + $0xe2] sm:$0xff]
        %s1974 = scalar_lea.vmem [#allocation6], 896
        %v1975 = vld [vmem:[%s1974] sm:$0xff]
        %v1976 = vld [vmem:[%s1974 + $0x8] sm:$0xff]
        %v1977 = vld [vmem:[%s1974 + $0x10] sm:$0xff]
        %v1978 = vld [vmem:[%s1974 + $0x18] sm:$0xff]
        %v1979 = vld [vmem:[%s1974 + $0x20] sm:$0xff]
        %v1980 = vld [vmem:[%s1974 + $0x28] sm:$0xff]
        %v1981 = vld [vmem:[%s1974 + $0x30] sm:$0xff]
        %v1982 = vld [vmem:[%s1974 + $0x38] sm:$0xff]
        %v1983 = vld [vmem:[%s1974 + $0x40] sm:$0xff]
        %v1984 = vld [vmem:[%s1974 + $0x48] sm:$0xff]
        %v1985 = vld [vmem:[%s1974 + $0x50] sm:$0xff]
        %v1986 = vld [vmem:[%s1974 + $0x58] sm:$0xff]
        %v1987 = vld [vmem:[%s1974 + $0x60] sm:$0xff]
        %v1988 = vld [vmem:[%s1974 + $0x68] sm:$0xff]
        %v1989 = vld [vmem:[%s1974 + $0x70] sm:$0xff]
        %v1990 = vld [vmem:[%s1974 + $0x78] sm:$0xff]
        %1991 = vmatprep.subr.mxu0 0.0
        %1992 = vmatpush1.msra.mxu0 %v1975
        %1993 = vmatprep.subr.mxu0 0.0
        %1994 = vmatpush1.msra.mxu0 %v1976
        %1995 = vmatprep.subr.mxu0 0.0
        %1996 = vmatpush1.msra.mxu0 %v1977
        %1997 = vmatprep.subr.mxu0 0.0
        %1998 = vmatpush1.msra.mxu0 %v1978
        %1999 = vmatprep.subr.mxu0 0.0
        %2000 = vmatpush1.msra.mxu0 %v1979
        %2001 = vmatprep.subr.mxu0 0.0
        %2002 = vmatpush1.msra.mxu0 %v1980
        %2003 = vmatprep.subr.mxu0 0.0
        %2004 = vmatpush1.msra.mxu0 %v1981
        %2005 = vmatprep.subr.mxu0 0.0
        %2006 = vmatpush1.msra.mxu0 %v1982
        %2007 = vmatprep.subr.mxu0 0.0
        %2008 = vmatpush1.msra.mxu0 %v1983
        %2009 = vmatprep.subr.mxu0 0.0
        %2010 = vmatpush1.msra.mxu0 %v1984
        %2011 = vmatprep.subr.mxu0 0.0
        %2012 = vmatpush1.msra.mxu0 %v1985
        %2013 = vmatprep.subr.mxu0 0.0
        %2014 = vmatpush1.msra.mxu0 %v1986
        %2015 = vmatprep.subr.mxu0 0.0
        %2016 = vmatpush1.msra.mxu0 %v1987
        %2017 = vmatprep.subr.mxu0 0.0
        %2018 = vmatpush1.msra.mxu0 %v1988
        %2019 = vmatprep.subr.mxu0 0.0
        %2020 = vmatpush1.msra.mxu0 %v1989
        %2021 = vmatprep.subr.mxu0 0.0
        %2022 = vmatpush1.msra.mxu0 %v1990
        %2023 = vmatprep.subr.mxu0 0.0
        %2024 = vmatpush1.msra.mxu0 0.0
        %2025 = vmatprep.subr.mxu0 0.0
        %2026 = vmatpush1.msra.mxu0 0.0
        %2027 = vmatprep.subr.mxu0 0.0
        %2028 = vmatpush1.msra.mxu0 0.0
        %2029 = vmatprep.subr.mxu0 0.0
        %2030 = vmatpush1.msra.mxu0 0.0
        %2031 = vmatprep.subr.mxu0 0.0
        %2032 = vmatpush1.msra.mxu0 0.0
        %2033 = vmatprep.subr.mxu0 0.0
        %2034 = vmatpush1.msra.mxu0 0.0
        %2035 = vmatprep.subr.mxu0 0.0
        %2036 = vmatpush1.msra.mxu0 0.0
        %2037 = vmatprep.subr.mxu0 0.0
        %2038 = vmatpush1.msra.mxu0 0.0
        %2039 = vmatprep.subr.mxu0 0.0
        %2040 = vmatpush1.msra.mxu0 0.0
        %2041 = vmatprep.subr.mxu0 0.0
        %2042 = vmatpush1.msra.mxu0 0.0
        %2043 = vmatprep.subr.mxu0 0.0
        %2044 = vmatpush1.msra.mxu0 0.0
        %2045 = vmatprep.subr.mxu0 0.0
        %2046 = vmatpush1.msra.mxu0 0.0
        %2047 = vmatprep.subr.mxu0 0.0
        %2048 = vmatpush1.msra.mxu0 0.0
        %2049 = vmatprep.subr.mxu0 0.0
        %2050 = vmatpush1.msra.mxu0 0.0
        %2051 = vmatprep.subr.mxu0 0.0
        %2052 = vmatpush1.msra.mxu0 0.0
        %2053 = vmatprep.subr.mxu0 0.0
        %2054 = vmatpush1.msra.mxu0 0.0
        %2055 = vmatprep.mubr.f32.mxu0 0.0
        %2056 = vmatmul.mubr.f32.gmra.mrb[0].mxu0 %v1954
        %v2057 = vpop.f32.mrb[0].mxu0
        %v2058 = vadd.f32 0.0, %v2057
        %v2059 = vpop.f32.mrb[0].mxu0
        %2060 = vmatprep.mubr.f32.mxu0 0.0
        %2061 = vmatmul.mubr.f32.gmra.mrb[0].mxu0 %v1955
        %v2062 = vpop.f32.mrb[0].mxu0
        %v2063 = vadd.f32 0.0, %v2062
        %v2064 = vpop.f32.mrb[0].mxu0
        %2065 = vmatprep.mubr.f32.mxu0 0.0
        %2066 = vmatmul.mubr.f32.gmra.mrb[0].mxu0 %v1956
        %v2067 = vpop.f32.mrb[0].mxu0
        %v2068 = vadd.f32 0.0, %v2067
        %v2069 = vpop.f32.mrb[0].mxu0
        %2070 = vmatprep.mubr.f32.mxu0 0.0
        %2071 = vmatmul.mubr.f32.gmra.mrb[0].mxu0 %v1957
        %v2072 = vpop.f32.mrb[0].mxu0
        %v2073 = vadd.f32 0.0, %v2072
        %v2074 = vpop.f32.mrb[0].mxu0
        %2075 = vmatprep.mubr.f32.mxu0 0.0
        %2076 = vmatmul.mubr.f32.gmra.mrb[0].mxu0 %v1958
        %v2077 = vpop.f32.mrb[0].mxu0
        %v2078 = vadd.f32 0.0, %v2077
        %v2079 = vpop.f32.mrb[0].mxu0
        %2080 = vmatprep.mubr.f32.mxu0 0.0
        %2081 = vmatmul.mubr.f32.gmra.mrb[0].mxu0 %v1959
        %v2082 = vpop.f32.mrb[0].mxu0
        %v2083 = vadd.f32 0.0, %v2082
        %v2084 = vpop.f32.mrb[0].mxu0
        %2085 = vmatprep.mubr.f32.mxu0 0.0
        %2086 = vmatmul.mubr.f32.gmra.mrb[0].mxu0 %v1960
        %v2087 = vpop.f32.mrb[0].mxu0
        %v2088 = vadd.f32 0.0, %v2087
        %v2089 = vpop.f32.mrb[0].mxu0
        %2090 = vmatprep.mubr.f32.mxu0 0.0
        %2091 = vmatmul.mubr.f32.gmra.mrb[0].mxu0 %v1961
        %v2092 = vpop.f32.mrb[0].mxu0
        %v2093 = vadd.f32 0.0, %v2092
        %v2094 = vpop.f32.mrb[0].mxu0
        %2095 = vmatprep.mubr.f32.mxu0 0.0
        %2096 = vmatmul.mubr.f32.gmra.mrb[0].mxu0 %v1962
        %v2097 = vpop.f32.mrb[0].mxu0
        %v2098 = vadd.f32 0.0, %v2097
        %v2099 = vpop.f32.mrb[0].mxu0
        %2100 = vmatprep.mubr.f32.mxu0 0.0
        %2101 = vmatmul.mubr.f32.gmra.mrb[0].mxu0 %v1963
        %v2102 = vpop.f32.mrb[0].mxu0
        %v2103 = vadd.f32 0.0, %v2102
        %v2104 = vpop.f32.mrb[0].mxu0
        %2105 = vmatprep.mubr.f32.mxu0 0.0
        %2106 = vmatmul.mubr.f32.gmra.mrb[0].mxu0 %v1964
        %v2107 = vpop.f32.mrb[0].mxu0
        %v2108 = vadd.f32 0.0, %v2107
        %v2109 = vpop.f32.mrb[0].mxu0
        %2110 = vmatprep.mubr.f32.mxu0 0.0
        %2111 = vmatmul.mubr.f32.gmra.mrb[0].mxu0 %v1965
        %v2112 = vpop.f32.mrb[0].mxu0
        %v2113 = vadd.f32 0.0, %v2112
        %v2114 = vpop.f32.mrb[0].mxu0
        %2115 = vmatprep.mubr.f32.mxu0 0.0
        %2116 = vmatmul.mubr.f32.gmra.mrb[0].mxu0 %v1966
        %v2117 = vpop.f32.mrb[0].mxu0
        %v2118 = vadd.f32 0.0, %v2117
        %v2119 = vpop.f32.mrb[0].mxu0
        %2120 = vmatprep.mubr.f32.mxu0 0.0
        %2121 = vmatmul.mubr.f32.gmra.mrb[0].mxu0 %v1967
        %v2122 = vpop.f32.mrb[0].mxu0
        %v2123 = vadd.f32 0.0, %v2122
        %v2124 = vpop.f32.mrb[0].mxu0
        %2125 = vmatprep.mubr.f32.mxu0 0.0
        %2126 = vmatmul.mubr.f32.gmra.mrb[0].mxu0 %v1968
        %v2127 = vpop.f32.mrb[0].mxu0
        %v2128 = vadd.f32 0.0, %v2127
        %v2129 = vpop.f32.mrb[0].mxu0
        %2130 = vmatprep.mubr.f32.mxu0 0.0
        %2131 = vmatmul.mubr.f32.gmra.mrb[0].mxu0 %v1969
        %v2132 = vpop.f32.mrb[0].mxu0
        %v2133 = vadd.f32 0.0, %v2132
        %v2134 = vpop.f32.mrb[0].mxu0
        %2135 = vmatprep.mubr.f32.mxu0 0.0
        %2136 = vmatmul.mubr.f32.gmra.mrb[0].mxu0 %v1970
        %v2137 = vpop.f32.mrb[0].mxu0
        %v2138 = vadd.f32 0.0, %v2137
        %v2139 = vpop.f32.mrb[0].mxu0
        %2140 = vmatprep.mubr.f32.mxu0 0.0
        %2141 = vmatmul.mubr.f32.gmra.mrb[0].mxu0 %v1971
        %v2142 = vpop.f32.mrb[0].mxu0
        %v2143 = vadd.f32 0.0, %v2142
        %v2144 = vpop.f32.mrb[0].mxu0
        %2145 = vmatprep.mubr.f32.mxu0 0.0
        %2146 = vmatmul.mubr.f32.gmra.mrb[0].mxu0 %v1972
        %v2147 = vpop.f32.mrb[0].mxu0
        %v2148 = vadd.f32 0.0, %v2147
        %v2149 = vpop.f32.mrb[0].mxu0
        %2150 = vmatprep.mubr.f32.mxu0 0.0
        %2151 = vmatmul.mubr.f32.gmra.mrb[0].mxu0 %v1973
        %v2152 = vpop.f32.mrb[0].mxu0
        %v2153 = vadd.f32 0.0, %v2152
        %v2154 = vpop.f32.mrb[0].mxu0
        %2155 = vdwg.mxu0
        %v2156 = vadd.f32 %v1934, %v2058
        %v2157 = vadd.f32 %v1935, %v2063
        %v2158 = vadd.f32 %v1936, %v2068
        %v2159 = vadd.f32 %v1937, %v2073
        %v2160 = vadd.f32 %v1938, %v2078
        %v2161 = vadd.f32 %v1939, %v2083
        %v2162 = vadd.f32 %v1940, %v2088
        %v2163 = vadd.f32 %v1941, %v2093
        %v2164 = vadd.f32 %v1942, %v2098
        %v2165 = vadd.f32 %v1943, %v2103
        %v2166 = vadd.f32 %v1944, %v2108
        %v2167 = vadd.f32 %v1945, %v2113
        %v2168 = vadd.f32 %v1946, %v2118
        %v2169 = vadd.f32 %v1947, %v2123
        %v2170 = vadd.f32 %v1948, %v2128
        %v2171 = vadd.f32 %v1949, %v2133
        %v2172 = vadd.f32 %v1950, %v2138
        %v2173 = vadd.f32 %v1951, %v2143
        %v2174 = vadd.f32 %v1952, %v2148
        %v2175 = vadd.f32 %v1953, %v2153
        %v2176 = vld [vmem:[%s1731 + $0x3] sm:$0xff]
        %v2177 = vld [vmem:[%s1731 + $0xb] sm:$0xff]
        %v2178 = vld [vmem:[%s1731 + $0x1b] sm:$0xff]
        %v2179 = vld [vmem:[%s1731 + $0x23] sm:$0xff]
        %v2180 = vld [vmem:[%s1731 + $0x33] sm:$0xff]
        %v2181 = vld [vmem:[%s1731 + $0x3b] sm:$0xff]
        %v2182 = vld [vmem:[%s1731 + $0x4b] sm:$0xff]
        %v2183 = vld [vmem:[%s1731 + $0x53] sm:$0xff]
        %v2184 = vld [vmem:[%s1731 + $0x63] sm:$0xff]
        %v2185 = vld [vmem:[%s1731 + $0x6b] sm:$0xff]
        %v2186 = vld [vmem:[%s1731 + $0x7b] sm:$0xff]
        %v2187 = vld [vmem:[%s1731 + $0x83] sm:$0xff]
        %v2188 = vld [vmem:[%s1731 + $0x93] sm:$0xff]
        %v2189 = vld [vmem:[%s1731 + $0x9b] sm:$0xff]
        %v2190 = vld [vmem:[%s1731 + $0xab] sm:$0xff]
        %v2191 = vld [vmem:[%s1731 + $0xb3] sm:$0xff]
        %v2192 = vld [vmem:[%s1731 + $0xc3] sm:$0xff]
        %v2193 = vld [vmem:[%s1731 + $0xcb] sm:$0xff]
        %v2194 = vld [vmem:[%s1731 + $0xdb] sm:$0xff]
        %v2195 = vld [vmem:[%s1731 + $0xe3] sm:$0xff]
        %s2196 = scalar_lea.vmem [#allocation6], 1024
        %v2197 = vld [vmem:[%s2196] sm:$0xff]
        %v2198 = vld [vmem:[%s2196 + $0x8] sm:$0xff]
        %v2199 = vld [vmem:[%s2196 + $0x10] sm:$0xff]
        %v2200 = vld [vmem:[%s2196 + $0x18] sm:$0xff]
        %v2201 = vld [vmem:[%s2196 + $0x20] sm:$0xff]
        %v2202 = vld [vmem:[%s2196 + $0x28] sm:$0xff]
        %v2203 = vld [vmem:[%s2196 + $0x30] sm:$0xff]
        %v2204 = vld [vmem:[%s2196 + $0x38] sm:$0xff]
        %v2205 = vld [vmem:[%s2196 + $0x40] sm:$0xff]
        %v2206 = vld [vmem:[%s2196 + $0x48] sm:$0xff]
        %v2207 = vld [vmem:[%s2196 + $0x50] sm:$0xff]
        %v2208 = vld [vmem:[%s2196 + $0x58] sm:$0xff]
        %v2209 = vld [vmem:[%s2196 + $0x60] sm:$0xff]
        %v2210 = vld [vmem:[%s2196 + $0x68] sm:$0xff]
        %v2211 = vld [vmem:[%s2196 + $0x70] sm:$0xff]
        %v2212 = vld [vmem:[%s2196 + $0x78] sm:$0xff]
        %2213 = vmatprep.subr.mxu0 0.0
        %2214 = vmatpush1.msra.mxu0 %v2197
        %2215 = vmatprep.subr.mxu0 0.0
        %2216 = vmatpush1.msra.mxu0 %v2198
        %2217 = vmatprep.subr.mxu0 0.0
        %2218 = vmatpush1.msra.mxu0 %v2199
        %2219 = vmatprep.subr.mxu0 0.0
        %2220 = vmatpush1.msra.mxu0 %v2200
        %2221 = vmatprep.subr.mxu0 0.0
        %2222 = vmatpush1.msra.mxu0 %v2201
        %2223 = vmatprep.subr.mxu0 0.0
        %2224 = vmatpush1.msra.mxu0 %v2202
        %2225 = vmatprep.subr.mxu0 0.0
        %2226 = vmatpush1.msra.mxu0 %v2203
        %2227 = vmatprep.subr.mxu0 0.0
        %2228 = vmatpush1.msra.mxu0 %v2204
        %2229 = vmatprep.subr.mxu0 0.0
        %2230 = vmatpush1.msra.mxu0 %v2205
        %2231 = vmatprep.subr.mxu0 0.0
        %2232 = vmatpush1.msra.mxu0 %v2206
        %2233 = vmatprep.subr.mxu0 0.0
        %2234 = vmatpush1.msra.mxu0 %v2207
        %2235 = vmatprep.subr.mxu0 0.0
        %2236 = vmatpush1.msra.mxu0 %v2208
        %2237 = vmatprep.subr.mxu0 0.0
        %2238 = vmatpush1.msra.mxu0 %v2209
        %2239 = vmatprep.subr.mxu0 0.0
        %2240 = vmatpush1.msra.mxu0 %v2210
        %2241 = vmatprep.subr.mxu0 0.0
        %2242 = vmatpush1.msra.mxu0 %v2211
        %2243 = vmatprep.subr.mxu0 0.0
        %2244 = vmatpush1.msra.mxu0 %v2212
        %2245 = vmatprep.subr.mxu0 0.0
        %2246 = vmatpush1.msra.mxu0 0.0
        %2247 = vmatprep.subr.mxu0 0.0
        %2248 = vmatpush1.msra.mxu0 0.0
        %2249 = vmatprep.subr.mxu0 0.0
        %2250 = vmatpush1.msra.mxu0 0.0
        %2251 = vmatprep.subr.mxu0 0.0
        %2252 = vmatpush1.msra.mxu0 0.0
        %2253 = vmatprep.subr.mxu0 0.0
        %2254 = vmatpush1.msra.mxu0 0.0
        %2255 = vmatprep.subr.mxu0 0.0
        %2256 = vmatpush1.msra.mxu0 0.0
        %2257 = vmatprep.subr.mxu0 0.0
        %2258 = vmatpush1.msra.mxu0 0.0
        %2259 = vmatprep.subr.mxu0 0.0
        %2260 = vmatpush1.msra.mxu0 0.0
        %2261 = vmatprep.subr.mxu0 0.0
        %2262 = vmatpush1.msra.mxu0 0.0
        %2263 = vmatprep.subr.mxu0 0.0
        %2264 = vmatpush1.msra.mxu0 0.0
        %2265 = vmatprep.subr.mxu0 0.0
        %2266 = vmatpush1.msra.mxu0 0.0
        %2267 = vmatprep.subr.mxu0 0.0
        %2268 = vmatpush1.msra.mxu0 0.0
        %2269 = vmatprep.subr.mxu0 0.0
        %2270 = vmatpush1.msra.mxu0 0.0
        %2271 = vmatprep.subr.mxu0 0.0
        %2272 = vmatpush1.msra.mxu0 0.0
        %2273 = vmatprep.subr.mxu0 0.0
        %2274 = vmatpush1.msra.mxu0 0.0
        %2275 = vmatprep.subr.mxu0 0.0
        %2276 = vmatpush1.msra.mxu0 0.0
        %2277 = vmatprep.mubr.f32.mxu0 0.0
        %2278 = vmatmul.mubr.f32.gmra.mrb[0].mxu0 %v2176
        %v2279 = vpop.f32.mrb[0].mxu0
        %v2280 = vadd.f32 0.0, %v2279
        %v2281 = vpop.f32.mrb[0].mxu0
        %2282 = vmatprep.mubr.f32.mxu0 0.0
        %2283 = vmatmul.mubr.f32.gmra.mrb[0].mxu0 %v2177
        %v2284 = vpop.f32.mrb[0].mxu0
        %v2285 = vadd.f32 0.0, %v2284
        %v2286 = vpop.f32.mrb[0].mxu0
        %2287 = vmatprep.mubr.f32.mxu0 0.0
        %2288 = vmatmul.mubr.f32.gmra.mrb[0].mxu0 %v2178
        %v2289 = vpop.f32.mrb[0].mxu0
        %v2290 = vadd.f32 0.0, %v2289
        %v2291 = vpop.f32.mrb[0].mxu0
        %2292 = vmatprep.mubr.f32.mxu0 0.0
        %2293 = vmatmul.mubr.f32.gmra.mrb[0].mxu0 %v2179
        %v2294 = vpop.f32.mrb[0].mxu0
        %v2295 = vadd.f32 0.0, %v2294
        %v2296 = vpop.f32.mrb[0].mxu0
        %2297 = vmatprep.mubr.f32.mxu0 0.0
        %2298 = vmatmul.mubr.f32.gmra.mrb[0].mxu0 %v2180
        %v2299 = vpop.f32.mrb[0].mxu0
        %v2300 = vadd.f32 0.0, %v2299
        %v2301 = vpop.f32.mrb[0].mxu0
        %2302 = vmatprep.mubr.f32.mxu0 0.0
        %2303 = vmatmul.mubr.f32.gmra.mrb[0].mxu0 %v2181
        %v2304 = vpop.f32.mrb[0].mxu0
        %v2305 = vadd.f32 0.0, %v2304
        %v2306 = vpop.f32.mrb[0].mxu0
        %2307 = vmatprep.mubr.f32.mxu0 0.0
        %2308 = vmatmul.mubr.f32.gmra.mrb[0].mxu0 %v2182
        %v2309 = vpop.f32.mrb[0].mxu0
        %v2310 = vadd.f32 0.0, %v2309
        %v2311 = vpop.f32.mrb[0].mxu0
        %2312 = vmatprep.mubr.f32.mxu0 0.0
        %2313 = vmatmul.mubr.f32.gmra.mrb[0].mxu0 %v2183
        %v2314 = vpop.f32.mrb[0].mxu0
        %v2315 = vadd.f32 0.0, %v2314
        %v2316 = vpop.f32.mrb[0].mxu0
        %2317 = vmatprep.mubr.f32.mxu0 0.0
        %2318 = vmatmul.mubr.f32.gmra.mrb[0].mxu0 %v2184
        %v2319 = vpop.f32.mrb[0].mxu0
        %v2320 = vadd.f32 0.0, %v2319
        %v2321 = vpop.f32.mrb[0].mxu0
        %2322 = vmatprep.mubr.f32.mxu0 0.0
        %2323 = vmatmul.mubr.f32.gmra.mrb[0].mxu0 %v2185
        %v2324 = vpop.f32.mrb[0].mxu0
        %v2325 = vadd.f32 0.0, %v2324
        %v2326 = vpop.f32.mrb[0].mxu0
        %2327 = vmatprep.mubr.f32.mxu0 0.0
        %2328 = vmatmul.mubr.f32.gmra.mrb[0].mxu0 %v2186
        %v2329 = vpop.f32.mrb[0].mxu0
        %v2330 = vadd.f32 0.0, %v2329
        %v2331 = vpop.f32.mrb[0].mxu0
        %2332 = vmatprep.mubr.f32.mxu0 0.0
        %2333 = vmatmul.mubr.f32.gmra.mrb[0].mxu0 %v2187
        %v2334 = vpop.f32.mrb[0].mxu0
        %v2335 = vadd.f32 0.0, %v2334
        %v2336 = vpop.f32.mrb[0].mxu0
        %2337 = vmatprep.mubr.f32.mxu0 0.0
        %2338 = vmatmul.mubr.f32.gmra.mrb[0].mxu0 %v2188
        %v2339 = vpop.f32.mrb[0].mxu0
        %v2340 = vadd.f32 0.0, %v2339
        %v2341 = vpop.f32.mrb[0].mxu0
        %2342 = vmatprep.mubr.f32.mxu0 0.0
        %2343 = vmatmul.mubr.f32.gmra.mrb[0].mxu0 %v2189
        %v2344 = vpop.f32.mrb[0].mxu0
        %v2345 = vadd.f32 0.0, %v2344
        %v2346 = vpop.f32.mrb[0].mxu0
        %2347 = vmatprep.mubr.f32.mxu0 0.0
        %2348 = vmatmul.mubr.f32.gmra.mrb[0].mxu0 %v2190
        %v2349 = vpop.f32.mrb[0].mxu0
        %v2350 = vadd.f32 0.0, %v2349
        %v2351 = vpop.f32.mrb[0].mxu0
        %2352 = vmatprep.mubr.f32.mxu0 0.0
        %2353 = vmatmul.mubr.f32.gmra.mrb[0].mxu0 %v2191
        %v2354 = vpop.f32.mrb[0].mxu0
        %v2355 = vadd.f32 0.0, %v2354
        %v2356 = vpop.f32.mrb[0].mxu0
        %2357 = vmatprep.mubr.f32.mxu0 0.0
        %2358 = vmatmul.mubr.f32.gmra.mrb[0].mxu0 %v2192
        %v2359 = vpop.f32.mrb[0].mxu0
        %v2360 = vadd.f32 0.0, %v2359
        %v2361 = vpop.f32.mrb[0].mxu0
        %2362 = vmatprep.mubr.f32.mxu0 0.0
        %2363 = vmatmul.mubr.f32.gmra.mrb[0].mxu0 %v2193
        %v2364 = vpop.f32.mrb[0].mxu0
        %v2365 = vadd.f32 0.0, %v2364
        %v2366 = vpop.f32.mrb[0].mxu0
        %2367 = vmatprep.mubr.f32.mxu0 0.0
        %2368 = vmatmul.mubr.f32.gmra.mrb[0].mxu0 %v2194
        %v2369 = vpop.f32.mrb[0].mxu0
        %v2370 = vadd.f32 0.0, %v2369
        %v2371 = vpop.f32.mrb[0].mxu0
        %2372 = vmatprep.mubr.f32.mxu0 0.0
        %2373 = vmatmul.mubr.f32.gmra.mrb[0].mxu0 %v2195
        %v2374 = vpop.f32.mrb[0].mxu0
        %v2375 = vadd.f32 0.0, %v2374
        %v2376 = vpop.f32.mrb[0].mxu0
        %2377 = vdwg.mxu0
        %v2378 = vadd.f32 %v2156, %v2280
        %v2379 = vadd.f32 %v2157, %v2285
        %v2380 = vadd.f32 %v2158, %v2290
        %v2381 = vadd.f32 %v2159, %v2295
        %v2382 = vadd.f32 %v2160, %v2300
        %v2383 = vadd.f32 %v2161, %v2305
        %v2384 = vadd.f32 %v2162, %v2310
        %v2385 = vadd.f32 %v2163, %v2315
        %v2386 = vadd.f32 %v2164, %v2320
        %v2387 = vadd.f32 %v2165, %v2325
        %v2388 = vadd.f32 %v2166, %v2330
        %v2389 = vadd.f32 %v2167, %v2335
        %v2390 = vadd.f32 %v2168, %v2340
        %v2391 = vadd.f32 %v2169, %v2345
        %v2392 = vadd.f32 %v2170, %v2350
        %v2393 = vadd.f32 %v2171, %v2355
        %v2394 = vadd.f32 %v2172, %v2360
        %v2395 = vadd.f32 %v2173, %v2365
        %v2396 = vadd.f32 %v2174, %v2370
        %v2397 = vadd.f32 %v2175, %v2375
        %v2398 = vld [vmem:[#allocation8] sm:$0x1]
        %v2400 = vlaneseq
        %v2401 = vshrl.u32 %v2400, 7
        %v2402 = vsub.s32 0, %v2401
        %v2403 = vrot.slane %v2398, %v2402
        %v2405 = vmul.f32 %v2378, %v2403
        %v2406 = vmul.f32 %v2379, %v2403
        %v2407 = vmul.f32 %v2380, %v2403
        %v2408 = vmul.f32 %v2381, %v2403
        %v2409 = vmul.f32 %v2382, %v2403
        %v2410 = vmul.f32 %v2383, %v2403
        %v2411 = vmul.f32 %v2384, %v2403
        %v2412 = vmul.f32 %v2385, %v2403
        %v2413 = vmul.f32 %v2386, %v2403
        %v2414 = vmul.f32 %v2387, %v2403
        %v2415 = vmul.f32 %v2388, %v2403
        %v2416 = vmul.f32 %v2389, %v2403
        %v2417 = vmul.f32 %v2390, %v2403
        %v2418 = vmul.f32 %v2391, %v2403
        %v2419 = vmul.f32 %v2392, %v2403
        %v2420 = vmul.f32 %v2393, %v2403
        %v2421 = vmul.f32 %v2394, %v2403
        %v2422 = vmul.f32 %v2395, %v2403
        %v2423 = vmul.f32 %v2396, %v2403
        %v2424 = vmul.f32 %v2397, %v2403
        %v2425 = vld [vmem:[#allocation9] sm:$0x1]
        %v2427 = vlaneseq
        %v2428 = vshrl.u32 %v2427, 7
        %v2429 = vsub.s32 0, %v2428
        %v2430 = vrot.slane %v2425, %v2429
        %v2432 = vadd.f32 %v2405, %v2430
        %v2433 = vadd.f32 %v2406, %v2430
        %v2434 = vadd.f32 %v2407, %v2430
        %v2435 = vadd.f32 %v2408, %v2430
        %v2436 = vadd.f32 %v2409, %v2430
        %v2437 = vadd.f32 %v2410, %v2430
        %v2438 = vadd.f32 %v2411, %v2430
        %v2439 = vadd.f32 %v2412, %v2430
        %v2440 = vadd.f32 %v2413, %v2430
        %v2441 = vadd.f32 %v2414, %v2430
        %v2442 = vadd.f32 %v2415, %v2430
        %v2443 = vadd.f32 %v2416, %v2430
        %v2444 = vadd.f32 %v2417, %v2430
        %v2445 = vadd.f32 %v2418, %v2430
        %v2446 = vadd.f32 %v2419, %v2430
        %v2447 = vadd.f32 %v2420, %v2430
        %v2448 = vadd.f32 %v2421, %v2430
        %v2449 = vadd.f32 %v2422, %v2430
        %v2450 = vadd.f32 %v2423, %v2430
        %v2451 = vadd.f32 %v2424, %v2430
        %v2452 = vmax.f32 %v2432, 0.0
        %v2453 = vmax.f32 %v2433, 0.0
        %v2454 = vmax.f32 %v2434, 0.0
        %v2455 = vmax.f32 %v2435, 0.0
        %v2456 = vmax.f32 %v2436, 0.0
        %v2457 = vmax.f32 %v2437, 0.0
        %v2458 = vmax.f32 %v2438, 0.0
        %v2459 = vmax.f32 %v2439, 0.0
        %v2460 = vmax.f32 %v2440, 0.0
        %v2461 = vmax.f32 %v2441, 0.0
        %v2462 = vmax.f32 %v2442, 0.0
        %v2463 = vmax.f32 %v2443, 0.0
        %v2464 = vmax.f32 %v2444, 0.0
        %v2465 = vmax.f32 %v2445, 0.0
        %v2466 = vmax.f32 %v2446, 0.0
        %v2467 = vmax.f32 %v2447, 0.0
        %v2468 = vmax.f32 %v2448, 0.0
        %v2469 = vmax.f32 %v2449, 0.0
        %v2470 = vmax.f32 %v2450, 0.0
        %v2471 = vmax.f32 %v2451, 0.0
        %2472 = vst [vmem:[#allocation2] sm:$0x1] 0.0
        %2473 = vst [vmem:[#allocation2 + $0x18] sm:$0x1] 0.0
        %2474 = vst [vmem:[#allocation2 + $0x30] sm:$0x1] 0.0
        %2475 = vst [vmem:[#allocation2 + $0x48] sm:$0x1] 0.0
        %2476 = vst [vmem:[#allocation2 + $0x60] sm:$0x1] 0.0
        %2477 = vst [vmem:[#allocation2 + $0x78] sm:$0x1] 0.0
        %2478 = vst [vmem:[#allocation2 + $0x90] sm:$0x1] 0.0
        %2479 = vst [vmem:[#allocation2 + $0xa8] sm:$0x1] 0.0
        %2480 = vst [vmem:[#allocation2 + $0xc0] sm:$0x1] 0.0
        %2481 = vst [vmem:[#allocation2 + $0xd8] sm:$0x1] 0.0
        %2482 = vst [vmem:[#allocation2 + $0x11] sm:$0x1] 0.0
        %2483 = vst [vmem:[#allocation2 + $0x29] sm:$0x1] 0.0
        %2484 = vst [vmem:[#allocation2 + $0x41] sm:$0x1] 0.0
        %2485 = vst [vmem:[#allocation2 + $0x59] sm:$0x1] 0.0
        %2486 = vst [vmem:[#allocation2 + $0x71] sm:$0x1] 0.0
        %2487 = vst [vmem:[#allocation2 + $0x89] sm:$0x1] 0.0
        %2488 = vst [vmem:[#allocation2 + $0xa1] sm:$0x1] 0.0
        %2489 = vst [vmem:[#allocation2 + $0xb9] sm:$0x1] 0.0
        %2490 = vst [vmem:[#allocation2 + $0xd1] sm:$0x1] 0.0
        %2491 = vst [vmem:[#allocation2 + $0xe9] sm:$0x1] 0.0
        %2492 = vst [vmem:[#allocation2 + $0x1] sm:$0xff] %v2452
        %2493 = vst [vmem:[#allocation2 + $0x9] sm:$0xff] %v2453
        %2494 = vst [vmem:[#allocation2 + $0x19] sm:$0xff] %v2454
        %2495 = vst [vmem:[#allocation2 + $0x21] sm:$0xff] %v2455
        %2496 = vst [vmem:[#allocation2 + $0x31] sm:$0xff] %v2456
        %2497 = vst [vmem:[#allocation2 + $0x39] sm:$0xff] %v2457
        %2498 = vst [vmem:[#allocation2 + $0x49] sm:$0xff] %v2458
        %2499 = vst [vmem:[#allocation2 + $0x51] sm:$0xff] %v2459
        %2500 = vst [vmem:[#allocation2 + $0x61] sm:$0xff] %v2460
        %2501 = vst [vmem:[#allocation2 + $0x69] sm:$0xff] %v2461
        %2502 = vst [vmem:[#allocation2 + $0x79] sm:$0xff] %v2462
        %2503 = vst [vmem:[#allocation2 + $0x81] sm:$0xff] %v2463
        %2504 = vst [vmem:[#allocation2 + $0x91] sm:$0xff] %v2464
        %2505 = vst [vmem:[#allocation2 + $0x99] sm:$0xff] %v2465
        %2506 = vst [vmem:[#allocation2 + $0xa9] sm:$0xff] %v2466
        %2507 = vst [vmem:[#allocation2 + $0xb1] sm:$0xff] %v2467
        %2508 = vst [vmem:[#allocation2 + $0xc1] sm:$0xff] %v2468
        %2509 = vst [vmem:[#allocation2 + $0xc9] sm:$0xff] %v2469
        %2510 = vst [vmem:[#allocation2 + $0xd9] sm:$0xff] %v2470
        %2511 = vst [vmem:[#allocation2 + $0xe1] sm:$0xff] %v2471
        %p2512 = scmp.eq.s32.totalorder %s37, 0
        // Predicated region
        $region77: #{downsample_forward.1} parent=47 // pred_check
          %p2513 = pneg %p2512
        $region78: #{downsample_forward.1} parent=47 // pred_check_branch
          %2515 = sbr.rel (%p2513) target = $region80
        $region79: #{downsample_forward.1} parent=47 // pred_region
          %2516 = vst [vmem:[#allocation2] sm:$0xff] 0.0
          %2517 = vst [vmem:[#allocation2 + $0x8] sm:$0xff] 0.0
          %2518 = vst [vmem:[#allocation2 + $0x10] sm:$0x3] 0.0
        $region80: #{downsample_forward.1} parent=47 // pred_fallthru
          _
        %p2519 = scmp.eq.s32.totalorder %s37, 1
        // Predicated region
        $region81: #{downsample_forward.1} parent=47 // pred_check
          %p2520 = pneg %p2519
        $region82: #{downsample_forward.1} parent=47 // pred_check_branch
          %2522 = sbr.rel (%p2520) target = $region84
        $region83: #{downsample_forward.1} parent=47 // pred_region
          %s2523 = scalar_lea.vmem [#allocation2], 216
          %2524 = vst [vmem:[%s2523] sm:$0xff] 0.0
          %2525 = vst [vmem:[%s2523 + $0x8] sm:$0xff] 0.0
          %2526 = vst [vmem:[%s2523 + $0x10] sm:$0x3] 0.0
        $region84: #{downsample_forward.1} parent=47 // pred_fallthru
          _
        %v2527 = vld [vmem:[#allocation2] sm:$0xff]
        %v2528 = vld [vmem:[#allocation2 + $0x8] sm:$0xff]
        %v2529 = vld [vmem:[#allocation2 + $0x18] sm:$0xff]
        %v2530 = vld [vmem:[#allocation2 + $0x20] sm:$0xff]
        %v2531 = vld [vmem:[#allocation2 + $0x30] sm:$0xff]
        %v2532 = vld [vmem:[#allocation2 + $0x38] sm:$0xff]
        %v2533 = vld [vmem:[#allocation2 + $0x48] sm:$0xff]
        %v2534 = vld [vmem:[#allocation2 + $0x50] sm:$0xff]
        %v2535 = vld [vmem:[#allocation2 + $0x60] sm:$0xff]
        %v2536 = vld [vmem:[#allocation2 + $0x68] sm:$0xff]
        %v2537 = vld [vmem:[#allocation2 + $0x78] sm:$0xff]
        %v2538 = vld [vmem:[#allocation2 + $0x80] sm:$0xff]
        %v2539 = vld [vmem:[#allocation2 + $0x90] sm:$0xff]
        %v2540 = vld [vmem:[#allocation2 + $0x98] sm:$0xff]
        %v2541 = vld [vmem:[#allocation2 + $0xa8] sm:$0xff]
        %v2542 = vld [vmem:[#allocation2 + $0xb0] sm:$0xff]
        %v2543 = vld [vmem:[#allocation11] sm:$0xff]
        %v2544 = vld [vmem:[#allocation11 + $0x8] sm:$0xff]
        %v2545 = vld [vmem:[#allocation11 + $0x10] sm:$0xff]
        %v2546 = vld [vmem:[#allocation11 + $0x18] sm:$0xff]
        %v2547 = vld [vmem:[#allocation11 + $0x20] sm:$0xff]
        %v2548 = vld [vmem:[#allocation11 + $0x28] sm:$0xff]
        %v2549 = vld [vmem:[#allocation11 + $0x30] sm:$0xff]
        %v2550 = vld [vmem:[#allocation11 + $0x38] sm:$0xff]
        %v2551 = vld [vmem:[#allocation11 + $0x40] sm:$0xff]
        %v2552 = vld [vmem:[#allocation11 + $0x48] sm:$0xff]
        %v2553 = vld [vmem:[#allocation11 + $0x50] sm:$0xff]
        %v2554 = vld [vmem:[#allocation11 + $0x58] sm:$0xff]
        %v2555 = vld [vmem:[#allocation11 + $0x60] sm:$0xff]
        %v2556 = vld [vmem:[#allocation11 + $0x68] sm:$0xff]
        %v2557 = vld [vmem:[#allocation11 + $0x70] sm:$0xff]
        %v2558 = vld [vmem:[#allocation11 + $0x78] sm:$0xff]
        %v2559 = vld [vmem:[#allocation2 + $0x1] sm:$0xff]
        %v2560 = vld [vmem:[#allocation2 + $0x9] sm:$0xff]
        %v2561 = vld [vmem:[#allocation2 + $0x19] sm:$0xff]
        %v2562 = vld [vmem:[#allocation2 + $0x21] sm:$0xff]
        %v2563 = vld [vmem:[#allocation2 + $0x31] sm:$0xff]
        %v2564 = vld [vmem:[#allocation2 + $0x39] sm:$0xff]
        %v2565 = vld [vmem:[#allocation2 + $0x49] sm:$0xff]
        %v2566 = vld [vmem:[#allocation2 + $0x51] sm:$0xff]
        %v2567 = vld [vmem:[#allocation2 + $0x61] sm:$0xff]
        %v2568 = vld [vmem:[#allocation2 + $0x69] sm:$0xff]
        %v2569 = vld [vmem:[#allocation2 + $0x79] sm:$0xff]
        %v2570 = vld [vmem:[#allocation2 + $0x81] sm:$0xff]
        %v2571 = vld [vmem:[#allocation2 + $0x91] sm:$0xff]
        %v2572 = vld [vmem:[#allocation2 + $0x99] sm:$0xff]
        %v2573 = vld [vmem:[#allocation2 + $0xa9] sm:$0xff]
        %v2574 = vld [vmem:[#allocation2 + $0xb1] sm:$0xff]
        %s2575 = scalar_lea.vmem [#allocation11], 128
        %v2576 = vld [vmem:[%s2575] sm:$0xff]
        %v2577 = vld [vmem:[%s2575 + $0x8] sm:$0xff]
        %v2578 = vld [vmem:[%s2575 + $0x10] sm:$0xff]
        %v2579 = vld [vmem:[%s2575 + $0x18] sm:$0xff]
        %v2580 = vld [vmem:[%s2575 + $0x20] sm:$0xff]
        %v2581 = vld [vmem:[%s2575 + $0x28] sm:$0xff]
        %v2582 = vld [vmem:[%s2575 + $0x30] sm:$0xff]
        %v2583 = vld [vmem:[%s2575 + $0x38] sm:$0xff]
        %v2584 = vld [vmem:[%s2575 + $0x40] sm:$0xff]
        %v2585 = vld [vmem:[%s2575 + $0x48] sm:$0xff]
        %v2586 = vld [vmem:[%s2575 + $0x50] sm:$0xff]
        %v2587 = vld [vmem:[%s2575 + $0x58] sm:$0xff]
        %v2588 = vld [vmem:[%s2575 + $0x60] sm:$0xff]
        %v2589 = vld [vmem:[%s2575 + $0x68] sm:$0xff]
        %v2590 = vld [vmem:[%s2575 + $0x70] sm:$0xff]
        %v2591 = vld [vmem:[%s2575 + $0x78] sm:$0xff]
        %2592 = vmatprep.subr.mxu0 0.0
        %2593 = vmatpush1.msra.mxu0 %v2576
        %2594 = vmatprep.subr.mxu0 0.0
        %2595 = vmatpush1.msra.mxu0 %v2577
        %2596 = vmatprep.subr.mxu0 0.0
        %2597 = vmatpush1.msra.mxu0 %v2578
        %2598 = vmatprep.subr.mxu0 0.0
        %2599 = vmatpush1.msra.mxu0 %v2579
        %2600 = vmatprep.subr.mxu0 0.0
        %2601 = vmatpush1.msra.mxu0 %v2580
        %2602 = vmatprep.subr.mxu0 0.0
        %2603 = vmatpush1.msra.mxu0 %v2581
        %2604 = vmatprep.subr.mxu0 0.0
        %2605 = vmatpush1.msra.mxu0 %v2582
        %2606 = vmatprep.subr.mxu0 0.0
        %2607 = vmatpush1.msra.mxu0 %v2583
        %2608 = vmatprep.subr.mxu0 0.0
        %2609 = vmatpush1.msra.mxu0 %v2584
        %2610 = vmatprep.subr.mxu0 0.0
        %2611 = vmatpush1.msra.mxu0 %v2585
        %2612 = vmatprep.subr.mxu0 0.0
        %2613 = vmatpush1.msra.mxu0 %v2586
        %2614 = vmatprep.subr.mxu0 0.0
        %2615 = vmatpush1.msra.mxu0 %v2587
        %2616 = vmatprep.subr.mxu0 0.0
        %2617 = vmatpush1.msra.mxu0 %v2588
        %2618 = vmatprep.subr.mxu0 0.0
        %2619 = vmatpush1.msra.mxu0 %v2589
        %2620 = vmatprep.subr.mxu0 0.0
        %2621 = vmatpush1.msra.mxu0 %v2590
        %2622 = vmatprep.subr.mxu0 0.0
        %2623 = vmatpush1.msra.mxu0 %v2591
        %2624 = vmatprep.subr.mxu0 0.0
        %2625 = vmatpush1.msra.mxu0 0.0
        %2626 = vmatprep.subr.mxu0 0.0
        %2627 = vmatpush1.msra.mxu0 0.0
        %2628 = vmatprep.subr.mxu0 0.0
        %2629 = vmatpush1.msra.mxu0 0.0
        %2630 = vmatprep.subr.mxu0 0.0
        %2631 = vmatpush1.msra.mxu0 0.0
        %2632 = vmatprep.subr.mxu0 0.0
        %2633 = vmatpush1.msra.mxu0 0.0
        %2634 = vmatprep.subr.mxu0 0.0
        %2635 = vmatpush1.msra.mxu0 0.0
        %2636 = vmatprep.subr.mxu0 0.0
        %2637 = vmatpush1.msra.mxu0 0.0
        %2638 = vmatprep.subr.mxu0 0.0
        %2639 = vmatpush1.msra.mxu0 0.0
        %2640 = vmatprep.subr.mxu0 0.0
        %2641 = vmatpush1.msra.mxu0 0.0
        %2642 = vmatprep.subr.mxu0 0.0
        %2643 = vmatpush1.msra.mxu0 0.0
        %2644 = vmatprep.subr.mxu0 0.0
        %2645 = vmatpush1.msra.mxu0 0.0
        %2646 = vmatprep.subr.mxu0 0.0
        %2647 = vmatpush1.msra.mxu0 0.0
        %2648 = vmatprep.subr.mxu0 0.0
        %2649 = vmatpush1.msra.mxu0 0.0
        %2650 = vmatprep.subr.mxu0 0.0
        %2651 = vmatpush1.msra.mxu0 0.0
        %2652 = vmatprep.subr.mxu0 0.0
        %2653 = vmatpush1.msra.mxu0 0.0
        %2654 = vmatprep.subr.mxu0 0.0
        %2655 = vmatpush1.msra.mxu0 0.0
        %2656 = vmatprep.mubr.f32.mxu0 0.0
        %2657 = vmatmul.mubr.f32.gmra.mrb[0].mxu0 %v2559
        %v2658 = vpop.f32.mrb[0].mxu0
        %v2659 = vadd.f32 0.0, %v2658
        %v2660 = vpop.f32.mrb[0].mxu0
        %2661 = vmatprep.mubr.f32.mxu0 0.0
        %2662 = vmatmul.mubr.f32.gmra.mrb[0].mxu0 %v2560
        %v2663 = vpop.f32.mrb[0].mxu0
        %v2664 = vadd.f32 0.0, %v2663
        %v2665 = vpop.f32.mrb[0].mxu0
        %2666 = vmatprep.mubr.f32.mxu0 0.0
        %2667 = vmatmul.mubr.f32.gmra.mrb[0].mxu0 %v2561
        %v2668 = vpop.f32.mrb[0].mxu0
        %v2669 = vadd.f32 0.0, %v2668
        %v2670 = vpop.f32.mrb[0].mxu0
        %2671 = vmatprep.mubr.f32.mxu0 0.0
        %2672 = vmatmul.mubr.f32.gmra.mrb[0].mxu0 %v2562
        %v2673 = vpop.f32.mrb[0].mxu0
        %v2674 = vadd.f32 0.0, %v2673
        %v2675 = vpop.f32.mrb[0].mxu0
        %2676 = vmatprep.mubr.f32.mxu0 0.0
        %2677 = vmatmul.mubr.f32.gmra.mrb[0].mxu0 %v2563
        %v2678 = vpop.f32.mrb[0].mxu0
        %v2679 = vadd.f32 0.0, %v2678
        %v2680 = vpop.f32.mrb[0].mxu0
        %2681 = vmatprep.mubr.f32.mxu0 0.0
        %2682 = vmatmul.mubr.f32.gmra.mrb[0].mxu0 %v2564
        %v2683 = vpop.f32.mrb[0].mxu0
        %v2684 = vadd.f32 0.0, %v2683
        %v2685 = vpop.f32.mrb[0].mxu0
        %2686 = vmatprep.mubr.f32.mxu0 0.0
        %2687 = vmatmul.mubr.f32.gmra.mrb[0].mxu0 %v2565
        %v2688 = vpop.f32.mrb[0].mxu0
        %v2689 = vadd.f32 0.0, %v2688
        %v2690 = vpop.f32.mrb[0].mxu0
        %2691 = vmatprep.mubr.f32.mxu0 0.0
        %2692 = vmatmul.mubr.f32.gmra.mrb[0].mxu0 %v2566
        %v2693 = vpop.f32.mrb[0].mxu0
        %v2694 = vadd.f32 0.0, %v2693
        %v2695 = vpop.f32.mrb[0].mxu0
        %2696 = vmatprep.mubr.f32.mxu0 0.0
        %2697 = vmatmul.mubr.f32.gmra.mrb[0].mxu0 %v2567
        %v2698 = vpop.f32.mrb[0].mxu0
        %v2699 = vadd.f32 0.0, %v2698
        %v2700 = vpop.f32.mrb[0].mxu0
        %2701 = vmatprep.mubr.f32.mxu0 0.0
        %2702 = vmatmul.mubr.f32.gmra.mrb[0].mxu0 %v2568
        %v2703 = vpop.f32.mrb[0].mxu0
        %v2704 = vadd.f32 0.0, %v2703
        %v2705 = vpop.f32.mrb[0].mxu0
        %2706 = vmatprep.mubr.f32.mxu0 0.0
        %2707 = vmatmul.mubr.f32.gmra.mrb[0].mxu0 %v2569
        %v2708 = vpop.f32.mrb[0].mxu0
        %v2709 = vadd.f32 0.0, %v2708
        %v2710 = vpop.f32.mrb[0].mxu0
        %2711 = vmatprep.mubr.f32.mxu0 0.0
        %2712 = vmatmul.mubr.f32.gmra.mrb[0].mxu0 %v2570
        %v2713 = vpop.f32.mrb[0].mxu0
        %v2714 = vadd.f32 0.0, %v2713
        %v2715 = vpop.f32.mrb[0].mxu0
        %2716 = vmatprep.mubr.f32.mxu0 0.0
        %2717 = vmatmul.mubr.f32.gmra.mrb[0].mxu0 %v2571
        %v2718 = vpop.f32.mrb[0].mxu0
        %v2719 = vadd.f32 0.0, %v2718
        %v2720 = vpop.f32.mrb[0].mxu0
        %2721 = vmatprep.mubr.f32.mxu0 0.0
        %2722 = vmatmul.mubr.f32.gmra.mrb[0].mxu0 %v2572
        %v2723 = vpop.f32.mrb[0].mxu0
        %v2724 = vadd.f32 0.0, %v2723
        %v2725 = vpop.f32.mrb[0].mxu0
        %2726 = vmatprep.mubr.f32.mxu0 0.0
        %2727 = vmatmul.mubr.f32.gmra.mrb[0].mxu0 %v2573
        %v2728 = vpop.f32.mrb[0].mxu0
        %v2729 = vadd.f32 0.0, %v2728
        %v2730 = vpop.f32.mrb[0].mxu0
        %2731 = vmatprep.mubr.f32.mxu0 0.0
        %2732 = vmatmul.mubr.f32.gmra.mrb[0].mxu0 %v2574
        %v2733 = vpop.f32.mrb[0].mxu0
        %v2734 = vadd.f32 0.0, %v2733
        %v2735 = vpop.f32.mrb[0].mxu0
        %2736 = vdwg.mxu0
        %2737 = vmatprep.subr.mxu0 0.0
        %2738 = vmatpush1.msra.mxu0 %v2543
        %2739 = vmatprep.subr.mxu0 0.0
        %2740 = vmatpush1.msra.mxu0 %v2544
        %2741 = vmatprep.subr.mxu0 0.0
        %2742 = vmatpush1.msra.mxu0 %v2545
        %2743 = vmatprep.subr.mxu0 0.0
        %2744 = vmatpush1.msra.mxu0 %v2546
        %2745 = vmatprep.subr.mxu0 0.0
        %2746 = vmatpush1.msra.mxu0 %v2547
        %2747 = vmatprep.subr.mxu0 0.0
        %2748 = vmatpush1.msra.mxu0 %v2548
        %2749 = vmatprep.subr.mxu0 0.0
        %2750 = vmatpush1.msra.mxu0 %v2549
        %2751 = vmatprep.subr.mxu0 0.0
        %2752 = vmatpush1.msra.mxu0 %v2550
        %2753 = vmatprep.subr.mxu0 0.0
        %2754 = vmatpush1.msra.mxu0 %v2551
        %2755 = vmatprep.subr.mxu0 0.0
        %2756 = vmatpush1.msra.mxu0 %v2552
        %2757 = vmatprep.subr.mxu0 0.0
        %2758 = vmatpush1.msra.mxu0 %v2553
        %2759 = vmatprep.subr.mxu0 0.0
        %2760 = vmatpush1.msra.mxu0 %v2554
        %2761 = vmatprep.subr.mxu0 0.0
        %2762 = vmatpush1.msra.mxu0 %v2555
        %2763 = vmatprep.subr.mxu0 0.0
        %2764 = vmatpush1.msra.mxu0 %v2556
        %2765 = vmatprep.subr.mxu0 0.0
        %2766 = vmatpush1.msra.mxu0 %v2557
        %2767 = vmatprep.subr.mxu0 0.0
        %2768 = vmatpush1.msra.mxu0 %v2558
        %2769 = vmatprep.subr.mxu0 0.0
        %2770 = vmatpush1.msra.mxu0 0.0
        %2771 = vmatprep.subr.mxu0 0.0
        %2772 = vmatpush1.msra.mxu0 0.0
        %2773 = vmatprep.subr.mxu0 0.0
        %2774 = vmatpush1.msra.mxu0 0.0
        %2775 = vmatprep.subr.mxu0 0.0
        %2776 = vmatpush1.msra.mxu0 0.0
        %2777 = vmatprep.subr.mxu0 0.0
        %2778 = vmatpush1.msra.mxu0 0.0
        %2779 = vmatprep.subr.mxu0 0.0
        %2780 = vmatpush1.msra.mxu0 0.0
        %2781 = vmatprep.subr.mxu0 0.0
        %2782 = vmatpush1.msra.mxu0 0.0
        %2783 = vmatprep.subr.mxu0 0.0
        %2784 = vmatpush1.msra.mxu0 0.0
        %2785 = vmatprep.subr.mxu0 0.0
        %2786 = vmatpush1.msra.mxu0 0.0
        %2787 = vmatprep.subr.mxu0 0.0
        %2788 = vmatpush1.msra.mxu0 0.0
        %2789 = vmatprep.subr.mxu0 0.0
        %2790 = vmatpush1.msra.mxu0 0.0
        %2791 = vmatprep.subr.mxu0 0.0
        %2792 = vmatpush1.msra.mxu0 0.0
        %2793 = vmatprep.subr.mxu0 0.0
        %2794 = vmatpush1.msra.mxu0 0.0
        %2795 = vmatprep.subr.mxu0 0.0
        %2796 = vmatpush1.msra.mxu0 0.0
        %2797 = vmatprep.subr.mxu0 0.0
        %2798 = vmatpush1.msra.mxu0 0.0
        %2799 = vmatprep.subr.mxu0 0.0
        %2800 = vmatpush1.msra.mxu0 0.0
        %2801 = vmatprep.mubr.f32.mxu0 0.0
        %2802 = vmatmul.mubr.f32.gmra.mrb[0].mxu0 %v2527
        %v2803 = vpop.f32.mrb[0].mxu0
        %v2804 = vadd.f32 %v2659, %v2803
        %v2805 = vpop.f32.mrb[0].mxu0
        %2806 = vmatprep.mubr.f32.mxu0 0.0
        %2807 = vmatmul.mubr.f32.gmra.mrb[0].mxu0 %v2528
        %v2808 = vpop.f32.mrb[0].mxu0
        %v2809 = vadd.f32 %v2664, %v2808
        %v2810 = vpop.f32.mrb[0].mxu0
        %2811 = vmatprep.mubr.f32.mxu0 0.0
        %2812 = vmatmul.mubr.f32.gmra.mrb[0].mxu0 %v2529
        %v2813 = vpop.f32.mrb[0].mxu0
        %v2814 = vadd.f32 %v2669, %v2813
        %v2815 = vpop.f32.mrb[0].mxu0
        %2816 = vmatprep.mubr.f32.mxu0 0.0
        %2817 = vmatmul.mubr.f32.gmra.mrb[0].mxu0 %v2530
        %v2818 = vpop.f32.mrb[0].mxu0
        %v2819 = vadd.f32 %v2674, %v2818
        %v2820 = vpop.f32.mrb[0].mxu0
        %2821 = vmatprep.mubr.f32.mxu0 0.0
        %2822 = vmatmul.mubr.f32.gmra.mrb[0].mxu0 %v2531
        %v2823 = vpop.f32.mrb[0].mxu0
        %v2824 = vadd.f32 %v2679, %v2823
        %v2825 = vpop.f32.mrb[0].mxu0
        %2826 = vmatprep.mubr.f32.mxu0 0.0
        %2827 = vmatmul.mubr.f32.gmra.mrb[0].mxu0 %v2532
        %v2828 = vpop.f32.mrb[0].mxu0
        %v2829 = vadd.f32 %v2684, %v2828
        %v2830 = vpop.f32.mrb[0].mxu0
        %2831 = vmatprep.mubr.f32.mxu0 0.0
        %2832 = vmatmul.mubr.f32.gmra.mrb[0].mxu0 %v2533
        %v2833 = vpop.f32.mrb[0].mxu0
        %v2834 = vadd.f32 %v2689, %v2833
        %v2835 = vpop.f32.mrb[0].mxu0
        %2836 = vmatprep.mubr.f32.mxu0 0.0
        %2837 = vmatmul.mubr.f32.gmra.mrb[0].mxu0 %v2534
        %v2838 = vpop.f32.mrb[0].mxu0
        %v2839 = vadd.f32 %v2694, %v2838
        %v2840 = vpop.f32.mrb[0].mxu0
        %2841 = vmatprep.mubr.f32.mxu0 0.0
        %2842 = vmatmul.mubr.f32.gmra.mrb[0].mxu0 %v2535
        %v2843 = vpop.f32.mrb[0].mxu0
        %v2844 = vadd.f32 %v2699, %v2843
        %v2845 = vpop.f32.mrb[0].mxu0
        %2846 = vmatprep.mubr.f32.mxu0 0.0
        %2847 = vmatmul.mubr.f32.gmra.mrb[0].mxu0 %v2536
        %v2848 = vpop.f32.mrb[0].mxu0
        %v2849 = vadd.f32 %v2704, %v2848
        %v2850 = vpop.f32.mrb[0].mxu0
        %2851 = vmatprep.mubr.f32.mxu0 0.0
        %2852 = vmatmul.mubr.f32.gmra.mrb[0].mxu0 %v2537
        %v2853 = vpop.f32.mrb[0].mxu0
        %v2854 = vadd.f32 %v2709, %v2853
        %v2855 = vpop.f32.mrb[0].mxu0
        %2856 = vmatprep.mubr.f32.mxu0 0.0
        %2857 = vmatmul.mubr.f32.gmra.mrb[0].mxu0 %v2538
        %v2858 = vpop.f32.mrb[0].mxu0
        %v2859 = vadd.f32 %v2714, %v2858
        %v2860 = vpop.f32.mrb[0].mxu0
        %2861 = vmatprep.mubr.f32.mxu0 0.0
        %2862 = vmatmul.mubr.f32.gmra.mrb[0].mxu0 %v2539
        %v2863 = vpop.f32.mrb[0].mxu0
        %v2864 = vadd.f32 %v2719, %v2863
        %v2865 = vpop.f32.mrb[0].mxu0
        %2866 = vmatprep.mubr.f32.mxu0 0.0
        %2867 = vmatmul.mubr.f32.gmra.mrb[0].mxu0 %v2540
        %v2868 = vpop.f32.mrb[0].mxu0
        %v2869 = vadd.f32 %v2724, %v2868
        %v2870 = vpop.f32.mrb[0].mxu0
        %2871 = vmatprep.mubr.f32.mxu0 0.0
        %2872 = vmatmul.mubr.f32.gmra.mrb[0].mxu0 %v2541
        %v2873 = vpop.f32.mrb[0].mxu0
        %v2874 = vadd.f32 %v2729, %v2873
        %v2875 = vpop.f32.mrb[0].mxu0
        %2876 = vmatprep.mubr.f32.mxu0 0.0
        %2877 = vmatmul.mubr.f32.gmra.mrb[0].mxu0 %v2542
        %v2878 = vpop.f32.mrb[0].mxu0
        %v2879 = vadd.f32 %v2734, %v2878
        %v2880 = vpop.f32.mrb[0].mxu0
        %2881 = vdwg.mxu0
        %v2882 = vld [vmem:[#allocation2 + $0x2] sm:$0xff]
        %v2883 = vld [vmem:[#allocation2 + $0xa] sm:$0xff]
        %v2884 = vld [vmem:[#allocation2 + $0x1a] sm:$0xff]
        %v2885 = vld [vmem:[#allocation2 + $0x22] sm:$0xff]
        %v2886 = vld [vmem:[#allocation2 + $0x32] sm:$0xff]
        %v2887 = vld [vmem:[#allocation2 + $0x3a] sm:$0xff]
        %v2888 = vld [vmem:[#allocation2 + $0x4a] sm:$0xff]
        %v2889 = vld [vmem:[#allocation2 + $0x52] sm:$0xff]
        %v2890 = vld [vmem:[#allocation2 + $0x62] sm:$0xff]
        %v2891 = vld [vmem:[#allocation2 + $0x6a] sm:$0xff]
        %v2892 = vld [vmem:[#allocation2 + $0x7a] sm:$0xff]
        %v2893 = vld [vmem:[#allocation2 + $0x82] sm:$0xff]
        %v2894 = vld [vmem:[#allocation2 + $0x92] sm:$0xff]
        %v2895 = vld [vmem:[#allocation2 + $0x9a] sm:$0xff]
        %v2896 = vld [vmem:[#allocation2 + $0xaa] sm:$0xff]
        %v2897 = vld [vmem:[#allocation2 + $0xb2] sm:$0xff]
        %s2898 = scalar_lea.vmem [#allocation11], 256
        %v2899 = vld [vmem:[%s2898] sm:$0xff]
        %v2900 = vld [vmem:[%s2898 + $0x8] sm:$0xff]
        %v2901 = vld [vmem:[%s2898 + $0x10] sm:$0xff]
        %v2902 = vld [vmem:[%s2898 + $0x18] sm:$0xff]
        %v2903 = vld [vmem:[%s2898 + $0x20] sm:$0xff]
        %v2904 = vld [vmem:[%s2898 + $0x28] sm:$0xff]
        %v2905 = vld [vmem:[%s2898 + $0x30] sm:$0xff]
        %v2906 = vld [vmem:[%s2898 + $0x38] sm:$0xff]
        %v2907 = vld [vmem:[%s2898 + $0x40] sm:$0xff]
        %v2908 = vld [vmem:[%s2898 + $0x48] sm:$0xff]
        %v2909 = vld [vmem:[%s2898 + $0x50] sm:$0xff]
        %v2910 = vld [vmem:[%s2898 + $0x58] sm:$0xff]
        %v2911 = vld [vmem:[%s2898 + $0x60] sm:$0xff]
        %v2912 = vld [vmem:[%s2898 + $0x68] sm:$0xff]
        %v2913 = vld [vmem:[%s2898 + $0x70] sm:$0xff]
        %v2914 = vld [vmem:[%s2898 + $0x78] sm:$0xff]
        %2915 = vmatprep.subr.mxu0 0.0
        %2916 = vmatpush1.msra.mxu0 %v2899
        %2917 = vmatprep.subr.mxu0 0.0
        %2918 = vmatpush1.msra.mxu0 %v2900
        %2919 = vmatprep.subr.mxu0 0.0
        %2920 = vmatpush1.msra.mxu0 %v2901
        %2921 = vmatprep.subr.mxu0 0.0
        %2922 = vmatpush1.msra.mxu0 %v2902
        %2923 = vmatprep.subr.mxu0 0.0
        %2924 = vmatpush1.msra.mxu0 %v2903
        %2925 = vmatprep.subr.mxu0 0.0
        %2926 = vmatpush1.msra.mxu0 %v2904
        %2927 = vmatprep.subr.mxu0 0.0
        %2928 = vmatpush1.msra.mxu0 %v2905
        %2929 = vmatprep.subr.mxu0 0.0
        %2930 = vmatpush1.msra.mxu0 %v2906
        %2931 = vmatprep.subr.mxu0 0.0
        %2932 = vmatpush1.msra.mxu0 %v2907
        %2933 = vmatprep.subr.mxu0 0.0
        %2934 = vmatpush1.msra.mxu0 %v2908
        %2935 = vmatprep.subr.mxu0 0.0
        %2936 = vmatpush1.msra.mxu0 %v2909
        %2937 = vmatprep.subr.mxu0 0.0
        %2938 = vmatpush1.msra.mxu0 %v2910
        %2939 = vmatprep.subr.mxu0 0.0
        %2940 = vmatpush1.msra.mxu0 %v2911
        %2941 = vmatprep.subr.mxu0 0.0
        %2942 = vmatpush1.msra.mxu0 %v2912
        %2943 = vmatprep.subr.mxu0 0.0
        %2944 = vmatpush1.msra.mxu0 %v2913
        %2945 = vmatprep.subr.mxu0 0.0
        %2946 = vmatpush1.msra.mxu0 %v2914
        %2947 = vmatprep.subr.mxu0 0.0
        %2948 = vmatpush1.msra.mxu0 0.0
        %2949 = vmatprep.subr.mxu0 0.0
        %2950 = vmatpush1.msra.mxu0 0.0
        %2951 = vmatprep.subr.mxu0 0.0
        %2952 = vmatpush1.msra.mxu0 0.0
        %2953 = vmatprep.subr.mxu0 0.0
        %2954 = vmatpush1.msra.mxu0 0.0
        %2955 = vmatprep.subr.mxu0 0.0
        %2956 = vmatpush1.msra.mxu0 0.0
        %2957 = vmatprep.subr.mxu0 0.0
        %2958 = vmatpush1.msra.mxu0 0.0
        %2959 = vmatprep.subr.mxu0 0.0
        %2960 = vmatpush1.msra.mxu0 0.0
        %2961 = vmatprep.subr.mxu0 0.0
        %2962 = vmatpush1.msra.mxu0 0.0
        %2963 = vmatprep.subr.mxu0 0.0
        %2964 = vmatpush1.msra.mxu0 0.0
        %2965 = vmatprep.subr.mxu0 0.0
        %2966 = vmatpush1.msra.mxu0 0.0
        %2967 = vmatprep.subr.mxu0 0.0
        %2968 = vmatpush1.msra.mxu0 0.0
        %2969 = vmatprep.subr.mxu0 0.0
        %2970 = vmatpush1.msra.mxu0 0.0
        %2971 = vmatprep.subr.mxu0 0.0
        %2972 = vmatpush1.msra.mxu0 0.0
        %2973 = vmatprep.subr.mxu0 0.0
        %2974 = vmatpush1.msra.mxu0 0.0
        %2975 = vmatprep.subr.mxu0 0.0
        %2976 = vmatpush1.msra.mxu0 0.0
        %2977 = vmatprep.subr.mxu0 0.0
        %2978 = vmatpush1.msra.mxu0 0.0
        %2979 = vmatprep.mubr.f32.mxu0 0.0
        %2980 = vmatmul.mubr.f32.gmra.mrb[0].mxu0 %v2882
        %v2981 = vpop.f32.mrb[0].mxu0
        %v2982 = vadd.f32 0.0, %v2981
        %v2983 = vpop.f32.mrb[0].mxu0
        %2984 = vmatprep.mubr.f32.mxu0 0.0
        %2985 = vmatmul.mubr.f32.gmra.mrb[0].mxu0 %v2883
        %v2986 = vpop.f32.mrb[0].mxu0
        %v2987 = vadd.f32 0.0, %v2986
        %v2988 = vpop.f32.mrb[0].mxu0
        %2989 = vmatprep.mubr.f32.mxu0 0.0
        %2990 = vmatmul.mubr.f32.gmra.mrb[0].mxu0 %v2884
        %v2991 = vpop.f32.mrb[0].mxu0
        %v2992 = vadd.f32 0.0, %v2991
        %v2993 = vpop.f32.mrb[0].mxu0
        %2994 = vmatprep.mubr.f32.mxu0 0.0
        %2995 = vmatmul.mubr.f32.gmra.mrb[0].mxu0 %v2885
        %v2996 = vpop.f32.mrb[0].mxu0
        %v2997 = vadd.f32 0.0, %v2996
        %v2998 = vpop.f32.mrb[0].mxu0
        %2999 = vmatprep.mubr.f32.mxu0 0.0
        %3000 = vmatmul.mubr.f32.gmra.mrb[0].mxu0 %v2886
        %v3001 = vpop.f32.mrb[0].mxu0
        %v3002 = vadd.f32 0.0, %v3001
        %v3003 = vpop.f32.mrb[0].mxu0
        %3004 = vmatprep.mubr.f32.mxu0 0.0
        %3005 = vmatmul.mubr.f32.gmra.mrb[0].mxu0 %v2887
        %v3006 = vpop.f32.mrb[0].mxu0
        %v3007 = vadd.f32 0.0, %v3006
        %v3008 = vpop.f32.mrb[0].mxu0
        %3009 = vmatprep.mubr.f32.mxu0 0.0
        %3010 = vmatmul.mubr.f32.gmra.mrb[0].mxu0 %v2888
        %v3011 = vpop.f32.mrb[0].mxu0
        %v3012 = vadd.f32 0.0, %v3011
        %v3013 = vpop.f32.mrb[0].mxu0
        %3014 = vmatprep.mubr.f32.mxu0 0.0
        %3015 = vmatmul.mubr.f32.gmra.mrb[0].mxu0 %v2889
        %v3016 = vpop.f32.mrb[0].mxu0
        %v3017 = vadd.f32 0.0, %v3016
        %v3018 = vpop.f32.mrb[0].mxu0
        %3019 = vmatprep.mubr.f32.mxu0 0.0
        %3020 = vmatmul.mubr.f32.gmra.mrb[0].mxu0 %v2890
        %v3021 = vpop.f32.mrb[0].mxu0
        %v3022 = vadd.f32 0.0, %v3021
        %v3023 = vpop.f32.mrb[0].mxu0
        %3024 = vmatprep.mubr.f32.mxu0 0.0
        %3025 = vmatmul.mubr.f32.gmra.mrb[0].mxu0 %v2891
        %v3026 = vpop.f32.mrb[0].mxu0
        %v3027 = vadd.f32 0.0, %v3026
        %v3028 = vpop.f32.mrb[0].mxu0
        %3029 = vmatprep.mubr.f32.mxu0 0.0
        %3030 = vmatmul.mubr.f32.gmra.mrb[0].mxu0 %v2892
        %v3031 = vpop.f32.mrb[0].mxu0
        %v3032 = vadd.f32 0.0, %v3031
        %v3033 = vpop.f32.mrb[0].mxu0
        %3034 = vmatprep.mubr.f32.mxu0 0.0
        %3035 = vmatmul.mubr.f32.gmra.mrb[0].mxu0 %v2893
        %v3036 = vpop.f32.mrb[0].mxu0
        %v3037 = vadd.f32 0.0, %v3036
        %v3038 = vpop.f32.mrb[0].mxu0
        %3039 = vmatprep.mubr.f32.mxu0 0.0
        %3040 = vmatmul.mubr.f32.gmra.mrb[0].mxu0 %v2894
        %v3041 = vpop.f32.mrb[0].mxu0
        %v3042 = vadd.f32 0.0, %v3041
        %v3043 = vpop.f32.mrb[0].mxu0
        %3044 = vmatprep.mubr.f32.mxu0 0.0
        %3045 = vmatmul.mubr.f32.gmra.mrb[0].mxu0 %v2895
        %v3046 = vpop.f32.mrb[0].mxu0
        %v3047 = vadd.f32 0.0, %v3046
        %v3048 = vpop.f32.mrb[0].mxu0
        %3049 = vmatprep.mubr.f32.mxu0 0.0
        %3050 = vmatmul.mubr.f32.gmra.mrb[0].mxu0 %v2896
        %v3051 = vpop.f32.mrb[0].mxu0
        %v3052 = vadd.f32 0.0, %v3051
        %v3053 = vpop.f32.mrb[0].mxu0
        %3054 = vmatprep.mubr.f32.mxu0 0.0
        %3055 = vmatmul.mubr.f32.gmra.mrb[0].mxu0 %v2897
        %v3056 = vpop.f32.mrb[0].mxu0
        %v3057 = vadd.f32 0.0, %v3056
        %v3058 = vpop.f32.mrb[0].mxu0
        %3059 = vdwg.mxu0
        %v3060 = vadd.f32 %v2804, %v2982
        %v3061 = vadd.f32 %v2809, %v2987
        %v3062 = vadd.f32 %v2814, %v2992
        %v3063 = vadd.f32 %v2819, %v2997
        %v3064 = vadd.f32 %v2824, %v3002
        %v3065 = vadd.f32 %v2829, %v3007
        %v3066 = vadd.f32 %v2834, %v3012
        %v3067 = vadd.f32 %v2839, %v3017
        %v3068 = vadd.f32 %v2844, %v3022
        %v3069 = vadd.f32 %v2849, %v3027
        %v3070 = vadd.f32 %v2854, %v3032
        %v3071 = vadd.f32 %v2859, %v3037
        %v3072 = vadd.f32 %v2864, %v3042
        %v3073 = vadd.f32 %v2869, %v3047
        %v3074 = vadd.f32 %v2874, %v3052
        %v3075 = vadd.f32 %v2879, %v3057
        %s3076 = scalar_lea.vmem [#allocation2], 24
        %v3077 = vld [vmem:[%s3076] sm:$0xff]
        %v3078 = vld [vmem:[%s3076 + $0x8] sm:$0xff]
        %v3079 = vld [vmem:[%s3076 + $0x18] sm:$0xff]
        %v3080 = vld [vmem:[%s3076 + $0x20] sm:$0xff]
        %v3081 = vld [vmem:[%s3076 + $0x30] sm:$0xff]
        %v3082 = vld [vmem:[%s3076 + $0x38] sm:$0xff]
        %v3083 = vld [vmem:[%s3076 + $0x48] sm:$0xff]
        %v3084 = vld [vmem:[%s3076 + $0x50] sm:$0xff]
        %v3085 = vld [vmem:[%s3076 + $0x60] sm:$0xff]
        %v3086 = vld [vmem:[%s3076 + $0x68] sm:$0xff]
        %v3087 = vld [vmem:[%s3076 + $0x78] sm:$0xff]
        %v3088 = vld [vmem:[%s3076 + $0x80] sm:$0xff]
        %v3089 = vld [vmem:[%s3076 + $0x90] sm:$0xff]
        %v3090 = vld [vmem:[%s3076 + $0x98] sm:$0xff]
        %v3091 = vld [vmem:[%s3076 + $0xa8] sm:$0xff]
        %v3092 = vld [vmem:[%s3076 + $0xb0] sm:$0xff]
        %s3093 = scalar_lea.vmem [#allocation11], 384
        %v3094 = vld [vmem:[%s3093] sm:$0xff]
        %v3095 = vld [vmem:[%s3093 + $0x8] sm:$0xff]
        %v3096 = vld [vmem:[%s3093 + $0x10] sm:$0xff]
        %v3097 = vld [vmem:[%s3093 + $0x18] sm:$0xff]
        %v3098 = vld [vmem:[%s3093 + $0x20] sm:$0xff]
        %v3099 = vld [vmem:[%s3093 + $0x28] sm:$0xff]
        %v3100 = vld [vmem:[%s3093 + $0x30] sm:$0xff]
        %v3101 = vld [vmem:[%s3093 + $0x38] sm:$0xff]
        %v3102 = vld [vmem:[%s3093 + $0x40] sm:$0xff]
        %v3103 = vld [vmem:[%s3093 + $0x48] sm:$0xff]
        %v3104 = vld [vmem:[%s3093 + $0x50] sm:$0xff]
        %v3105 = vld [vmem:[%s3093 + $0x58] sm:$0xff]
        %v3106 = vld [vmem:[%s3093 + $0x60] sm:$0xff]
        %v3107 = vld [vmem:[%s3093 + $0x68] sm:$0xff]
        %v3108 = vld [vmem:[%s3093 + $0x70] sm:$0xff]
        %v3109 = vld [vmem:[%s3093 + $0x78] sm:$0xff]
        %3110 = vmatprep.subr.mxu0 0.0
        %3111 = vmatpush1.msra.mxu0 %v3094
        %3112 = vmatprep.subr.mxu0 0.0
        %3113 = vmatpush1.msra.mxu0 %v3095
        %3114 = vmatprep.subr.mxu0 0.0
        %3115 = vmatpush1.msra.mxu0 %v3096
        %3116 = vmatprep.subr.mxu0 0.0
        %3117 = vmatpush1.msra.mxu0 %v3097
        %3118 = vmatprep.subr.mxu0 0.0
        %3119 = vmatpush1.msra.mxu0 %v3098
        %3120 = vmatprep.subr.mxu0 0.0
        %3121 = vmatpush1.msra.mxu0 %v3099
        %3122 = vmatprep.subr.mxu0 0.0
        %3123 = vmatpush1.msra.mxu0 %v3100
        %3124 = vmatprep.subr.mxu0 0.0
        %3125 = vmatpush1.msra.mxu0 %v3101
        %3126 = vmatprep.subr.mxu0 0.0
        %3127 = vmatpush1.msra.mxu0 %v3102
        %3128 = vmatprep.subr.mxu0 0.0
        %3129 = vmatpush1.msra.mxu0 %v3103
        %3130 = vmatprep.subr.mxu0 0.0
        %3131 = vmatpush1.msra.mxu0 %v3104
        %3132 = vmatprep.subr.mxu0 0.0
        %3133 = vmatpush1.msra.mxu0 %v3105
        %3134 = vmatprep.subr.mxu0 0.0
        %3135 = vmatpush1.msra.mxu0 %v3106
        %3136 = vmatprep.subr.mxu0 0.0
        %3137 = vmatpush1.msra.mxu0 %v3107
        %3138 = vmatprep.subr.mxu0 0.0
        %3139 = vmatpush1.msra.mxu0 %v3108
        %3140 = vmatprep.subr.mxu0 0.0
        %3141 = vmatpush1.msra.mxu0 %v3109
        %3142 = vmatprep.subr.mxu0 0.0
        %3143 = vmatpush1.msra.mxu0 0.0
        %3144 = vmatprep.subr.mxu0 0.0
        %3145 = vmatpush1.msra.mxu0 0.0
        %3146 = vmatprep.subr.mxu0 0.0
        %3147 = vmatpush1.msra.mxu0 0.0
        %3148 = vmatprep.subr.mxu0 0.0
        %3149 = vmatpush1.msra.mxu0 0.0
        %3150 = vmatprep.subr.mxu0 0.0
        %3151 = vmatpush1.msra.mxu0 0.0
        %3152 = vmatprep.subr.mxu0 0.0
        %3153 = vmatpush1.msra.mxu0 0.0
        %3154 = vmatprep.subr.mxu0 0.0
        %3155 = vmatpush1.msra.mxu0 0.0
        %3156 = vmatprep.subr.mxu0 0.0
        %3157 = vmatpush1.msra.mxu0 0.0
        %3158 = vmatprep.subr.mxu0 0.0
        %3159 = vmatpush1.msra.mxu0 0.0
        %3160 = vmatprep.subr.mxu0 0.0
        %3161 = vmatpush1.msra.mxu0 0.0
        %3162 = vmatprep.subr.mxu0 0.0
        %3163 = vmatpush1.msra.mxu0 0.0
        %3164 = vmatprep.subr.mxu0 0.0
        %3165 = vmatpush1.msra.mxu0 0.0
        %3166 = vmatprep.subr.mxu0 0.0
        %3167 = vmatpush1.msra.mxu0 0.0
        %3168 = vmatprep.subr.mxu0 0.0
        %3169 = vmatpush1.msra.mxu0 0.0
        %3170 = vmatprep.subr.mxu0 0.0
        %3171 = vmatpush1.msra.mxu0 0.0
        %3172 = vmatprep.subr.mxu0 0.0
        %3173 = vmatpush1.msra.mxu0 0.0
        %3174 = vmatprep.mubr.f32.mxu0 0.0
        %3175 = vmatmul.mubr.f32.gmra.mrb[0].mxu0 %v3077
        %v3176 = vpop.f32.mrb[0].mxu0
        %v3177 = vadd.f32 0.0, %v3176
        %v3178 = vpop.f32.mrb[0].mxu0
        %3179 = vmatprep.mubr.f32.mxu0 0.0
        %3180 = vmatmul.mubr.f32.gmra.mrb[0].mxu0 %v3078
        %v3181 = vpop.f32.mrb[0].mxu0
        %v3182 = vadd.f32 0.0, %v3181
        %v3183 = vpop.f32.mrb[0].mxu0
        %3184 = vmatprep.mubr.f32.mxu0 0.0
        %3185 = vmatmul.mubr.f32.gmra.mrb[0].mxu0 %v3079
        %v3186 = vpop.f32.mrb[0].mxu0
        %v3187 = vadd.f32 0.0, %v3186
        %v3188 = vpop.f32.mrb[0].mxu0
        %3189 = vmatprep.mubr.f32.mxu0 0.0
        %3190 = vmatmul.mubr.f32.gmra.mrb[0].mxu0 %v3080
        %v3191 = vpop.f32.mrb[0].mxu0
        %v3192 = vadd.f32 0.0, %v3191
        %v3193 = vpop.f32.mrb[0].mxu0
        %3194 = vmatprep.mubr.f32.mxu0 0.0
        %3195 = vmatmul.mubr.f32.gmra.mrb[0].mxu0 %v3081
        %v3196 = vpop.f32.mrb[0].mxu0
        %v3197 = vadd.f32 0.0, %v3196
        %v3198 = vpop.f32.mrb[0].mxu0
        %3199 = vmatprep.mubr.f32.mxu0 0.0
        %3200 = vmatmul.mubr.f32.gmra.mrb[0].mxu0 %v3082
        %v3201 = vpop.f32.mrb[0].mxu0
        %v3202 = vadd.f32 0.0, %v3201
        %v3203 = vpop.f32.mrb[0].mxu0
        %3204 = vmatprep.mubr.f32.mxu0 0.0
        %3205 = vmatmul.mubr.f32.gmra.mrb[0].mxu0 %v3083
        %v3206 = vpop.f32.mrb[0].mxu0
        %v3207 = vadd.f32 0.0, %v3206
        %v3208 = vpop.f32.mrb[0].mxu0
        %3209 = vmatprep.mubr.f32.mxu0 0.0
        %3210 = vmatmul.mubr.f32.gmra.mrb[0].mxu0 %v3084
        %v3211 = vpop.f32.mrb[0].mxu0
        %v3212 = vadd.f32 0.0, %v3211
        %v3213 = vpop.f32.mrb[0].mxu0
        %3214 = vmatprep.mubr.f32.mxu0 0.0
        %3215 = vmatmul.mubr.f32.gmra.mrb[0].mxu0 %v3085
        %v3216 = vpop.f32.mrb[0].mxu0
        %v3217 = vadd.f32 0.0, %v3216
        %v3218 = vpop.f32.mrb[0].mxu0
        %3219 = vmatprep.mubr.f32.mxu0 0.0
        %3220 = vmatmul.mubr.f32.gmra.mrb[0].mxu0 %v3086
        %v3221 = vpop.f32.mrb[0].mxu0
        %v3222 = vadd.f32 0.0, %v3221
        %v3223 = vpop.f32.mrb[0].mxu0
        %3224 = vmatprep.mubr.f32.mxu0 0.0
        %3225 = vmatmul.mubr.f32.gmra.mrb[0].mxu0 %v3087
        %v3226 = vpop.f32.mrb[0].mxu0
        %v3227 = vadd.f32 0.0, %v3226
        %v3228 = vpop.f32.mrb[0].mxu0
        %3229 = vmatprep.mubr.f32.mxu0 0.0
        %3230 = vmatmul.mubr.f32.gmra.mrb[0].mxu0 %v3088
        %v3231 = vpop.f32.mrb[0].mxu0
        %v3232 = vadd.f32 0.0, %v3231
        %v3233 = vpop.f32.mrb[0].mxu0
        %3234 = vmatprep.mubr.f32.mxu0 0.0
        %3235 = vmatmul.mubr.f32.gmra.mrb[0].mxu0 %v3089
        %v3236 = vpop.f32.mrb[0].mxu0
        %v3237 = vadd.f32 0.0, %v3236
        %v3238 = vpop.f32.mrb[0].mxu0
        %3239 = vmatprep.mubr.f32.mxu0 0.0
        %3240 = vmatmul.mubr.f32.gmra.mrb[0].mxu0 %v3090
        %v3241 = vpop.f32.mrb[0].mxu0
        %v3242 = vadd.f32 0.0, %v3241
        %v3243 = vpop.f32.mrb[0].mxu0
        %3244 = vmatprep.mubr.f32.mxu0 0.0
        %3245 = vmatmul.mubr.f32.gmra.mrb[0].mxu0 %v3091
        %v3246 = vpop.f32.mrb[0].mxu0
        %v3247 = vadd.f32 0.0, %v3246
        %v3248 = vpop.f32.mrb[0].mxu0
        %3249 = vmatprep.mubr.f32.mxu0 0.0
        %3250 = vmatmul.mubr.f32.gmra.mrb[0].mxu0 %v3092
        %v3251 = vpop.f32.mrb[0].mxu0
        %v3252 = vadd.f32 0.0, %v3251
        %v3253 = vpop.f32.mrb[0].mxu0
        %3254 = vdwg.mxu0
        %v3255 = vadd.f32 %v3060, %v3177
        %v3256 = vadd.f32 %v3061, %v3182
        %v3257 = vadd.f32 %v3062, %v3187
        %v3258 = vadd.f32 %v3063, %v3192
        %v3259 = vadd.f32 %v3064, %v3197
        %v3260 = vadd.f32 %v3065, %v3202
        %v3261 = vadd.f32 %v3066, %v3207
        %v3262 = vadd.f32 %v3067, %v3212
        %v3263 = vadd.f32 %v3068, %v3217
        %v3264 = vadd.f32 %v3069, %v3222
        %v3265 = vadd.f32 %v3070, %v3227
        %v3266 = vadd.f32 %v3071, %v3232
        %v3267 = vadd.f32 %v3072, %v3237
        %v3268 = vadd.f32 %v3073, %v3242
        %v3269 = vadd.f32 %v3074, %v3247
        %v3270 = vadd.f32 %v3075, %v3252
        %v3271 = vld [vmem:[%s3076 + $0x1] sm:$0xff]
        %v3272 = vld [vmem:[%s3076 + $0x9] sm:$0xff]
        %v3273 = vld [vmem:[%s3076 + $0x19] sm:$0xff]
        %v3274 = vld [vmem:[%s3076 + $0x21] sm:$0xff]
        %v3275 = vld [vmem:[%s3076 + $0x31] sm:$0xff]
        %v3276 = vld [vmem:[%s3076 + $0x39] sm:$0xff]
        %v3277 = vld [vmem:[%s3076 + $0x49] sm:$0xff]
        %v3278 = vld [vmem:[%s3076 + $0x51] sm:$0xff]
        %v3279 = vld [vmem:[%s3076 + $0x61] sm:$0xff]
        %v3280 = vld [vmem:[%s3076 + $0x69] sm:$0xff]
        %v3281 = vld [vmem:[%s3076 + $0x79] sm:$0xff]
        %v3282 = vld [vmem:[%s3076 + $0x81] sm:$0xff]
        %v3283 = vld [vmem:[%s3076 + $0x91] sm:$0xff]
        %v3284 = vld [vmem:[%s3076 + $0x99] sm:$0xff]
        %v3285 = vld [vmem:[%s3076 + $0xa9] sm:$0xff]
        %v3286 = vld [vmem:[%s3076 + $0xb1] sm:$0xff]
        %s3287 = scalar_lea.vmem [#allocation11], 512
        %v3288 = vld [vmem:[%s3287] sm:$0xff]
        %v3289 = vld [vmem:[%s3287 + $0x8] sm:$0xff]
        %v3290 = vld [vmem:[%s3287 + $0x10] sm:$0xff]
        %v3291 = vld [vmem:[%s3287 + $0x18] sm:$0xff]
        %v3292 = vld [vmem:[%s3287 + $0x20] sm:$0xff]
        %v3293 = vld [vmem:[%s3287 + $0x28] sm:$0xff]
        %v3294 = vld [vmem:[%s3287 + $0x30] sm:$0xff]
        %v3295 = vld [vmem:[%s3287 + $0x38] sm:$0xff]
        %v3296 = vld [vmem:[%s3287 + $0x40] sm:$0xff]
        %v3297 = vld [vmem:[%s3287 + $0x48] sm:$0xff]
        %v3298 = vld [vmem:[%s3287 + $0x50] sm:$0xff]
        %v3299 = vld [vmem:[%s3287 + $0x58] sm:$0xff]
        %v3300 = vld [vmem:[%s3287 + $0x60] sm:$0xff]
        %v3301 = vld [vmem:[%s3287 + $0x68] sm:$0xff]
        %v3302 = vld [vmem:[%s3287 + $0x70] sm:$0xff]
        %v3303 = vld [vmem:[%s3287 + $0x78] sm:$0xff]
        %3304 = vmatprep.subr.mxu0 0.0
        %3305 = vmatpush1.msra.mxu0 %v3288
        %3306 = vmatprep.subr.mxu0 0.0
        %3307 = vmatpush1.msra.mxu0 %v3289
        %3308 = vmatprep.subr.mxu0 0.0
        %3309 = vmatpush1.msra.mxu0 %v3290
        %3310 = vmatprep.subr.mxu0 0.0
        %3311 = vmatpush1.msra.mxu0 %v3291
        %3312 = vmatprep.subr.mxu0 0.0
        %3313 = vmatpush1.msra.mxu0 %v3292
        %3314 = vmatprep.subr.mxu0 0.0
        %3315 = vmatpush1.msra.mxu0 %v3293
        %3316 = vmatprep.subr.mxu0 0.0
        %3317 = vmatpush1.msra.mxu0 %v3294
        %3318 = vmatprep.subr.mxu0 0.0
        %3319 = vmatpush1.msra.mxu0 %v3295
        %3320 = vmatprep.subr.mxu0 0.0
        %3321 = vmatpush1.msra.mxu0 %v3296
        %3322 = vmatprep.subr.mxu0 0.0
        %3323 = vmatpush1.msra.mxu0 %v3297
        %3324 = vmatprep.subr.mxu0 0.0
        %3325 = vmatpush1.msra.mxu0 %v3298
        %3326 = vmatprep.subr.mxu0 0.0
        %3327 = vmatpush1.msra.mxu0 %v3299
        %3328 = vmatprep.subr.mxu0 0.0
        %3329 = vmatpush1.msra.mxu0 %v3300
        %3330 = vmatprep.subr.mxu0 0.0
        %3331 = vmatpush1.msra.mxu0 %v3301
        %3332 = vmatprep.subr.mxu0 0.0
        %3333 = vmatpush1.msra.mxu0 %v3302
        %3334 = vmatprep.subr.mxu0 0.0
        %3335 = vmatpush1.msra.mxu0 %v3303
        %3336 = vmatprep.subr.mxu0 0.0
        %3337 = vmatpush1.msra.mxu0 0.0
        %3338 = vmatprep.subr.mxu0 0.0
        %3339 = vmatpush1.msra.mxu0 0.0
        %3340 = vmatprep.subr.mxu0 0.0
        %3341 = vmatpush1.msra.mxu0 0.0
        %3342 = vmatprep.subr.mxu0 0.0
        %3343 = vmatpush1.msra.mxu0 0.0
        %3344 = vmatprep.subr.mxu0 0.0
        %3345 = vmatpush1.msra.mxu0 0.0
        %3346 = vmatprep.subr.mxu0 0.0
        %3347 = vmatpush1.msra.mxu0 0.0
        %3348 = vmatprep.subr.mxu0 0.0
        %3349 = vmatpush1.msra.mxu0 0.0
        %3350 = vmatprep.subr.mxu0 0.0
        %3351 = vmatpush1.msra.mxu0 0.0
        %3352 = vmatprep.subr.mxu0 0.0
        %3353 = vmatpush1.msra.mxu0 0.0
        %3354 = vmatprep.subr.mxu0 0.0
        %3355 = vmatpush1.msra.mxu0 0.0
        %3356 = vmatprep.subr.mxu0 0.0
        %3357 = vmatpush1.msra.mxu0 0.0
        %3358 = vmatprep.subr.mxu0 0.0
        %3359 = vmatpush1.msra.mxu0 0.0
        %3360 = vmatprep.subr.mxu0 0.0
        %3361 = vmatpush1.msra.mxu0 0.0
        %3362 = vmatprep.subr.mxu0 0.0
        %3363 = vmatpush1.msra.mxu0 0.0
        %3364 = vmatprep.subr.mxu0 0.0
        %3365 = vmatpush1.msra.mxu0 0.0
        %3366 = vmatprep.subr.mxu0 0.0
        %3367 = vmatpush1.msra.mxu0 0.0
        %3368 = vmatprep.mubr.f32.mxu0 0.0
        %3369 = vmatmul.mubr.f32.gmra.mrb[0].mxu0 %v3271
        %v3370 = vpop.f32.mrb[0].mxu0
        %v3371 = vadd.f32 0.0, %v3370
        %v3372 = vpop.f32.mrb[0].mxu0
        %3373 = vmatprep.mubr.f32.mxu0 0.0
        %3374 = vmatmul.mubr.f32.gmra.mrb[0].mxu0 %v3272
        %v3375 = vpop.f32.mrb[0].mxu0
        %v3376 = vadd.f32 0.0, %v3375
        %v3377 = vpop.f32.mrb[0].mxu0
        %3378 = vmatprep.mubr.f32.mxu0 0.0
        %3379 = vmatmul.mubr.f32.gmra.mrb[0].mxu0 %v3273
        %v3380 = vpop.f32.mrb[0].mxu0
        %v3381 = vadd.f32 0.0, %v3380
        %v3382 = vpop.f32.mrb[0].mxu0
        %3383 = vmatprep.mubr.f32.mxu0 0.0
        %3384 = vmatmul.mubr.f32.gmra.mrb[0].mxu0 %v3274
        %v3385 = vpop.f32.mrb[0].mxu0
        %v3386 = vadd.f32 0.0, %v3385
        %v3387 = vpop.f32.mrb[0].mxu0
        %3388 = vmatprep.mubr.f32.mxu0 0.0
        %3389 = vmatmul.mubr.f32.gmra.mrb[0].mxu0 %v3275
        %v3390 = vpop.f32.mrb[0].mxu0
        %v3391 = vadd.f32 0.0, %v3390
        %v3392 = vpop.f32.mrb[0].mxu0
        %3393 = vmatprep.mubr.f32.mxu0 0.0
        %3394 = vmatmul.mubr.f32.gmra.mrb[0].mxu0 %v3276
        %v3395 = vpop.f32.mrb[0].mxu0
        %v3396 = vadd.f32 0.0, %v3395
        %v3397 = vpop.f32.mrb[0].mxu0
        %3398 = vmatprep.mubr.f32.mxu0 0.0
        %3399 = vmatmul.mubr.f32.gmra.mrb[0].mxu0 %v3277
        %v3400 = vpop.f32.mrb[0].mxu0
        %v3401 = vadd.f32 0.0, %v3400
        %v3402 = vpop.f32.mrb[0].mxu0
        %3403 = vmatprep.mubr.f32.mxu0 0.0
        %3404 = vmatmul.mubr.f32.gmra.mrb[0].mxu0 %v3278
        %v3405 = vpop.f32.mrb[0].mxu0
        %v3406 = vadd.f32 0.0, %v3405
        %v3407 = vpop.f32.mrb[0].mxu0
        %3408 = vmatprep.mubr.f32.mxu0 0.0
        %3409 = vmatmul.mubr.f32.gmra.mrb[0].mxu0 %v3279
        %v3410 = vpop.f32.mrb[0].mxu0
        %v3411 = vadd.f32 0.0, %v3410
        %v3412 = vpop.f32.mrb[0].mxu0
        %3413 = vmatprep.mubr.f32.mxu0 0.0
        %3414 = vmatmul.mubr.f32.gmra.mrb[0].mxu0 %v3280
        %v3415 = vpop.f32.mrb[0].mxu0
        %v3416 = vadd.f32 0.0, %v3415
        %v3417 = vpop.f32.mrb[0].mxu0
        %3418 = vmatprep.mubr.f32.mxu0 0.0
        %3419 = vmatmul.mubr.f32.gmra.mrb[0].mxu0 %v3281
        %v3420 = vpop.f32.mrb[0].mxu0
        %v3421 = vadd.f32 0.0, %v3420
        %v3422 = vpop.f32.mrb[0].mxu0
        %3423 = vmatprep.mubr.f32.mxu0 0.0
        %3424 = vmatmul.mubr.f32.gmra.mrb[0].mxu0 %v3282
        %v3425 = vpop.f32.mrb[0].mxu0
        %v3426 = vadd.f32 0.0, %v3425
        %v3427 = vpop.f32.mrb[0].mxu0
        %3428 = vmatprep.mubr.f32.mxu0 0.0
        %3429 = vmatmul.mubr.f32.gmra.mrb[0].mxu0 %v3283
        %v3430 = vpop.f32.mrb[0].mxu0
        %v3431 = vadd.f32 0.0, %v3430
        %v3432 = vpop.f32.mrb[0].mxu0
        %3433 = vmatprep.mubr.f32.mxu0 0.0
        %3434 = vmatmul.mubr.f32.gmra.mrb[0].mxu0 %v3284
        %v3435 = vpop.f32.mrb[0].mxu0
        %v3436 = vadd.f32 0.0, %v3435
        %v3437 = vpop.f32.mrb[0].mxu0
        %3438 = vmatprep.mubr.f32.mxu0 0.0
        %3439 = vmatmul.mubr.f32.gmra.mrb[0].mxu0 %v3285
        %v3440 = vpop.f32.mrb[0].mxu0
        %v3441 = vadd.f32 0.0, %v3440
        %v3442 = vpop.f32.mrb[0].mxu0
        %3443 = vmatprep.mubr.f32.mxu0 0.0
        %3444 = vmatmul.mubr.f32.gmra.mrb[0].mxu0 %v3286
        %v3445 = vpop.f32.mrb[0].mxu0
        %v3446 = vadd.f32 0.0, %v3445
        %v3447 = vpop.f32.mrb[0].mxu0
        %3448 = vdwg.mxu0
        %v3449 = vadd.f32 %v3255, %v3371
        %v3450 = vadd.f32 %v3256, %v3376
        %v3451 = vadd.f32 %v3257, %v3381
        %v3452 = vadd.f32 %v3258, %v3386
        %v3453 = vadd.f32 %v3259, %v3391
        %v3454 = vadd.f32 %v3260, %v3396
        %v3455 = vadd.f32 %v3261, %v3401
        %v3456 = vadd.f32 %v3262, %v3406
        %v3457 = vadd.f32 %v3263, %v3411
        %v3458 = vadd.f32 %v3264, %v3416
        %v3459 = vadd.f32 %v3265, %v3421
        %v3460 = vadd.f32 %v3266, %v3426
        %v3461 = vadd.f32 %v3267, %v3431
        %v3462 = vadd.f32 %v3268, %v3436
        %v3463 = vadd.f32 %v3269, %v3441
        %v3464 = vadd.f32 %v3270, %v3446
        %v3465 = vld [vmem:[%s3076 + $0x2] sm:$0xff]
        %v3466 = vld [vmem:[%s3076 + $0xa] sm:$0xff]
        %v3467 = vld [vmem:[%s3076 + $0x1a] sm:$0xff]
        %v3468 = vld [vmem:[%s3076 + $0x22] sm:$0xff]
        %v3469 = vld [vmem:[%s3076 + $0x32] sm:$0xff]
        %v3470 = vld [vmem:[%s3076 + $0x3a] sm:$0xff]
        %v3471 = vld [vmem:[%s3076 + $0x4a] sm:$0xff]
        %v3472 = vld [vmem:[%s3076 + $0x52] sm:$0xff]
        %v3473 = vld [vmem:[%s3076 + $0x62] sm:$0xff]
        %v3474 = vld [vmem:[%s3076 + $0x6a] sm:$0xff]
        %v3475 = vld [vmem:[%s3076 + $0x7a] sm:$0xff]
        %v3476 = vld [vmem:[%s3076 + $0x82] sm:$0xff]
        %v3477 = vld [vmem:[%s3076 + $0x92] sm:$0xff]
        %v3478 = vld [vmem:[%s3076 + $0x9a] sm:$0xff]
        %v3479 = vld [vmem:[%s3076 + $0xaa] sm:$0xff]
        %v3480 = vld [vmem:[%s3076 + $0xb2] sm:$0xff]
        %s3481 = scalar_lea.vmem [#allocation11], 640
        %v3482 = vld [vmem:[%s3481] sm:$0xff]
        %v3483 = vld [vmem:[%s3481 + $0x8] sm:$0xff]
        %v3484 = vld [vmem:[%s3481 + $0x10] sm:$0xff]
        %v3485 = vld [vmem:[%s3481 + $0x18] sm:$0xff]
        %v3486 = vld [vmem:[%s3481 + $0x20] sm:$0xff]
        %v3487 = vld [vmem:[%s3481 + $0x28] sm:$0xff]
        %v3488 = vld [vmem:[%s3481 + $0x30] sm:$0xff]
        %v3489 = vld [vmem:[%s3481 + $0x38] sm:$0xff]
        %v3490 = vld [vmem:[%s3481 + $0x40] sm:$0xff]
        %v3491 = vld [vmem:[%s3481 + $0x48] sm:$0xff]
        %v3492 = vld [vmem:[%s3481 + $0x50] sm:$0xff]
        %v3493 = vld [vmem:[%s3481 + $0x58] sm:$0xff]
        %v3494 = vld [vmem:[%s3481 + $0x60] sm:$0xff]
        %v3495 = vld [vmem:[%s3481 + $0x68] sm:$0xff]
        %v3496 = vld [vmem:[%s3481 + $0x70] sm:$0xff]
        %v3497 = vld [vmem:[%s3481 + $0x78] sm:$0xff]
        %3498 = vmatprep.subr.mxu0 0.0
        %3499 = vmatpush1.msra.mxu0 %v3482
        %3500 = vmatprep.subr.mxu0 0.0
        %3501 = vmatpush1.msra.mxu0 %v3483
        %3502 = vmatprep.subr.mxu0 0.0
        %3503 = vmatpush1.msra.mxu0 %v3484
        %3504 = vmatprep.subr.mxu0 0.0
        %3505 = vmatpush1.msra.mxu0 %v3485
        %3506 = vmatprep.subr.mxu0 0.0
        %3507 = vmatpush1.msra.mxu0 %v3486
        %3508 = vmatprep.subr.mxu0 0.0
        %3509 = vmatpush1.msra.mxu0 %v3487
        %3510 = vmatprep.subr.mxu0 0.0
        %3511 = vmatpush1.msra.mxu0 %v3488
        %3512 = vmatprep.subr.mxu0 0.0
        %3513 = vmatpush1.msra.mxu0 %v3489
        %3514 = vmatprep.subr.mxu0 0.0
        %3515 = vmatpush1.msra.mxu0 %v3490
        %3516 = vmatprep.subr.mxu0 0.0
        %3517 = vmatpush1.msra.mxu0 %v3491
        %3518 = vmatprep.subr.mxu0 0.0
        %3519 = vmatpush1.msra.mxu0 %v3492
        %3520 = vmatprep.subr.mxu0 0.0
        %3521 = vmatpush1.msra.mxu0 %v3493
        %3522 = vmatprep.subr.mxu0 0.0
        %3523 = vmatpush1.msra.mxu0 %v3494
        %3524 = vmatprep.subr.mxu0 0.0
        %3525 = vmatpush1.msra.mxu0 %v3495
        %3526 = vmatprep.subr.mxu0 0.0
        %3527 = vmatpush1.msra.mxu0 %v3496
        %3528 = vmatprep.subr.mxu0 0.0
        %3529 = vmatpush1.msra.mxu0 %v3497
        %3530 = vmatprep.subr.mxu0 0.0
        %3531 = vmatpush1.msra.mxu0 0.0
        %3532 = vmatprep.subr.mxu0 0.0
        %3533 = vmatpush1.msra.mxu0 0.0
        %3534 = vmatprep.subr.mxu0 0.0
        %3535 = vmatpush1.msra.mxu0 0.0
        %3536 = vmatprep.subr.mxu0 0.0
        %3537 = vmatpush1.msra.mxu0 0.0
        %3538 = vmatprep.subr.mxu0 0.0
        %3539 = vmatpush1.msra.mxu0 0.0
        %3540 = vmatprep.subr.mxu0 0.0
        %3541 = vmatpush1.msra.mxu0 0.0
        %3542 = vmatprep.subr.mxu0 0.0
        %3543 = vmatpush1.msra.mxu0 0.0
        %3544 = vmatprep.subr.mxu0 0.0
        %3545 = vmatpush1.msra.mxu0 0.0
        %3546 = vmatprep.subr.mxu0 0.0
        %3547 = vmatpush1.msra.mxu0 0.0
        %3548 = vmatprep.subr.mxu0 0.0
        %3549 = vmatpush1.msra.mxu0 0.0
        %3550 = vmatprep.subr.mxu0 0.0
        %3551 = vmatpush1.msra.mxu0 0.0
        %3552 = vmatprep.subr.mxu0 0.0
        %3553 = vmatpush1.msra.mxu0 0.0
        %3554 = vmatprep.subr.mxu0 0.0
        %3555 = vmatpush1.msra.mxu0 0.0
        %3556 = vmatprep.subr.mxu0 0.0
        %3557 = vmatpush1.msra.mxu0 0.0
        %3558 = vmatprep.subr.mxu0 0.0
        %3559 = vmatpush1.msra.mxu0 0.0
        %3560 = vmatprep.subr.mxu0 0.0
        %3561 = vmatpush1.msra.mxu0 0.0
        %3562 = vmatprep.mubr.f32.mxu0 0.0
        %3563 = vmatmul.mubr.f32.gmra.mrb[0].mxu0 %v3465
        %v3564 = vpop.f32.mrb[0].mxu0
        %v3565 = vadd.f32 0.0, %v3564
        %v3566 = vpop.f32.mrb[0].mxu0
        %3567 = vmatprep.mubr.f32.mxu0 0.0
        %3568 = vmatmul.mubr.f32.gmra.mrb[0].mxu0 %v3466
        %v3569 = vpop.f32.mrb[0].mxu0
        %v3570 = vadd.f32 0.0, %v3569
        %v3571 = vpop.f32.mrb[0].mxu0
        %3572 = vmatprep.mubr.f32.mxu0 0.0
        %3573 = vmatmul.mubr.f32.gmra.mrb[0].mxu0 %v3467
        %v3574 = vpop.f32.mrb[0].mxu0
        %v3575 = vadd.f32 0.0, %v3574
        %v3576 = vpop.f32.mrb[0].mxu0
        %3577 = vmatprep.mubr.f32.mxu0 0.0
        %3578 = vmatmul.mubr.f32.gmra.mrb[0].mxu0 %v3468
        %v3579 = vpop.f32.mrb[0].mxu0
        %v3580 = vadd.f32 0.0, %v3579
        %v3581 = vpop.f32.mrb[0].mxu0
        %3582 = vmatprep.mubr.f32.mxu0 0.0
        %3583 = vmatmul.mubr.f32.gmra.mrb[0].mxu0 %v3469
        %v3584 = vpop.f32.mrb[0].mxu0
        %v3585 = vadd.f32 0.0, %v3584
        %v3586 = vpop.f32.mrb[0].mxu0
        %3587 = vmatprep.mubr.f32.mxu0 0.0
        %3588 = vmatmul.mubr.f32.gmra.mrb[0].mxu0 %v3470
        %v3589 = vpop.f32.mrb[0].mxu0
        %v3590 = vadd.f32 0.0, %v3589
        %v3591 = vpop.f32.mrb[0].mxu0
        %3592 = vmatprep.mubr.f32.mxu0 0.0
        %3593 = vmatmul.mubr.f32.gmra.mrb[0].mxu0 %v3471
        %v3594 = vpop.f32.mrb[0].mxu0
        %v3595 = vadd.f32 0.0, %v3594
        %v3596 = vpop.f32.mrb[0].mxu0
        %3597 = vmatprep.mubr.f32.mxu0 0.0
        %3598 = vmatmul.mubr.f32.gmra.mrb[0].mxu0 %v3472
        %v3599 = vpop.f32.mrb[0].mxu0
        %v3600 = vadd.f32 0.0, %v3599
        %v3601 = vpop.f32.mrb[0].mxu0
        %3602 = vmatprep.mubr.f32.mxu0 0.0
        %3603 = vmatmul.mubr.f32.gmra.mrb[0].mxu0 %v3473
        %v3604 = vpop.f32.mrb[0].mxu0
        %v3605 = vadd.f32 0.0, %v3604
        %v3606 = vpop.f32.mrb[0].mxu0
        %3607 = vmatprep.mubr.f32.mxu0 0.0
        %3608 = vmatmul.mubr.f32.gmra.mrb[0].mxu0 %v3474
        %v3609 = vpop.f32.mrb[0].mxu0
        %v3610 = vadd.f32 0.0, %v3609
        %v3611 = vpop.f32.mrb[0].mxu0
        %3612 = vmatprep.mubr.f32.mxu0 0.0
        %3613 = vmatmul.mubr.f32.gmra.mrb[0].mxu0 %v3475
        %v3614 = vpop.f32.mrb[0].mxu0
        %v3615 = vadd.f32 0.0, %v3614
        %v3616 = vpop.f32.mrb[0].mxu0
        %3617 = vmatprep.mubr.f32.mxu0 0.0
        %3618 = vmatmul.mubr.f32.gmra.mrb[0].mxu0 %v3476
        %v3619 = vpop.f32.mrb[0].mxu0
        %v3620 = vadd.f32 0.0, %v3619
        %v3621 = vpop.f32.mrb[0].mxu0
        %3622 = vmatprep.mubr.f32.mxu0 0.0
        %3623 = vmatmul.mubr.f32.gmra.mrb[0].mxu0 %v3477
        %v3624 = vpop.f32.mrb[0].mxu0
        %v3625 = vadd.f32 0.0, %v3624
        %v3626 = vpop.f32.mrb[0].mxu0
        %3627 = vmatprep.mubr.f32.mxu0 0.0
        %3628 = vmatmul.mubr.f32.gmra.mrb[0].mxu0 %v3478
        %v3629 = vpop.f32.mrb[0].mxu0
        %v3630 = vadd.f32 0.0, %v3629
        %v3631 = vpop.f32.mrb[0].mxu0
        %3632 = vmatprep.mubr.f32.mxu0 0.0
        %3633 = vmatmul.mubr.f32.gmra.mrb[0].mxu0 %v3479
        %v3634 = vpop.f32.mrb[0].mxu0
        %v3635 = vadd.f32 0.0, %v3634
        %v3636 = vpop.f32.mrb[0].mxu0
        %3637 = vmatprep.mubr.f32.mxu0 0.0
        %3638 = vmatmul.mubr.f32.gmra.mrb[0].mxu0 %v3480
        %v3639 = vpop.f32.mrb[0].mxu0
        %v3640 = vadd.f32 0.0, %v3639
        %v3641 = vpop.f32.mrb[0].mxu0
        %3642 = vdwg.mxu0
        %v3643 = vadd.f32 %v3449, %v3565
        %v3644 = vadd.f32 %v3450, %v3570
        %v3645 = vadd.f32 %v3451, %v3575
        %v3646 = vadd.f32 %v3452, %v3580
        %v3647 = vadd.f32 %v3453, %v3585
        %v3648 = vadd.f32 %v3454, %v3590
        %v3649 = vadd.f32 %v3455, %v3595
        %v3650 = vadd.f32 %v3456, %v3600
        %v3651 = vadd.f32 %v3457, %v3605
        %v3652 = vadd.f32 %v3458, %v3610
        %v3653 = vadd.f32 %v3459, %v3615
        %v3654 = vadd.f32 %v3460, %v3620
        %v3655 = vadd.f32 %v3461, %v3625
        %v3656 = vadd.f32 %v3462, %v3630
        %v3657 = vadd.f32 %v3463, %v3635
        %v3658 = vadd.f32 %v3464, %v3640
        %s3659 = scalar_lea.vmem [#allocation2], 48
        %v3660 = vld [vmem:[%s3659] sm:$0xff]
        %v3661 = vld [vmem:[%s3659 + $0x8] sm:$0xff]
        %v3662 = vld [vmem:[%s3659 + $0x18] sm:$0xff]
        %v3663 = vld [vmem:[%s3659 + $0x20] sm:$0xff]
        %v3664 = vld [vmem:[%s3659 + $0x30] sm:$0xff]
        %v3665 = vld [vmem:[%s3659 + $0x38] sm:$0xff]
        %v3666 = vld [vmem:[%s3659 + $0x48] sm:$0xff]
        %v3667 = vld [vmem:[%s3659 + $0x50] sm:$0xff]
        %v3668 = vld [vmem:[%s3659 + $0x60] sm:$0xff]
        %v3669 = vld [vmem:[%s3659 + $0x68] sm:$0xff]
        %v3670 = vld [vmem:[%s3659 + $0x78] sm:$0xff]
        %v3671 = vld [vmem:[%s3659 + $0x80] sm:$0xff]
        %v3672 = vld [vmem:[%s3659 + $0x90] sm:$0xff]
        %v3673 = vld [vmem:[%s3659 + $0x98] sm:$0xff]
        %v3674 = vld [vmem:[%s3659 + $0xa8] sm:$0xff]
        %v3675 = vld [vmem:[%s3659 + $0xb0] sm:$0xff]
        %s3676 = scalar_lea.vmem [#allocation11], 768
        %v3677 = vld [vmem:[%s3676] sm:$0xff]
        %v3678 = vld [vmem:[%s3676 + $0x8] sm:$0xff]
        %v3679 = vld [vmem:[%s3676 + $0x10] sm:$0xff]
        %v3680 = vld [vmem:[%s3676 + $0x18] sm:$0xff]
        %v3681 = vld [vmem:[%s3676 + $0x20] sm:$0xff]
        %v3682 = vld [vmem:[%s3676 + $0x28] sm:$0xff]
        %v3683 = vld [vmem:[%s3676 + $0x30] sm:$0xff]
        %v3684 = vld [vmem:[%s3676 + $0x38] sm:$0xff]
        %v3685 = vld [vmem:[%s3676 + $0x40] sm:$0xff]
        %v3686 = vld [vmem:[%s3676 + $0x48] sm:$0xff]
        %v3687 = vld [vmem:[%s3676 + $0x50] sm:$0xff]
        %v3688 = vld [vmem:[%s3676 + $0x58] sm:$0xff]
        %v3689 = vld [vmem:[%s3676 + $0x60] sm:$0xff]
        %v3690 = vld [vmem:[%s3676 + $0x68] sm:$0xff]
        %v3691 = vld [vmem:[%s3676 + $0x70] sm:$0xff]
        %v3692 = vld [vmem:[%s3676 + $0x78] sm:$0xff]
        %3693 = vmatprep.subr.mxu0 0.0
        %3694 = vmatpush1.msra.mxu0 %v3677
        %3695 = vmatprep.subr.mxu0 0.0
        %3696 = vmatpush1.msra.mxu0 %v3678
        %3697 = vmatprep.subr.mxu0 0.0
        %3698 = vmatpush1.msra.mxu0 %v3679
        %3699 = vmatprep.subr.mxu0 0.0
        %3700 = vmatpush1.msra.mxu0 %v3680
        %3701 = vmatprep.subr.mxu0 0.0
        %3702 = vmatpush1.msra.mxu0 %v3681
        %3703 = vmatprep.subr.mxu0 0.0
        %3704 = vmatpush1.msra.mxu0 %v3682
        %3705 = vmatprep.subr.mxu0 0.0
        %3706 = vmatpush1.msra.mxu0 %v3683
        %3707 = vmatprep.subr.mxu0 0.0
        %3708 = vmatpush1.msra.mxu0 %v3684
        %3709 = vmatprep.subr.mxu0 0.0
        %3710 = vmatpush1.msra.mxu0 %v3685
        %3711 = vmatprep.subr.mxu0 0.0
        %3712 = vmatpush1.msra.mxu0 %v3686
        %3713 = vmatprep.subr.mxu0 0.0
        %3714 = vmatpush1.msra.mxu0 %v3687
        %3715 = vmatprep.subr.mxu0 0.0
        %3716 = vmatpush1.msra.mxu0 %v3688
        %3717 = vmatprep.subr.mxu0 0.0
        %3718 = vmatpush1.msra.mxu0 %v3689
        %3719 = vmatprep.subr.mxu0 0.0
        %3720 = vmatpush1.msra.mxu0 %v3690
        %3721 = vmatprep.subr.mxu0 0.0
        %3722 = vmatpush1.msra.mxu0 %v3691
        %3723 = vmatprep.subr.mxu0 0.0
        %3724 = vmatpush1.msra.mxu0 %v3692
        %3725 = vmatprep.subr.mxu0 0.0
        %3726 = vmatpush1.msra.mxu0 0.0
        %3727 = vmatprep.subr.mxu0 0.0
        %3728 = vmatpush1.msra.mxu0 0.0
        %3729 = vmatprep.subr.mxu0 0.0
        %3730 = vmatpush1.msra.mxu0 0.0
        %3731 = vmatprep.subr.mxu0 0.0
        %3732 = vmatpush1.msra.mxu0 0.0
        %3733 = vmatprep.subr.mxu0 0.0
        %3734 = vmatpush1.msra.mxu0 0.0
        %3735 = vmatprep.subr.mxu0 0.0
        %3736 = vmatpush1.msra.mxu0 0.0
        %3737 = vmatprep.subr.mxu0 0.0
        %3738 = vmatpush1.msra.mxu0 0.0
        %3739 = vmatprep.subr.mxu0 0.0
        %3740 = vmatpush1.msra.mxu0 0.0
        %3741 = vmatprep.subr.mxu0 0.0
        %3742 = vmatpush1.msra.mxu0 0.0
        %3743 = vmatprep.subr.mxu0 0.0
        %3744 = vmatpush1.msra.mxu0 0.0
        %3745 = vmatprep.subr.mxu0 0.0
        %3746 = vmatpush1.msra.mxu0 0.0
        %3747 = vmatprep.subr.mxu0 0.0
        %3748 = vmatpush1.msra.mxu0 0.0
        %3749 = vmatprep.subr.mxu0 0.0
        %3750 = vmatpush1.msra.mxu0 0.0
        %3751 = vmatprep.subr.mxu0 0.0
        %3752 = vmatpush1.msra.mxu0 0.0
        %3753 = vmatprep.subr.mxu0 0.0
        %3754 = vmatpush1.msra.mxu0 0.0
        %3755 = vmatprep.subr.mxu0 0.0
        %3756 = vmatpush1.msra.mxu0 0.0
        %3757 = vmatprep.mubr.f32.mxu0 0.0
        %3758 = vmatmul.mubr.f32.gmra.mrb[0].mxu0 %v3660
        %v3759 = vpop.f32.mrb[0].mxu0
        %v3760 = vadd.f32 0.0, %v3759
        %v3761 = vpop.f32.mrb[0].mxu0
        %3762 = vmatprep.mubr.f32.mxu0 0.0
        %3763 = vmatmul.mubr.f32.gmra.mrb[0].mxu0 %v3661
        %v3764 = vpop.f32.mrb[0].mxu0
        %v3765 = vadd.f32 0.0, %v3764
        %v3766 = vpop.f32.mrb[0].mxu0
        %3767 = vmatprep.mubr.f32.mxu0 0.0
        %3768 = vmatmul.mubr.f32.gmra.mrb[0].mxu0 %v3662
        %v3769 = vpop.f32.mrb[0].mxu0
        %v3770 = vadd.f32 0.0, %v3769
        %v3771 = vpop.f32.mrb[0].mxu0
        %3772 = vmatprep.mubr.f32.mxu0 0.0
        %3773 = vmatmul.mubr.f32.gmra.mrb[0].mxu0 %v3663
        %v3774 = vpop.f32.mrb[0].mxu0
        %v3775 = vadd.f32 0.0, %v3774
        %v3776 = vpop.f32.mrb[0].mxu0
        %3777 = vmatprep.mubr.f32.mxu0 0.0
        %3778 = vmatmul.mubr.f32.gmra.mrb[0].mxu0 %v3664
        %v3779 = vpop.f32.mrb[0].mxu0
        %v3780 = vadd.f32 0.0, %v3779
        %v3781 = vpop.f32.mrb[0].mxu0
        %3782 = vmatprep.mubr.f32.mxu0 0.0
        %3783 = vmatmul.mubr.f32.gmra.mrb[0].mxu0 %v3665
        %v3784 = vpop.f32.mrb[0].mxu0
        %v3785 = vadd.f32 0.0, %v3784
        %v3786 = vpop.f32.mrb[0].mxu0
        %3787 = vmatprep.mubr.f32.mxu0 0.0
        %3788 = vmatmul.mubr.f32.gmra.mrb[0].mxu0 %v3666
        %v3789 = vpop.f32.mrb[0].mxu0
        %v3790 = vadd.f32 0.0, %v3789
        %v3791 = vpop.f32.mrb[0].mxu0
        %3792 = vmatprep.mubr.f32.mxu0 0.0
        %3793 = vmatmul.mubr.f32.gmra.mrb[0].mxu0 %v3667
        %v3794 = vpop.f32.mrb[0].mxu0
        %v3795 = vadd.f32 0.0, %v3794
        %v3796 = vpop.f32.mrb[0].mxu0
        %3797 = vmatprep.mubr.f32.mxu0 0.0
        %3798 = vmatmul.mubr.f32.gmra.mrb[0].mxu0 %v3668
        %v3799 = vpop.f32.mrb[0].mxu0
        %v3800 = vadd.f32 0.0, %v3799
        %v3801 = vpop.f32.mrb[0].mxu0
        %3802 = vmatprep.mubr.f32.mxu0 0.0
        %3803 = vmatmul.mubr.f32.gmra.mrb[0].mxu0 %v3669
        %v3804 = vpop.f32.mrb[0].mxu0
        %v3805 = vadd.f32 0.0, %v3804
        %v3806 = vpop.f32.mrb[0].mxu0
        %3807 = vmatprep.mubr.f32.mxu0 0.0
        %3808 = vmatmul.mubr.f32.gmra.mrb[0].mxu0 %v3670
        %v3809 = vpop.f32.mrb[0].mxu0
        %v3810 = vadd.f32 0.0, %v3809
        %v3811 = vpop.f32.mrb[0].mxu0
        %3812 = vmatprep.mubr.f32.mxu0 0.0
        %3813 = vmatmul.mubr.f32.gmra.mrb[0].mxu0 %v3671
        %v3814 = vpop.f32.mrb[0].mxu0
        %v3815 = vadd.f32 0.0, %v3814
        %v3816 = vpop.f32.mrb[0].mxu0
        %3817 = vmatprep.mubr.f32.mxu0 0.0
        %3818 = vmatmul.mubr.f32.gmra.mrb[0].mxu0 %v3672
        %v3819 = vpop.f32.mrb[0].mxu0
        %v3820 = vadd.f32 0.0, %v3819
        %v3821 = vpop.f32.mrb[0].mxu0
        %3822 = vmatprep.mubr.f32.mxu0 0.0
        %3823 = vmatmul.mubr.f32.gmra.mrb[0].mxu0 %v3673
        %v3824 = vpop.f32.mrb[0].mxu0
        %v3825 = vadd.f32 0.0, %v3824
        %v3826 = vpop.f32.mrb[0].mxu0
        %3827 = vmatprep.mubr.f32.mxu0 0.0
        %3828 = vmatmul.mubr.f32.gmra.mrb[0].mxu0 %v3674
        %v3829 = vpop.f32.mrb[0].mxu0
        %v3830 = vadd.f32 0.0, %v3829
        %v3831 = vpop.f32.mrb[0].mxu0
        %3832 = vmatprep.mubr.f32.mxu0 0.0
        %3833 = vmatmul.mubr.f32.gmra.mrb[0].mxu0 %v3675
        %v3834 = vpop.f32.mrb[0].mxu0
        %v3835 = vadd.f32 0.0, %v3834
        %v3836 = vpop.f32.mrb[0].mxu0
        %3837 = vdwg.mxu0
        %v3838 = vadd.f32 %v3643, %v3760
        %v3839 = vadd.f32 %v3644, %v3765
        %v3840 = vadd.f32 %v3645, %v3770
        %v3841 = vadd.f32 %v3646, %v3775
        %v3842 = vadd.f32 %v3647, %v3780
        %v3843 = vadd.f32 %v3648, %v3785
        %v3844 = vadd.f32 %v3649, %v3790
        %v3845 = vadd.f32 %v3650, %v3795
        %v3846 = vadd.f32 %v3651, %v3800
        %v3847 = vadd.f32 %v3652, %v3805
        %v3848 = vadd.f32 %v3653, %v3810
        %v3849 = vadd.f32 %v3654, %v3815
        %v3850 = vadd.f32 %v3655, %v3820
        %v3851 = vadd.f32 %v3656, %v3825
        %v3852 = vadd.f32 %v3657, %v3830
        %v3853 = vadd.f32 %v3658, %v3835
        %v3854 = vld [vmem:[%s3659 + $0x1] sm:$0xff]
        %v3855 = vld [vmem:[%s3659 + $0x9] sm:$0xff]
        %v3856 = vld [vmem:[%s3659 + $0x19] sm:$0xff]
        %v3857 = vld [vmem:[%s3659 + $0x21] sm:$0xff]
        %v3858 = vld [vmem:[%s3659 + $0x31] sm:$0xff]
        %v3859 = vld [vmem:[%s3659 + $0x39] sm:$0xff]
        %v3860 = vld [vmem:[%s3659 + $0x49] sm:$0xff]
        %v3861 = vld [vmem:[%s3659 + $0x51] sm:$0xff]
        %v3862 = vld [vmem:[%s3659 + $0x61] sm:$0xff]
        %v3863 = vld [vmem:[%s3659 + $0x69] sm:$0xff]
        %v3864 = vld [vmem:[%s3659 + $0x79] sm:$0xff]
        %v3865 = vld [vmem:[%s3659 + $0x81] sm:$0xff]
        %v3866 = vld [vmem:[%s3659 + $0x91] sm:$0xff]
        %v3867 = vld [vmem:[%s3659 + $0x99] sm:$0xff]
        %v3868 = vld [vmem:[%s3659 + $0xa9] sm:$0xff]
        %v3869 = vld [vmem:[%s3659 + $0xb1] sm:$0xff]
        %s3870 = scalar_lea.vmem [#allocation11], 896
        %v3871 = vld [vmem:[%s3870] sm:$0xff]
        %v3872 = vld [vmem:[%s3870 + $0x8] sm:$0xff]
        %v3873 = vld [vmem:[%s3870 + $0x10] sm:$0xff]
        %v3874 = vld [vmem:[%s3870 + $0x18] sm:$0xff]
        %v3875 = vld [vmem:[%s3870 + $0x20] sm:$0xff]
        %v3876 = vld [vmem:[%s3870 + $0x28] sm:$0xff]
        %v3877 = vld [vmem:[%s3870 + $0x30] sm:$0xff]
        %v3878 = vld [vmem:[%s3870 + $0x38] sm:$0xff]
        %v3879 = vld [vmem:[%s3870 + $0x40] sm:$0xff]
        %v3880 = vld [vmem:[%s3870 + $0x48] sm:$0xff]
        %v3881 = vld [vmem:[%s3870 + $0x50] sm:$0xff]
        %v3882 = vld [vmem:[%s3870 + $0x58] sm:$0xff]
        %v3883 = vld [vmem:[%s3870 + $0x60] sm:$0xff]
        %v3884 = vld [vmem:[%s3870 + $0x68] sm:$0xff]
        %v3885 = vld [vmem:[%s3870 + $0x70] sm:$0xff]
        %v3886 = vld [vmem:[%s3870 + $0x78] sm:$0xff]
        %3887 = vmatprep.subr.mxu0 0.0
        %3888 = vmatpush1.msra.mxu0 %v3871
        %3889 = vmatprep.subr.mxu0 0.0
        %3890 = vmatpush1.msra.mxu0 %v3872
        %3891 = vmatprep.subr.mxu0 0.0
        %3892 = vmatpush1.msra.mxu0 %v3873
        %3893 = vmatprep.subr.mxu0 0.0
        %3894 = vmatpush1.msra.mxu0 %v3874
        %3895 = vmatprep.subr.mxu0 0.0
        %3896 = vmatpush1.msra.mxu0 %v3875
        %3897 = vmatprep.subr.mxu0 0.0
        %3898 = vmatpush1.msra.mxu0 %v3876
        %3899 = vmatprep.subr.mxu0 0.0
        %3900 = vmatpush1.msra.mxu0 %v3877
        %3901 = vmatprep.subr.mxu0 0.0
        %3902 = vmatpush1.msra.mxu0 %v3878
        %3903 = vmatprep.subr.mxu0 0.0
        %3904 = vmatpush1.msra.mxu0 %v3879
        %3905 = vmatprep.subr.mxu0 0.0
        %3906 = vmatpush1.msra.mxu0 %v3880
        %3907 = vmatprep.subr.mxu0 0.0
        %3908 = vmatpush1.msra.mxu0 %v3881
        %3909 = vmatprep.subr.mxu0 0.0
        %3910 = vmatpush1.msra.mxu0 %v3882
        %3911 = vmatprep.subr.mxu0 0.0
        %3912 = vmatpush1.msra.mxu0 %v3883
        %3913 = vmatprep.subr.mxu0 0.0
        %3914 = vmatpush1.msra.mxu0 %v3884
        %3915 = vmatprep.subr.mxu0 0.0
        %3916 = vmatpush1.msra.mxu0 %v3885
        %3917 = vmatprep.subr.mxu0 0.0
        %3918 = vmatpush1.msra.mxu0 %v3886
        %3919 = vmatprep.subr.mxu0 0.0
        %3920 = vmatpush1.msra.mxu0 0.0
        %3921 = vmatprep.subr.mxu0 0.0
        %3922 = vmatpush1.msra.mxu0 0.0
        %3923 = vmatprep.subr.mxu0 0.0
        %3924 = vmatpush1.msra.mxu0 0.0
        %3925 = vmatprep.subr.mxu0 0.0
        %3926 = vmatpush1.msra.mxu0 0.0
        %3927 = vmatprep.subr.mxu0 0.0
        %3928 = vmatpush1.msra.mxu0 0.0
        %3929 = vmatprep.subr.mxu0 0.0
        %3930 = vmatpush1.msra.mxu0 0.0
        %3931 = vmatprep.subr.mxu0 0.0
        %3932 = vmatpush1.msra.mxu0 0.0
        %3933 = vmatprep.subr.mxu0 0.0
        %3934 = vmatpush1.msra.mxu0 0.0
        %3935 = vmatprep.subr.mxu0 0.0
        %3936 = vmatpush1.msra.mxu0 0.0
        %3937 = vmatprep.subr.mxu0 0.0
        %3938 = vmatpush1.msra.mxu0 0.0
        %3939 = vmatprep.subr.mxu0 0.0
        %3940 = vmatpush1.msra.mxu0 0.0
        %3941 = vmatprep.subr.mxu0 0.0
        %3942 = vmatpush1.msra.mxu0 0.0
        %3943 = vmatprep.subr.mxu0 0.0
        %3944 = vmatpush1.msra.mxu0 0.0
        %3945 = vmatprep.subr.mxu0 0.0
        %3946 = vmatpush1.msra.mxu0 0.0
        %3947 = vmatprep.subr.mxu0 0.0
        %3948 = vmatpush1.msra.mxu0 0.0
        %3949 = vmatprep.subr.mxu0 0.0
        %3950 = vmatpush1.msra.mxu0 0.0
        %3951 = vmatprep.mubr.f32.mxu0 0.0
        %3952 = vmatmul.mubr.f32.gmra.mrb[0].mxu0 %v3854
        %v3953 = vpop.f32.mrb[0].mxu0
        %v3954 = vadd.f32 0.0, %v3953
        %v3955 = vpop.f32.mrb[0].mxu0
        %3956 = vmatprep.mubr.f32.mxu0 0.0
        %3957 = vmatmul.mubr.f32.gmra.mrb[0].mxu0 %v3855
        %v3958 = vpop.f32.mrb[0].mxu0
        %v3959 = vadd.f32 0.0, %v3958
        %v3960 = vpop.f32.mrb[0].mxu0
        %3961 = vmatprep.mubr.f32.mxu0 0.0
        %3962 = vmatmul.mubr.f32.gmra.mrb[0].mxu0 %v3856
        %v3963 = vpop.f32.mrb[0].mxu0
        %v3964 = vadd.f32 0.0, %v3963
        %v3965 = vpop.f32.mrb[0].mxu0
        %3966 = vmatprep.mubr.f32.mxu0 0.0
        %3967 = vmatmul.mubr.f32.gmra.mrb[0].mxu0 %v3857
        %v3968 = vpop.f32.mrb[0].mxu0
        %v3969 = vadd.f32 0.0, %v3968
        %v3970 = vpop.f32.mrb[0].mxu0
        %3971 = vmatprep.mubr.f32.mxu0 0.0
        %3972 = vmatmul.mubr.f32.gmra.mrb[0].mxu0 %v3858
        %v3973 = vpop.f32.mrb[0].mxu0
        %v3974 = vadd.f32 0.0, %v3973
        %v3975 = vpop.f32.mrb[0].mxu0
        %3976 = vmatprep.mubr.f32.mxu0 0.0
        %3977 = vmatmul.mubr.f32.gmra.mrb[0].mxu0 %v3859
        %v3978 = vpop.f32.mrb[0].mxu0
        %v3979 = vadd.f32 0.0, %v3978
        %v3980 = vpop.f32.mrb[0].mxu0
        %3981 = vmatprep.mubr.f32.mxu0 0.0
        %3982 = vmatmul.mubr.f32.gmra.mrb[0].mxu0 %v3860
        %v3983 = vpop.f32.mrb[0].mxu0
        %v3984 = vadd.f32 0.0, %v3983
        %v3985 = vpop.f32.mrb[0].mxu0
        %3986 = vmatprep.mubr.f32.mxu0 0.0
        %3987 = vmatmul.mubr.f32.gmra.mrb[0].mxu0 %v3861
        %v3988 = vpop.f32.mrb[0].mxu0
        %v3989 = vadd.f32 0.0, %v3988
        %v3990 = vpop.f32.mrb[0].mxu0
        %3991 = vmatprep.mubr.f32.mxu0 0.0
        %3992 = vmatmul.mubr.f32.gmra.mrb[0].mxu0 %v3862
        %v3993 = vpop.f32.mrb[0].mxu0
        %v3994 = vadd.f32 0.0, %v3993
        %v3995 = vpop.f32.mrb[0].mxu0
        %3996 = vmatprep.mubr.f32.mxu0 0.0
        %3997 = vmatmul.mubr.f32.gmra.mrb[0].mxu0 %v3863
        %v3998 = vpop.f32.mrb[0].mxu0
        %v3999 = vadd.f32 0.0, %v3998
        %v4000 = vpop.f32.mrb[0].mxu0
        %4001 = vmatprep.mubr.f32.mxu0 0.0
        %4002 = vmatmul.mubr.f32.gmra.mrb[0].mxu0 %v3864
        %v4003 = vpop.f32.mrb[0].mxu0
        %v4004 = vadd.f32 0.0, %v4003
        %v4005 = vpop.f32.mrb[0].mxu0
        %4006 = vmatprep.mubr.f32.mxu0 0.0
        %4007 = vmatmul.mubr.f32.gmra.mrb[0].mxu0 %v3865
        %v4008 = vpop.f32.mrb[0].mxu0
        %v4009 = vadd.f32 0.0, %v4008
        %v4010 = vpop.f32.mrb[0].mxu0
        %4011 = vmatprep.mubr.f32.mxu0 0.0
        %4012 = vmatmul.mubr.f32.gmra.mrb[0].mxu0 %v3866
        %v4013 = vpop.f32.mrb[0].mxu0
        %v4014 = vadd.f32 0.0, %v4013
        %v4015 = vpop.f32.mrb[0].mxu0
        %4016 = vmatprep.mubr.f32.mxu0 0.0
        %4017 = vmatmul.mubr.f32.gmra.mrb[0].mxu0 %v3867
        %v4018 = vpop.f32.mrb[0].mxu0
        %v4019 = vadd.f32 0.0, %v4018
        %v4020 = vpop.f32.mrb[0].mxu0
        %4021 = vmatprep.mubr.f32.mxu0 0.0
        %4022 = vmatmul.mubr.f32.gmra.mrb[0].mxu0 %v3868
        %v4023 = vpop.f32.mrb[0].mxu0
        %v4024 = vadd.f32 0.0, %v4023
        %v4025 = vpop.f32.mrb[0].mxu0
        %4026 = vmatprep.mubr.f32.mxu0 0.0
        %4027 = vmatmul.mubr.f32.gmra.mrb[0].mxu0 %v3869
        %v4028 = vpop.f32.mrb[0].mxu0
        %v4029 = vadd.f32 0.0, %v4028
        %v4030 = vpop.f32.mrb[0].mxu0
        %4031 = vdwg.mxu0
        %v4032 = vadd.f32 %v3838, %v3954
        %v4033 = vadd.f32 %v3839, %v3959
        %v4034 = vadd.f32 %v3840, %v3964
        %v4035 = vadd.f32 %v3841, %v3969
        %v4036 = vadd.f32 %v3842, %v3974
        %v4037 = vadd.f32 %v3843, %v3979
        %v4038 = vadd.f32 %v3844, %v3984
        %v4039 = vadd.f32 %v3845, %v3989
        %v4040 = vadd.f32 %v3846, %v3994
        %v4041 = vadd.f32 %v3847, %v3999
        %v4042 = vadd.f32 %v3848, %v4004
        %v4043 = vadd.f32 %v3849, %v4009
        %v4044 = vadd.f32 %v3850, %v4014
        %v4045 = vadd.f32 %v3851, %v4019
        %v4046 = vadd.f32 %v3852, %v4024
        %v4047 = vadd.f32 %v3853, %v4029
        %v4048 = vld [vmem:[%s3659 + $0x2] sm:$0xff]
        %v4049 = vld [vmem:[%s3659 + $0xa] sm:$0xff]
        %v4050 = vld [vmem:[%s3659 + $0x1a] sm:$0xff]
        %v4051 = vld [vmem:[%s3659 + $0x22] sm:$0xff]
        %v4052 = vld [vmem:[%s3659 + $0x32] sm:$0xff]
        %v4053 = vld [vmem:[%s3659 + $0x3a] sm:$0xff]
        %v4054 = vld [vmem:[%s3659 + $0x4a] sm:$0xff]
        %v4055 = vld [vmem:[%s3659 + $0x52] sm:$0xff]
        %v4056 = vld [vmem:[%s3659 + $0x62] sm:$0xff]
        %v4057 = vld [vmem:[%s3659 + $0x6a] sm:$0xff]
        %v4058 = vld [vmem:[%s3659 + $0x7a] sm:$0xff]
        %v4059 = vld [vmem:[%s3659 + $0x82] sm:$0xff]
        %v4060 = vld [vmem:[%s3659 + $0x92] sm:$0xff]
        %v4061 = vld [vmem:[%s3659 + $0x9a] sm:$0xff]
        %v4062 = vld [vmem:[%s3659 + $0xaa] sm:$0xff]
        %v4063 = vld [vmem:[%s3659 + $0xb2] sm:$0xff]
        %s4064 = scalar_lea.vmem [#allocation11], 1024
        %v4065 = vld [vmem:[%s4064] sm:$0xff]
        %v4066 = vld [vmem:[%s4064 + $0x8] sm:$0xff]
        %v4067 = vld [vmem:[%s4064 + $0x10] sm:$0xff]
        %v4068 = vld [vmem:[%s4064 + $0x18] sm:$0xff]
        %v4069 = vld [vmem:[%s4064 + $0x20] sm:$0xff]
        %v4070 = vld [vmem:[%s4064 + $0x28] sm:$0xff]
        %v4071 = vld [vmem:[%s4064 + $0x30] sm:$0xff]
        %v4072 = vld [vmem:[%s4064 + $0x38] sm:$0xff]
        %v4073 = vld [vmem:[%s4064 + $0x40] sm:$0xff]
        %v4074 = vld [vmem:[%s4064 + $0x48] sm:$0xff]
        %v4075 = vld [vmem:[%s4064 + $0x50] sm:$0xff]
        %v4076 = vld [vmem:[%s4064 + $0x58] sm:$0xff]
        %v4077 = vld [vmem:[%s4064 + $0x60] sm:$0xff]
        %v4078 = vld [vmem:[%s4064 + $0x68] sm:$0xff]
        %v4079 = vld [vmem:[%s4064 + $0x70] sm:$0xff]
        %v4080 = vld [vmem:[%s4064 + $0x78] sm:$0xff]
        %4081 = vmatprep.subr.mxu0 0.0
        %4082 = vmatpush1.msra.mxu0 %v4065
        %4083 = vmatprep.subr.mxu0 0.0
        %4084 = vmatpush1.msra.mxu0 %v4066
        %4085 = vmatprep.subr.mxu0 0.0
        %4086 = vmatpush1.msra.mxu0 %v4067
        %4087 = vmatprep.subr.mxu0 0.0
        %4088 = vmatpush1.msra.mxu0 %v4068
        %4089 = vmatprep.subr.mxu0 0.0
        %4090 = vmatpush1.msra.mxu0 %v4069
        %4091 = vmatprep.subr.mxu0 0.0
        %4092 = vmatpush1.msra.mxu0 %v4070
        %4093 = vmatprep.subr.mxu0 0.0
        %4094 = vmatpush1.msra.mxu0 %v4071
        %4095 = vmatprep.subr.mxu0 0.0
        %4096 = vmatpush1.msra.mxu0 %v4072
        %4097 = vmatprep.subr.mxu0 0.0
        %4098 = vmatpush1.msra.mxu0 %v4073
        %4099 = vmatprep.subr.mxu0 0.0
        %4100 = vmatpush1.msra.mxu0 %v4074
        %4101 = vmatprep.subr.mxu0 0.0
        %4102 = vmatpush1.msra.mxu0 %v4075
        %4103 = vmatprep.subr.mxu0 0.0
        %4104 = vmatpush1.msra.mxu0 %v4076
        %4105 = vmatprep.subr.mxu0 0.0
        %4106 = vmatpush1.msra.mxu0 %v4077
        %4107 = vmatprep.subr.mxu0 0.0
        %4108 = vmatpush1.msra.mxu0 %v4078
        %4109 = vmatprep.subr.mxu0 0.0
        %4110 = vmatpush1.msra.mxu0 %v4079
        %4111 = vmatprep.subr.mxu0 0.0
        %4112 = vmatpush1.msra.mxu0 %v4080
        %4113 = vmatprep.subr.mxu0 0.0
        %4114 = vmatpush1.msra.mxu0 0.0
        %4115 = vmatprep.subr.mxu0 0.0
        %4116 = vmatpush1.msra.mxu0 0.0
        %4117 = vmatprep.subr.mxu0 0.0
        %4118 = vmatpush1.msra.mxu0 0.0
        %4119 = vmatprep.subr.mxu0 0.0
        %4120 = vmatpush1.msra.mxu0 0.0
        %4121 = vmatprep.subr.mxu0 0.0
        %4122 = vmatpush1.msra.mxu0 0.0
        %4123 = vmatprep.subr.mxu0 0.0
        %4124 = vmatpush1.msra.mxu0 0.0
        %4125 = vmatprep.subr.mxu0 0.0
        %4126 = vmatpush1.msra.mxu0 0.0
        %4127 = vmatprep.subr.mxu0 0.0
        %4128 = vmatpush1.msra.mxu0 0.0
        %4129 = vmatprep.subr.mxu0 0.0
        %4130 = vmatpush1.msra.mxu0 0.0
        %4131 = vmatprep.subr.mxu0 0.0
        %4132 = vmatpush1.msra.mxu0 0.0
        %4133 = vmatprep.subr.mxu0 0.0
        %4134 = vmatpush1.msra.mxu0 0.0
        %4135 = vmatprep.subr.mxu0 0.0
        %4136 = vmatpush1.msra.mxu0 0.0
        %4137 = vmatprep.subr.mxu0 0.0
        %4138 = vmatpush1.msra.mxu0 0.0
        %4139 = vmatprep.subr.mxu0 0.0
        %4140 = vmatpush1.msra.mxu0 0.0
        %4141 = vmatprep.subr.mxu0 0.0
        %4142 = vmatpush1.msra.mxu0 0.0
        %4143 = vmatprep.subr.mxu0 0.0
        %4144 = vmatpush1.msra.mxu0 0.0
        %4145 = vmatprep.mubr.f32.mxu0 0.0
        %4146 = vmatmul.mubr.f32.gmra.mrb[0].mxu0 %v4048
        %v4147 = vpop.f32.mrb[0].mxu0
        %v4148 = vadd.f32 0.0, %v4147
        %v4149 = vpop.f32.mrb[0].mxu0
        %4150 = vmatprep.mubr.f32.mxu0 0.0
        %4151 = vmatmul.mubr.f32.gmra.mrb[0].mxu0 %v4049
        %v4152 = vpop.f32.mrb[0].mxu0
        %v4153 = vadd.f32 0.0, %v4152
        %v4154 = vpop.f32.mrb[0].mxu0
        %4155 = vmatprep.mubr.f32.mxu0 0.0
        %4156 = vmatmul.mubr.f32.gmra.mrb[0].mxu0 %v4050
        %v4157 = vpop.f32.mrb[0].mxu0
        %v4158 = vadd.f32 0.0, %v4157
        %v4159 = vpop.f32.mrb[0].mxu0
        %4160 = vmatprep.mubr.f32.mxu0 0.0
        %4161 = vmatmul.mubr.f32.gmra.mrb[0].mxu0 %v4051
        %v4162 = vpop.f32.mrb[0].mxu0
        %v4163 = vadd.f32 0.0, %v4162
        %v4164 = vpop.f32.mrb[0].mxu0
        %4165 = vmatprep.mubr.f32.mxu0 0.0
        %4166 = vmatmul.mubr.f32.gmra.mrb[0].mxu0 %v4052
        %v4167 = vpop.f32.mrb[0].mxu0
        %v4168 = vadd.f32 0.0, %v4167
        %v4169 = vpop.f32.mrb[0].mxu0
        %4170 = vmatprep.mubr.f32.mxu0 0.0
        %4171 = vmatmul.mubr.f32.gmra.mrb[0].mxu0 %v4053
        %v4172 = vpop.f32.mrb[0].mxu0
        %v4173 = vadd.f32 0.0, %v4172
        %v4174 = vpop.f32.mrb[0].mxu0
        %4175 = vmatprep.mubr.f32.mxu0 0.0
        %4176 = vmatmul.mubr.f32.gmra.mrb[0].mxu0 %v4054
        %v4177 = vpop.f32.mrb[0].mxu0
        %v4178 = vadd.f32 0.0, %v4177
        %v4179 = vpop.f32.mrb[0].mxu0
        %4180 = vmatprep.mubr.f32.mxu0 0.0
        %4181 = vmatmul.mubr.f32.gmra.mrb[0].mxu0 %v4055
        %v4182 = vpop.f32.mrb[0].mxu0
        %v4183 = vadd.f32 0.0, %v4182
        %v4184 = vpop.f32.mrb[0].mxu0
        %4185 = vmatprep.mubr.f32.mxu0 0.0
        %4186 = vmatmul.mubr.f32.gmra.mrb[0].mxu0 %v4056
        %v4187 = vpop.f32.mrb[0].mxu0
        %v4188 = vadd.f32 0.0, %v4187
        %v4189 = vpop.f32.mrb[0].mxu0
        %4190 = vmatprep.mubr.f32.mxu0 0.0
        %4191 = vmatmul.mubr.f32.gmra.mrb[0].mxu0 %v4057
        %v4192 = vpop.f32.mrb[0].mxu0
        %v4193 = vadd.f32 0.0, %v4192
        %v4194 = vpop.f32.mrb[0].mxu0
        %4195 = vmatprep.mubr.f32.mxu0 0.0
        %4196 = vmatmul.mubr.f32.gmra.mrb[0].mxu0 %v4058
        %v4197 = vpop.f32.mrb[0].mxu0
        %v4198 = vadd.f32 0.0, %v4197
        %v4199 = vpop.f32.mrb[0].mxu0
        %4200 = vmatprep.mubr.f32.mxu0 0.0
        %4201 = vmatmul.mubr.f32.gmra.mrb[0].mxu0 %v4059
        %v4202 = vpop.f32.mrb[0].mxu0
        %v4203 = vadd.f32 0.0, %v4202
        %v4204 = vpop.f32.mrb[0].mxu0
        %4205 = vmatprep.mubr.f32.mxu0 0.0
        %4206 = vmatmul.mubr.f32.gmra.mrb[0].mxu0 %v4060
        %v4207 = vpop.f32.mrb[0].mxu0
        %v4208 = vadd.f32 0.0, %v4207
        %v4209 = vpop.f32.mrb[0].mxu0
        %4210 = vmatprep.mubr.f32.mxu0 0.0
        %4211 = vmatmul.mubr.f32.gmra.mrb[0].mxu0 %v4061
        %v4212 = vpop.f32.mrb[0].mxu0
        %v4213 = vadd.f32 0.0, %v4212
        %v4214 = vpop.f32.mrb[0].mxu0
        %4215 = vmatprep.mubr.f32.mxu0 0.0
        %4216 = vmatmul.mubr.f32.gmra.mrb[0].mxu0 %v4062
        %v4217 = vpop.f32.mrb[0].mxu0
        %v4218 = vadd.f32 0.0, %v4217
        %v4219 = vpop.f32.mrb[0].mxu0
        %4220 = vmatprep.mubr.f32.mxu0 0.0
        %4221 = vmatmul.mubr.f32.gmra.mrb[0].mxu0 %v4063
        %v4222 = vpop.f32.mrb[0].mxu0
        %v4223 = vadd.f32 0.0, %v4222
        %v4224 = vpop.f32.mrb[0].mxu0
        %4225 = vdwg.mxu0
        %v4226 = vadd.f32 %v4032, %v4148
        %v4227 = vadd.f32 %v4033, %v4153
        %v4228 = vadd.f32 %v4034, %v4158
        %v4229 = vadd.f32 %v4035, %v4163
        %v4230 = vadd.f32 %v4036, %v4168
        %v4231 = vadd.f32 %v4037, %v4173
        %v4232 = vadd.f32 %v4038, %v4178
        %v4233 = vadd.f32 %v4039, %v4183
        %v4234 = vadd.f32 %v4040, %v4188
        %v4235 = vadd.f32 %v4041, %v4193
        %v4236 = vadd.f32 %v4042, %v4198
        %v4237 = vadd.f32 %v4043, %v4203
        %v4238 = vadd.f32 %v4044, %v4208
        %v4239 = vadd.f32 %v4045, %v4213
        %v4240 = vadd.f32 %v4046, %v4218
        %v4241 = vadd.f32 %v4047, %v4223
        %v4242 = vld [vmem:[#allocation12] sm:$0x1]
        %v4244 = vlaneseq
        %v4245 = vshrl.u32 %v4244, 7
        %v4246 = vsub.s32 0, %v4245
        %v4247 = vrot.slane %v4242, %v4246
        %v4249 = vmul.f32 %v4226, %v4247
        %v4250 = vmul.f32 %v4227, %v4247
        %v4251 = vmul.f32 %v4228, %v4247
        %v4252 = vmul.f32 %v4229, %v4247
        %v4253 = vmul.f32 %v4230, %v4247
        %v4254 = vmul.f32 %v4231, %v4247
        %v4255 = vmul.f32 %v4232, %v4247
        %v4256 = vmul.f32 %v4233, %v4247
        %v4257 = vmul.f32 %v4234, %v4247
        %v4258 = vmul.f32 %v4235, %v4247
        %v4259 = vmul.f32 %v4236, %v4247
        %v4260 = vmul.f32 %v4237, %v4247
        %v4261 = vmul.f32 %v4238, %v4247
        %v4262 = vmul.f32 %v4239, %v4247
        %v4263 = vmul.f32 %v4240, %v4247
        %v4264 = vmul.f32 %v4241, %v4247
        %v4265 = vld [vmem:[#allocation14] sm:$0x1]
        %v4267 = vlaneseq
        %v4268 = vshrl.u32 %v4267, 7
        %v4269 = vsub.s32 0, %v4268
        %v4270 = vrot.slane %v4265, %v4269
        %v4272 = vadd.f32 %v4249, %v4270
        %v4273 = vadd.f32 %v4250, %v4270
        %v4274 = vadd.f32 %v4251, %v4270
        %v4275 = vadd.f32 %v4252, %v4270
        %v4276 = vadd.f32 %v4253, %v4270
        %v4277 = vadd.f32 %v4254, %v4270
        %v4278 = vadd.f32 %v4255, %v4270
        %v4279 = vadd.f32 %v4256, %v4270
        %v4280 = vadd.f32 %v4257, %v4270
        %v4281 = vadd.f32 %v4258, %v4270
        %v4282 = vadd.f32 %v4259, %v4270
        %v4283 = vadd.f32 %v4260, %v4270
        %v4284 = vadd.f32 %v4261, %v4270
        %v4285 = vadd.f32 %v4262, %v4270
        %v4286 = vadd.f32 %v4263, %v4270
        %v4287 = vadd.f32 %v4264, %v4270
        %v4288 = vmax.f32 %v4272, 0.0
        %v4289 = vmax.f32 %v4273, 0.0
        %v4290 = vmax.f32 %v4274, 0.0
        %v4291 = vmax.f32 %v4275, 0.0
        %v4292 = vmax.f32 %v4276, 0.0
        %v4293 = vmax.f32 %v4277, 0.0
        %v4294 = vmax.f32 %v4278, 0.0
        %v4295 = vmax.f32 %v4279, 0.0
        %v4296 = vmax.f32 %v4280, 0.0
        %v4297 = vmax.f32 %v4281, 0.0
        %v4298 = vmax.f32 %v4282, 0.0
        %v4299 = vmax.f32 %v4283, 0.0
        %v4300 = vmax.f32 %v4284, 0.0
        %v4301 = vmax.f32 %v4285, 0.0
        %v4302 = vmax.f32 %v4286, 0.0
        %v4303 = vmax.f32 %v4287, 0.0
        %vm4304 = vcmask 64512
        %4305 = vst.msk [vmem:[%s422] sm:$0xff] %vm4304, %v4288
        %4306 = vst.msk [vmem:[%s422 + $0x8] sm:$0xff] %vm4304, %v4289
        %4307 = vst.msk [vmem:[%s422 + $0x10] sm:$0xff] %vm4304, %v4290
        %4308 = vst.msk [vmem:[%s422 + $0x18] sm:$0xff] %vm4304, %v4291
        %4309 = vst.msk [vmem:[%s422 + $0x20] sm:$0xff] %vm4304, %v4292
        %4310 = vst.msk [vmem:[%s422 + $0x28] sm:$0xff] %vm4304, %v4293
        %4311 = vst.msk [vmem:[%s422 + $0x30] sm:$0xff] %vm4304, %v4294
        %4312 = vst.msk [vmem:[%s422 + $0x38] sm:$0xff] %vm4304, %v4295
        %4313 = vst.msk [vmem:[%s422 + $0x40] sm:$0xff] %vm4304, %v4296
        %4314 = vst.msk [vmem:[%s422 + $0x48] sm:$0xff] %vm4304, %v4297
        %4315 = vst.msk [vmem:[%s422 + $0x50] sm:$0xff] %vm4304, %v4298
        %4316 = vst.msk [vmem:[%s422 + $0x58] sm:$0xff] %vm4304, %v4299
        %4317 = vst.msk [vmem:[%s422 + $0x60] sm:$0xff] %vm4304, %v4300
        %4318 = vst.msk [vmem:[%s422 + $0x68] sm:$0xff] %vm4304, %v4301
        %4319 = vst.msk [vmem:[%s422 + $0x70] sm:$0xff] %vm4304, %v4302
        %4320 = vst.msk [vmem:[%s422 + $0x78] sm:$0xff] %vm4304, %v4303
        %v4321 = vmax.f32 %v4288, %v4290
        %v4322 = vmax.f32 %v4289, %v4291
        %v4323 = vmax.f32 %v4292, %v4294
        %v4324 = vmax.f32 %v4293, %v4295
        %v4325 = vmax.f32 %v4296, %v4298
        %v4326 = vmax.f32 %v4297, %v4299
        %v4327 = vmax.f32 %v4300, %v4302
        %v4328 = vmax.f32 %v4301, %v4303
        %v4337 = vcombine.high %v4321, %v4321
        %v4339 = vunpack.c.l.s4 1983009808
        %v4340 = vunpack.c.0.s8 %v4339
        %v4341 = vlaneseq
        %v4342 = vshrl.u32 %v4341, 7
        %v4343 = vsub.s32 %v4340, %v4342
        %v4344 = vrot.slane %v4321, %v4343
        %v4346 = vunpack.c.l.s4 1983009808
        %v4347 = vunpack.c.0.s8 %v4346
        %v4348 = vlaneseq
        %v4349 = vshrl.u32 %v4348, 7
        %v4350 = vsub.s32 %v4347, %v4349
        %v4351 = vrot.slane %v4337, %v4350
        %v4352 = vcombine.high %v4344, %v4344
        %v4353 = vcombine.high %v4351, %v4351
        %v4354 = vcombine.high %v4322, %v4322
        %v4356 = vunpack.c.l.s4 1983009808
        %v4357 = vunpack.c.0.s8 %v4356
        %v4358 = vlaneseq
        %v4359 = vshrl.u32 %v4358, 7
        %v4360 = vsub.s32 %v4357, %v4359
        %v4361 = vrot.slane %v4322, %v4360
        %v4363 = vunpack.c.l.s4 1983009808
        %v4364 = vunpack.c.0.s8 %v4363
        %v4365 = vlaneseq
        %v4366 = vshrl.u32 %v4365, 7
        %v4367 = vsub.s32 %v4364, %v4366
        %v4368 = vrot.slane %v4354, %v4367
        %v4369 = vcombine.high %v4361, %v4361
        %v4370 = vcombine.high %v4368, %v4368
        %v4371 = vcombine.high %v4323, %v4323
        %v4373 = vunpack.c.l.s4 1983009808
        %v4374 = vunpack.c.0.s8 %v4373
        %v4375 = vlaneseq
        %v4376 = vshrl.u32 %v4375, 7
        %v4377 = vsub.s32 %v4374, %v4376
        %v4378 = vrot.slane %v4323, %v4377
        %v4380 = vunpack.c.l.s4 1983009808
        %v4381 = vunpack.c.0.s8 %v4380
        %v4382 = vlaneseq
        %v4383 = vshrl.u32 %v4382, 7
        %v4384 = vsub.s32 %v4381, %v4383
        %v4385 = vrot.slane %v4371, %v4384
        %v4386 = vcombine.high %v4378, %v4378
        %v4387 = vcombine.high %v4385, %v4385
        %v4388 = vcombine.high %v4324, %v4324
        %v4390 = vunpack.c.l.s4 1983009808
        %v4391 = vunpack.c.0.s8 %v4390
        %v4392 = vlaneseq
        %v4393 = vshrl.u32 %v4392, 7
        %v4394 = vsub.s32 %v4391, %v4393
        %v4395 = vrot.slane %v4324, %v4394
        %v4397 = vunpack.c.l.s4 1983009808
        %v4398 = vunpack.c.0.s8 %v4397
        %v4399 = vlaneseq
        %v4400 = vshrl.u32 %v4399, 7
        %v4401 = vsub.s32 %v4398, %v4400
        %v4402 = vrot.slane %v4388, %v4401
        %v4403 = vcombine.high %v4395, %v4395
        %v4404 = vcombine.high %v4402, %v4402
        %v4405 = vcombine.high %v4325, %v4325
        %v4407 = vunpack.c.l.s4 1983009808
        %v4408 = vunpack.c.0.s8 %v4407
        %v4409 = vlaneseq
        %v4410 = vshrl.u32 %v4409, 7
        %v4411 = vsub.s32 %v4408, %v4410
        %v4412 = vrot.slane %v4325, %v4411
        %v4414 = vunpack.c.l.s4 1983009808
        %v4415 = vunpack.c.0.s8 %v4414
        %v4416 = vlaneseq
        %v4417 = vshrl.u32 %v4416, 7
        %v4418 = vsub.s32 %v4415, %v4417
        %v4419 = vrot.slane %v4405, %v4418
        %v4420 = vcombine.high %v4412, %v4412
        %v4421 = vcombine.high %v4419, %v4419
        %v4422 = vcombine.high %v4326, %v4326
        %v4424 = vunpack.c.l.s4 1983009808
        %v4425 = vunpack.c.0.s8 %v4424
        %v4426 = vlaneseq
        %v4427 = vshrl.u32 %v4426, 7
        %v4428 = vsub.s32 %v4425, %v4427
        %v4429 = vrot.slane %v4326, %v4428
        %v4431 = vunpack.c.l.s4 1983009808
        %v4432 = vunpack.c.0.s8 %v4431
        %v4433 = vlaneseq
        %v4434 = vshrl.u32 %v4433, 7
        %v4435 = vsub.s32 %v4432, %v4434
        %v4436 = vrot.slane %v4422, %v4435
        %v4437 = vcombine.high %v4429, %v4429
        %v4438 = vcombine.high %v4436, %v4436
        %v4439 = vcombine.high %v4327, %v4327
        %v4441 = vunpack.c.l.s4 1983009808
        %v4442 = vunpack.c.0.s8 %v4441
        %v4443 = vlaneseq
        %v4444 = vshrl.u32 %v4443, 7
        %v4445 = vsub.s32 %v4442, %v4444
        %v4446 = vrot.slane %v4327, %v4445
        %v4448 = vunpack.c.l.s4 1983009808
        %v4449 = vunpack.c.0.s8 %v4448
        %v4450 = vlaneseq
        %v4451 = vshrl.u32 %v4450, 7
        %v4452 = vsub.s32 %v4449, %v4451
        %v4453 = vrot.slane %v4439, %v4452
        %v4454 = vcombine.high %v4446, %v4446
        %v4455 = vcombine.high %v4453, %v4453
        %v4456 = vcombine.high %v4328, %v4328
        %v4458 = vunpack.c.l.s4 1983009808
        %v4459 = vunpack.c.0.s8 %v4458
        %v4460 = vlaneseq
        %v4461 = vshrl.u32 %v4460, 7
        %v4462 = vsub.s32 %v4459, %v4461
        %v4463 = vrot.slane %v4328, %v4462
        %v4465 = vunpack.c.l.s4 1983009808
        %v4466 = vunpack.c.0.s8 %v4465
        %v4467 = vlaneseq
        %v4468 = vshrl.u32 %v4467, 7
        %v4469 = vsub.s32 %v4466, %v4468
        %v4470 = vrot.slane %v4456, %v4469
        %v4471 = vcombine.high %v4463, %v4463
        %v4472 = vcombine.high %v4470, %v4470
        %v4505 = vrot.slane %v4344, 7
        %v4506 = vrot.slane %v4505, 2
        %v4507 = vrot.slane %v4352, 7
        %v4508 = vrot.slane %v4507, 2
        %v4509 = vrot.slane %v4351, 7
        %v4510 = vrot.slane %v4509, 2
        %v4511 = vrot.slane %v4353, 7
        %v4512 = vrot.slane %v4511, 2
        %v4513 = vrot.slane %v4361, 7
        %v4514 = vrot.slane %v4513, 2
        %v4515 = vrot.slane %v4369, 7
        %v4516 = vrot.slane %v4515, 2
        %v4517 = vrot.slane %v4368, 7
        %v4518 = vrot.slane %v4517, 2
        %v4519 = vrot.slane %v4370, 7
        %v4520 = vrot.slane %v4519, 2
        %v4521 = vrot.slane %v4378, 7
        %v4522 = vrot.slane %v4521, 2
        %v4523 = vrot.slane %v4386, 7
        %v4524 = vrot.slane %v4523, 2
        %v4525 = vrot.slane %v4385, 7
        %v4526 = vrot.slane %v4525, 2
        %v4527 = vrot.slane %v4387, 7
        %v4528 = vrot.slane %v4527, 2
        %v4529 = vrot.slane %v4395, 7
        %v4530 = vrot.slane %v4529, 2
        %v4531 = vrot.slane %v4403, 7
        %v4532 = vrot.slane %v4531, 2
        %v4533 = vrot.slane %v4402, 7
        %v4534 = vrot.slane %v4533, 2
        %v4535 = vrot.slane %v4404, 7
        %v4536 = vrot.slane %v4535, 2
        %v4537 = vrot.slane %v4412, 7
        %v4538 = vrot.slane %v4537, 2
        %v4539 = vrot.slane %v4420, 7
        %v4540 = vrot.slane %v4539, 2
        %v4541 = vrot.slane %v4419, 7
        %v4542 = vrot.slane %v4541, 2
        %v4543 = vrot.slane %v4421, 7
        %v4544 = vrot.slane %v4543, 2
        %v4545 = vrot.slane %v4429, 7
        %v4546 = vrot.slane %v4545, 2
        %v4547 = vrot.slane %v4437, 7
        %v4548 = vrot.slane %v4547, 2
        %v4549 = vrot.slane %v4436, 7
        %v4550 = vrot.slane %v4549, 2
        %v4551 = vrot.slane %v4438, 7
        %v4552 = vrot.slane %v4551, 2
        %v4553 = vrot.slane %v4446, 7
        %v4554 = vrot.slane %v4553, 2
        %v4555 = vrot.slane %v4454, 7
        %v4556 = vrot.slane %v4555, 2
        %v4557 = vrot.slane %v4453, 7
        %v4558 = vrot.slane %v4557, 2
        %v4559 = vrot.slane %v4455, 7
        %v4560 = vrot.slane %v4559, 2
        %v4561 = vrot.slane %v4463, 7
        %v4562 = vrot.slane %v4561, 2
        %v4563 = vrot.slane %v4471, 7
        %v4564 = vrot.slane %v4563, 2
        %v4565 = vrot.slane %v4470, 7
        %v4566 = vrot.slane %v4565, 2
        %v4567 = vrot.slane %v4472, 7
        %v4568 = vrot.slane %v4567, 2
        %v4601 = vmax.f32 %v4344, %v4506
        %v4602 = vmax.f32 %v4352, %v4508
        %v4603 = vmax.f32 %v4351, %v4510
        %v4604 = vmax.f32 %v4353, %v4512
        %v4605 = vmax.f32 %v4361, %v4514
        %v4606 = vmax.f32 %v4369, %v4516
        %v4607 = vmax.f32 %v4368, %v4518
        %v4608 = vmax.f32 %v4370, %v4520
        %v4609 = vmax.f32 %v4378, %v4522
        %v4610 = vmax.f32 %v4386, %v4524
        %v4611 = vmax.f32 %v4385, %v4526
        %v4612 = vmax.f32 %v4387, %v4528
        %v4613 = vmax.f32 %v4395, %v4530
        %v4614 = vmax.f32 %v4403, %v4532
        %v4615 = vmax.f32 %v4402, %v4534
        %v4616 = vmax.f32 %v4404, %v4536
        %v4617 = vmax.f32 %v4412, %v4538
        %v4618 = vmax.f32 %v4420, %v4540
        %v4619 = vmax.f32 %v4419, %v4542
        %v4620 = vmax.f32 %v4421, %v4544
        %v4621 = vmax.f32 %v4429, %v4546
        %v4622 = vmax.f32 %v4437, %v4548
        %v4623 = vmax.f32 %v4436, %v4550
        %v4624 = vmax.f32 %v4438, %v4552
        %v4625 = vmax.f32 %v4446, %v4554
        %v4626 = vmax.f32 %v4454, %v4556
        %v4627 = vmax.f32 %v4453, %v4558
        %v4628 = vmax.f32 %v4455, %v4560
        %v4629 = vmax.f32 %v4463, %v4562
        %v4630 = vmax.f32 %v4471, %v4564
        %v4631 = vmax.f32 %v4470, %v4566
        %v4632 = vmax.f32 %v4472, %v4568
        %v4665 = vlaneseq
        %v4666 = vshrl.u32 %v4665, 7
        %v4667 = vsub.s32 0, %v4666
        %v4668 = vrot.slane %v4601, %v4667
        %v4669 = vlaneseq
        %v4670 = vshrl.u32 %v4669, 7
        %v4671 = vsub.s32 0, %v4670
        %v4672 = vrot.slane %v4602, %v4671
        %v4673 = vlaneseq
        %v4674 = vshrl.u32 %v4673, 7
        %v4675 = vsub.s32 0, %v4674
        %v4676 = vrot.slane %v4603, %v4675
        %v4677 = vlaneseq
        %v4678 = vshrl.u32 %v4677, 7
        %v4679 = vsub.s32 0, %v4678
        %v4680 = vrot.slane %v4604, %v4679
        %v4681 = vlaneseq
        %v4682 = vshrl.u32 %v4681, 7
        %v4683 = vsub.s32 0, %v4682
        %v4684 = vrot.slane %v4605, %v4683
        %v4685 = vlaneseq
        %v4686 = vshrl.u32 %v4685, 7
        %v4687 = vsub.s32 0, %v4686
        %v4688 = vrot.slane %v4606, %v4687
        %v4689 = vlaneseq
        %v4690 = vshrl.u32 %v4689, 7
        %v4691 = vsub.s32 0, %v4690
        %v4692 = vrot.slane %v4607, %v4691
        %v4693 = vlaneseq
        %v4694 = vshrl.u32 %v4693, 7
        %v4695 = vsub.s32 0, %v4694
        %v4696 = vrot.slane %v4608, %v4695
        %v4697 = vlaneseq
        %v4698 = vshrl.u32 %v4697, 7
        %v4699 = vsub.s32 0, %v4698
        %v4700 = vrot.slane %v4609, %v4699
        %v4701 = vlaneseq
        %v4702 = vshrl.u32 %v4701, 7
        %v4703 = vsub.s32 0, %v4702
        %v4704 = vrot.slane %v4610, %v4703
        %v4705 = vlaneseq
        %v4706 = vshrl.u32 %v4705, 7
        %v4707 = vsub.s32 0, %v4706
        %v4708 = vrot.slane %v4611, %v4707
        %v4709 = vlaneseq
        %v4710 = vshrl.u32 %v4709, 7
        %v4711 = vsub.s32 0, %v4710
        %v4712 = vrot.slane %v4612, %v4711
        %v4713 = vlaneseq
        %v4714 = vshrl.u32 %v4713, 7
        %v4715 = vsub.s32 0, %v4714
        %v4716 = vrot.slane %v4613, %v4715
        %v4717 = vlaneseq
        %v4718 = vshrl.u32 %v4717, 7
        %v4719 = vsub.s32 0, %v4718
        %v4720 = vrot.slane %v4614, %v4719
        %v4721 = vlaneseq
        %v4722 = vshrl.u32 %v4721, 7
        %v4723 = vsub.s32 0, %v4722
        %v4724 = vrot.slane %v4615, %v4723
        %v4725 = vlaneseq
        %v4726 = vshrl.u32 %v4725, 7
        %v4727 = vsub.s32 0, %v4726
        %v4728 = vrot.slane %v4616, %v4727
        %v4729 = vlaneseq
        %v4730 = vshrl.u32 %v4729, 7
        %v4731 = vsub.s32 0, %v4730
        %v4732 = vrot.slane %v4617, %v4731
        %v4733 = vlaneseq
        %v4734 = vshrl.u32 %v4733, 7
        %v4735 = vsub.s32 0, %v4734
        %v4736 = vrot.slane %v4618, %v4735
        %v4737 = vlaneseq
        %v4738 = vshrl.u32 %v4737, 7
        %v4739 = vsub.s32 0, %v4738
        %v4740 = vrot.slane %v4619, %v4739
        %v4741 = vlaneseq
        %v4742 = vshrl.u32 %v4741, 7
        %v4743 = vsub.s32 0, %v4742
        %v4744 = vrot.slane %v4620, %v4743
        %v4745 = vlaneseq
        %v4746 = vshrl.u32 %v4745, 7
        %v4747 = vsub.s32 0, %v4746
        %v4748 = vrot.slane %v4621, %v4747
        %v4749 = vlaneseq
        %v4750 = vshrl.u32 %v4749, 7
        %v4751 = vsub.s32 0, %v4750
        %v4752 = vrot.slane %v4622, %v4751
        %v4753 = vlaneseq
        %v4754 = vshrl.u32 %v4753, 7
        %v4755 = vsub.s32 0, %v4754
        %v4756 = vrot.slane %v4623, %v4755
        %v4757 = vlaneseq
        %v4758 = vshrl.u32 %v4757, 7
        %v4759 = vsub.s32 0, %v4758
        %v4760 = vrot.slane %v4624, %v4759
        %v4761 = vlaneseq
        %v4762 = vshrl.u32 %v4761, 7
        %v4763 = vsub.s32 0, %v4762
        %v4764 = vrot.slane %v4625, %v4763
        %v4765 = vlaneseq
        %v4766 = vshrl.u32 %v4765, 7
        %v4767 = vsub.s32 0, %v4766
        %v4768 = vrot.slane %v4626, %v4767
        %v4769 = vlaneseq
        %v4770 = vshrl.u32 %v4769, 7
        %v4771 = vsub.s32 0, %v4770
        %v4772 = vrot.slane %v4627, %v4771
        %v4773 = vlaneseq
        %v4774 = vshrl.u32 %v4773, 7
        %v4775 = vsub.s32 0, %v4774
        %v4776 = vrot.slane %v4628, %v4775
        %v4777 = vlaneseq
        %v4778 = vshrl.u32 %v4777, 7
        %v4779 = vsub.s32 0, %v4778
        %v4780 = vrot.slane %v4629, %v4779
        %v4781 = vlaneseq
        %v4782 = vshrl.u32 %v4781, 7
        %v4783 = vsub.s32 0, %v4782
        %v4784 = vrot.slane %v4630, %v4783
        %v4785 = vlaneseq
        %v4786 = vshrl.u32 %v4785, 7
        %v4787 = vsub.s32 0, %v4786
        %v4788 = vrot.slane %v4631, %v4787
        %v4789 = vlaneseq
        %v4790 = vshrl.u32 %v4789, 7
        %v4791 = vsub.s32 0, %v4790
        %v4792 = vrot.slane %v4632, %v4791
        %vm4793 = vcmask 1041409
        %v4794 = vsel %vm4793, %v4672, %v4668
        %vm4795 = vcmask 1042434
        %v4796 = vsel %vm4795, %v4676, %v4794
        %vm4797 = vcmask 1043459
        %v4798 = vsel %vm4797, %v4680, %v4796
        %vm4799 = vcmask 1044484
        %v4800 = vsel %vm4799, %v4684, %v4798
        %vm4801 = vcmask 1045509
        %v4802 = vsel %vm4801, %v4688, %v4800
        %vm4803 = vcmask 1046534
        %v4804 = vsel %vm4803, %v4692, %v4802
        %vm4805 = vcmask 1047559
        %v4806 = vsel %vm4805, %v4696, %v4804
        %v4807 = vsel %vm4793, %v4704, %v4700
        %v4808 = vsel %vm4795, %v4708, %v4807
        %v4809 = vsel %vm4797, %v4712, %v4808
        %v4810 = vsel %vm4799, %v4716, %v4809
        %v4811 = vsel %vm4801, %v4720, %v4810
        %v4812 = vsel %vm4803, %v4724, %v4811
        %v4813 = vsel %vm4805, %v4728, %v4812
        %v4814 = vsel %vm4793, %v4736, %v4732
        %v4815 = vsel %vm4795, %v4740, %v4814
        %v4816 = vsel %vm4797, %v4744, %v4815
        %v4817 = vsel %vm4799, %v4748, %v4816
        %v4818 = vsel %vm4801, %v4752, %v4817
        %v4819 = vsel %vm4803, %v4756, %v4818
        %v4820 = vsel %vm4805, %v4760, %v4819
        %v4821 = vsel %vm4793, %v4768, %v4764
        %v4822 = vsel %vm4795, %v4772, %v4821
        %v4823 = vsel %vm4797, %v4776, %v4822
        %v4824 = vsel %vm4799, %v4780, %v4823
        %v4825 = vsel %vm4801, %v4784, %v4824
        %v4826 = vsel %vm4803, %v4788, %v4825
        %v4827 = vsel %vm4805, %v4792, %v4826
        %4832 = vst.msk [vmem:[%s429] sm:$0xff] %vm4304, %v4806
        %4833 = vst.msk [vmem:[%s429 + $0x8] sm:$0xff] %vm4304, %v4813
        %4834 = vst.msk [vmem:[%s429 + $0x10] sm:$0xff] %vm4304, %v4820
        %4835 = vst.msk [vmem:[%s429 + $0x18] sm:$0xff] %vm4304, %v4827
        %s4836 = sand.u32 %s206, 1
        %s4837 = scalar_lea.sflag [#allocation5], %s4836
        %s4838 = sand.u32 %s206, 1
        %s4839 = smul.addr %s4838, 128
        %s4840 = scalar_lea.vmem [#allocation15], %s4839
        %s4841 = sand.u32 %s234, 1
        %s4842 = scalar_lea.sflag [#allocation17], %s4841
        %s4843 = sand.u32 %s234, 1
        %s4844 = smul.addr %s4843, 32
        %s4845 = scalar_lea.vmem [#allocation16], %s4844
        // Predicated region
        $region85: #{downsample_forward.1} parent=47 // pred_check
          %p4846 = pneg %p216
        $region86: #{downsample_forward.1} parent=47 // pred_check_branch
          %4848 = sbr.rel (%p4846) target = $region88
        $region87: #{downsample_forward.1} parent=47 // pred_region
          %s4849 = smul.u32 8, %s37
          %s4851 = ssub.s32 2048, 2048
          %4852 = vsyncadd %s4837, %s4851
          %s4853 = smul.addr %s4849, 2
          %s4854 = smul.addr %s36, 32
          %s4855 = sadd.s32 %s4853, %s4854
          %s4856 = smul.addr %s4855, 128
          %s4857 = scalar_lea.hbm %s7, %s4856
          %s4858 = sshll.u32 %s4840, 4
          %s4859 = int_to_ptr.vmem [resolvable:$true] %s4858
          %4864 = dma.vmem_to_hbm [thread:$0]  %s4859, 2048, %s4857, %s4837, 128, 128, 8
        $region88: #{downsample_forward.1} parent=47 // pred_fallthru
          _
        // Predicated region
        $region89: #{downsample_forward.1} parent=47 // pred_check
          %p4865 = pneg %p244
        $region90: #{downsample_forward.1} parent=47 // pred_check_branch
          %4867 = sbr.rel (%p4865) target = $region92
        $region91: #{downsample_forward.1} parent=47 // pred_region
          %s4868 = smul.u32 4, %s37
          %s4870 = ssub.s32 512, 512
          %4871 = vsyncadd %s4842, %s4870
          %s4872 = smul.addr %s36, 8
          %s4873 = sadd.s32 %s4868, %s4872
          %s4874 = smul.addr %s4873, 128
          %s4875 = scalar_lea.hbm %s8, %s4874
          %s4876 = sshll.u32 %s4845, 4
          %s4877 = int_to_ptr.vmem [resolvable:$true] %s4876
          %4882 = dma.vmem_to_hbm [thread:$0]  %s4877, 512, %s4875, %s4842, 128, 128, 8
        $region92: #{downsample_forward.1} parent=47 // pred_fallthru
          _
      $region48: #{downsample_forward.1} parent=5 // pred_fallthru
        _
      %p4883 = scmp.le.s32.totalorder 2, %s27
      // Predicated region
      $region93: #{downsample_forward.1} parent=5 // pred_check
        %p4884 = pneg %p4883
      $region94: #{downsample_forward.1} parent=5 // pred_check_branch
        %4886 = sbr.rel (%p4884) target = $region96
      $region95: #{downsample_forward.1} parent=5 // pred_region
        %s4887 = ssub.s32 %s27, 2
        // Predicated region
        $region97: #{downsample_forward.1} parent=95 // pred_check
          %p4888 = pneg %p222
        $region98: #{downsample_forward.1} parent=95 // pred_check_branch
          %4890 = sbr.rel (%p4888) target = $region100
        $region99: #{downsample_forward.1} parent=95 // pred_region
          %s4891 = sand.u32 %s207, 1
          %s4892 = scalar_lea.sflag [#allocation5], %s4891
          %s4893 = sand.u32 %s207, 1
          %s4894 = smul.addr %s4893, 128
          %s4895 = scalar_lea.vmem [#allocation15], %s4894
          %4896 = dma.done %s4892, 2048
        $region100: #{downsample_forward.1} parent=95 // pred_fallthru
          _
        // Predicated region
        $region101: #{downsample_forward.1} parent=95 // pred_check
          %p4897 = pneg %p250
        $region102: #{downsample_forward.1} parent=95 // pred_check_branch
          %4899 = sbr.rel (%p4897) target = $region104
        $region103: #{downsample_forward.1} parent=95 // pred_region
          %s4900 = sand.u32 %s235, 1
          %s4901 = scalar_lea.sflag [#allocation17], %s4900
          %s4902 = sand.u32 %s235, 1
          %s4903 = smul.addr %s4902, 32
          %s4904 = scalar_lea.vmem [#allocation16], %s4903
          %4905 = dma.done %s4901, 512
        $region104: #{downsample_forward.1} parent=95 // pred_fallthru
          _
      $region96: #{downsample_forward.1} parent=5 // pred_fallthru
        _
    $region6: #{downsample_forward.1} parent=1 // loop_footer
      %s31 = sadd.s32 1, %s27
    $region7: #{downsample_forward.1} parent=1 // loop_footer_branch
      %26 = sbr.rel target = $region3
    $region8: #{downsample_forward.1} parent=1 // loop_exit
      _
    %4906 = vsyncpa [#allocation4], 1
    %s4907 = scalar_lea.sflag [#allocation4], 1
    %4908 = vsyncpa %s4907, 1
    %4909 = vsyncpa [#allocation7], 1
    %4910 = vsyncpa [#allocation10], 1
    %4911 = vsyncpa [#allocation13], 1
    %4912 = vsyncpa [#allocation5], 1
    %s4913 = scalar_lea.sflag [#allocation5], 1
    %4914 = vsyncpa %s4913, 1
    %4915 = vsyncpa [#allocation17], 1
    %s4916 = scalar_lea.sflag [#allocation17], 1
    %4917 = vsyncpa %s4916, 1

</llo_original>
